<compile_context>
chip_gen: v7x
topology: tpu7x:2x2x1
jax: 0.10.0
libtpu: 0.0.40
codegen_flags: <defaults>
</compile_context>

<pallas_src>
import functools

import jax
import jax.numpy as jnp
from jax.experimental import pallas as pl
from jax.experimental.pallas import tpu as pltpu

CLIP_MEAN = (0.48145466, 0.4578275, 0.40821073)
CLIP_STD = (0.26862954, 0.26130258, 0.27577711)
LN_EPS = 1e-5


def _ln(x, g, b, eps):
    # f32 LayerNorm (biased variance), matches torch.nn.LayerNorm
    mu = jnp.mean(x, axis=-1, keepdims=True)
    var = jnp.mean(jnp.square(x - mu), axis=-1, keepdims=True)
    return (x - mu) * jax.lax.rsqrt(var + eps) * g + b


# --------------------------------------------------------------------------
# Single fused ViT kernel:
#   l == 0      : patch-embed (+ folded normalization) + cls + pos + ln_pre  -> residual scratch
#   every l     : ln1 -> QKV -> multi-head attn -> out-proj -> +res ; ln2 -> MLP -> +res
#   l == last   : CLS row -> ln_post -> @ proj -> output
# --------------------------------------------------------------------------

def _vit_kernel(xp_ref, convw_ref, convb_ref, cls_ref, pos_ref, lnpre_g_ref, lnpre_b_ref,
                ln1g_ref, ln1b_ref, qkvw_ref, qkvb_ref, outw_ref, outb_ref,
                ln2g_ref, ln2b_ref, fc1w_ref, fc1b_ref, fc2w_ref, fc2b_ref,
                lnpost_g_ref, lnpost_b_ref, proj_ref,
                o_ref, res_ref, *, heads, hp, eps):
    l = pl.program_id(1)

    # ---- prologue: patch-embed matmul (normalization already folded in) + cls + pos + ln_pre
    @pl.when(l == 0)
    def _embed():
        pt = jnp.dot(xp_ref[0], convw_ref[...],
                     preferred_element_type=jnp.float32) + convb_ref[...]      # (P, D) f32
        tok = jnp.concatenate([cls_ref[...], pt], axis=0) + pos_ref[...]       # (L, D) f32
        res_ref[...] = _ln(tok, lnpre_g_ref[...], lnpre_b_ref[...], eps)

    x = res_ref[...]                                                           # (L, D) f32

    # ---- attention:  ln1 -> QKV (head-padded, lane-aligned) -> per-head softmax -> out-proj
    h1 = _ln(x, ln1g_ref[...], ln1b_ref[...], eps).astype(jnp.bfloat16)
    qkv = jnp.dot(h1, qkvw_ref[...],
                  preferred_element_type=jnp.float32) + qkvb_ref[...]          # (L, heads*3*hp)

    head_outs = []
    for hh in range(heads):                                                    # static unroll
        base = hh * 3 * hp                                                     # 128-lane aligned
        q = qkv[:, base:base + hp].astype(jnp.bfloat16)                        # scale pre-folded
        k = qkv[:, base + hp:base + 2 * hp].astype(jnp.bfloat16)
        v = qkv[:, base + 2 * hp:base + 3 * hp].astype(jnp.bfloat16)
        s = jax.lax.dot_general(q, k, (((1,), (1,)), ((), ())),
                                preferred_element_type=jnp.float32)            # (L, L) f32
        m = jnp.max(s, axis=-1, keepdims=True)
        p = jnp.exp(s - m)
        denom = jnp.sum(p, axis=-1, keepdims=True)
        o_h = jnp.dot(p.astype(jnp.bfloat16), v, preferred_element_type=jnp.float32)
        o_h = o_h * pl.reciprocal(denom, approx=True)                          # EUP slot
        head_outs.append(o_h.astype(jnp.bfloat16))

    o_cat = jnp.concatenate(head_outs, axis=-1)                                # (L, heads*hp)
    attn = jnp.dot(o_cat, outw_ref[...],
                   preferred_element_type=jnp.float32) + outb_ref[...]         # one full-K dot
    x = x + attn

    # ---- MLP:  ln2 -> fc1 -> QuickGELU -> fc2 -> +residual
    h2 = _ln(x, ln2g_ref[...], ln2b_ref[...], eps).astype(jnp.bfloat16)
    y = jnp.dot(h2, fc1w_ref[...], preferred_element_type=jnp.float32) + fc1b_ref[...]
    y = y * jax.nn.sigmoid(1.702 * y)            # QuickGELU, f32 (bf16 path possible on v6e/v7x)
    z = jnp.dot(y.astype(jnp.bfloat16), fc2w_ref[...],
                preferred_element_type=jnp.float32) + fc2b_ref[...]
    x = x + z
    res_ref[...] = x

    # ---- epilogue: CLS row -> ln_post -> projection (same result as ln_post(all)@proj then [:,0])
    @pl.when(l == pl.num_programs(1) - 1)
    def _head():
        xn = _ln(x[0:1, :], lnpost_g_ref[...], lnpost_b_ref[...], eps).astype(jnp.bfloat16)
        o_ref[0] = jnp.dot(xn, proj_ref[...], preferred_element_type=jnp.float32)


def visual_model_forward(x, params, *, patch, heads):
    """Equivalent of VisualModel.forward: normalize -> visual -> ln_post @ proj -> [:, 0, :]."""
    B, C, H, W = x.shape
    gh, gw = H // patch, W // patch

    # conv(k=patch, s=patch, bias=False) as patch-extract + matmul inside the kernel;
    # per-channel (x-mean)/std is already folded into conv_w / conv_b.
    xp = x.reshape(B, C, gh, patch, gw, patch)
    xp = xp.transpose(0, 2, 4, 1, 3, 5).reshape(B, gh * gw, C * patch * patch)
    xp = xp.astype(jnp.bfloat16)

    P, dpatch = xp.shape[1], xp.shape[2]
    L, D = params["pos"].shape
    E = params["proj"].shape[1]
    layers = params["qkv_w"].shape[0]
    hp = params["qkv_w"].shape[2] // (3 * heads)          # per-head 128-lane-padded width
    Wqkv = params["qkv_w"].shape[2]
    F = params["fc1_w"].shape[2]

    vec = pl.BlockSpec((1, D), lambda b, l: (0, 0))
    lvec = lambda n: pl.BlockSpec((None, 1, n), lambda b, l: (l, 0, 0))
    lmat = lambda m, n: pl.BlockSpec((None, m, n), lambda b, l: (l, 0, 0))

    out = pl.pallas_call(
        functools.partial(_vit_kernel, heads=heads, hp=hp, eps=LN_EPS),
        grid=(B, layers),
        in_specs=[
            pl.BlockSpec((1, P, dpatch), lambda b, l: (b, 0, 0)),   # xp
            pl.BlockSpec((dpatch, D), lambda b, l: (0, 0)),         # conv_w (norm folded)
            vec,                                                    # conv_b (norm folded)
            vec,                                                    # cls
            pl.BlockSpec((L, D), lambda b, l: (0, 0)),              # pos
            vec, vec,                                               # ln_pre g, b
            lvec(D), lvec(D),                                       # ln1 g, b
            lmat(D, Wqkv), lvec(Wqkv),                              # qkv_w, qkv_b (head-padded)
            lmat(heads * hp, D), lvec(D),                           # out_w (head-padded), out_b
            lvec(D), lvec(D),                                       # ln2 g, b
            lmat(D, F), lvec(F),                                    # fc1_w, fc1_b
            lmat(F, D), lvec(D),                                    # fc2_w, fc2_b
            vec, vec,                                               # ln_post g, b
            pl.BlockSpec((D, E), lambda b, l: (0, 0)),              # proj
        ],
        out_specs=pl.BlockSpec((1, 1, E), lambda b, l: (b, 0, 0)),  # constant across layer axis
        out_shape=jax.ShapeDtypeStruct((B, 1, E), jnp.float32),
        scratch_shapes=[pltpu.VMEM((L, D), jnp.float32)],           # resident residual stream
        compiler_params=pltpu.CompilerParams(
            dimension_semantics=("parallel", "arbitrary")),
        # TODO(synk): for real CLIP ViT-L widths on v7x (64 MiB VMEM), tile the MLP F axis over
        # an extra "arbitrary" grid axis / use pl.Buffered(1) on the big weight specs and set
        # vmem_limit_bytes explicitly; unnecessary at these shapes.
    )(xp, params["conv_w"], params["conv_b"], params["cls"], params["pos"],
      params["ln_pre_g"], params["ln_pre_b"],
      params["ln1_g"], params["ln1_b"], params["qkv_w"], params["qkv_b"],
      params["out_w"], params["out_b"], params["ln2_g"], params["ln2_b"],
      params["fc1_w"], params["fc1_b"], params["fc2_w"], params["fc2_b"],
      params["ln_post_g"], params["ln_post_b"], params["proj"])
    return out[:, 0, :]


# --------------------------------------------------------------------------
# Synthetic CLIP-style visual backbone (deterministic weights, no checkpoint)
# --------------------------------------------------------------------------

def init_vit_params(key, *, in_ch, patch, width, layers, embed_dim, num_tokens):
    keys = jax.random.split(key, 4 + layers)
    d_patch = in_ch * patch * patch
    params = {
        # conv1 weight, pre-flattened to (C*p*p, width) with (c, ph, pw) row order
        "conv_w": jax.random.normal(keys[0], (d_patch, width), jnp.float32) * width ** -0.5,
        "cls": jax.random.normal(keys[1], (width,), jnp.float32) * width ** -0.5,
        "pos": jax.random.normal(keys[2], (num_tokens, width), jnp.float32) * width ** -0.5,
        "ln_pre_g": jnp.ones((width,), jnp.float32), "ln_pre_b": jnp.zeros((width,), jnp.float32),
        "ln_post_g": jnp.ones((width,), jnp.float32), "ln_post_b": jnp.zeros((width,), jnp.float32),
        "proj": jax.random.normal(keys[3], (width, embed_dim), jnp.float32) * width ** -0.5,
        "blocks": [],
    }
    for l in range(layers):
        bk = jax.random.split(keys[4 + l], 4)
        params["blocks"].append({
            "ln1_g": jnp.ones((width,), jnp.float32), "ln1_b": jnp.zeros((width,), jnp.float32),
            "qkv_w": jax.random.normal(bk[0], (width, 3 * width), jnp.float32) * width ** -0.5,
            "qkv_b": jnp.zeros((3 * width,), jnp.float32),
            "out_w": jax.random.normal(bk[1], (width, width), jnp.float32) * width ** -0.5,
            "out_b": jnp.zeros((width,), jnp.float32),
            "ln2_g": jnp.ones((width,), jnp.float32), "ln2_b": jnp.zeros((width,), jnp.float32),
            "fc1_w": jax.random.normal(bk[2], (width, 4 * width), jnp.float32) * width ** -0.5,
            "fc1_b": jnp.zeros((4 * width,), jnp.float32),
            "fc2_w": jax.random.normal(bk[3], (4 * width, width), jnp.float32) * (4 * width) ** -0.5,
            "fc2_b": jnp.zeros((width,), jnp.float32),
        })
    return params


def prepare_params(raw, *, patch, heads):
    """One-time prep:
       * fold (x-mean)/std into the patch-embed weights (exact),
       * fold the 1/sqrt(dh) attention scale into the q columns/bias of qkv_w,
       * re-pack qkv_w / qkv_b / out_w so each head occupies a zero-padded 128-lane slot
         (lane-aligned head slices, one full-depth out-projection dot in the kernel),
       * stack per-layer params with a leading `layers` axis for the fused grid,
       * cast MXU weight matrices to bf16 (f32 accumulation in the kernel)."""
    mean = jnp.asarray(CLIP_MEAN, jnp.float32)
    std = jnp.asarray(CLIP_STD, jnp.float32)
    pp = patch * patch
    inv_std = jnp.repeat(1.0 / std, pp)          # per-row 1/std, row order (c, ph, pw)
    shift = jnp.repeat(-mean / std, pp)          # per-row -mean/std
    conv_w = raw["conv_w"]
    D = conv_w.shape[1]
    dh = D // heads
    hp = -(-dh // 128) * 128                     # per-head width padded to a 128-lane multiple
    scale = dh ** -0.5

    p = {
        "conv_w": (conv_w * inv_std[:, None]).astype(jnp.bfloat16),
        "conv_b": (shift @ conv_w).reshape(1, D),       # exact fold of the normalization
        "cls": raw["cls"].reshape(1, D),
        "pos": raw["pos"],
        "ln_pre_g": raw["ln_pre_g"].reshape(1, D), "ln_pre_b": raw["ln_pre_b"].reshape(1, D),
        "ln_post_g": raw["ln_post_g"].reshape(1, D), "ln_post_b": raw["ln_post_b"].reshape(1, D),
        "proj": raw["proj"].astype(jnp.bfloat16),
    }

    stacks = {k: [] for k in ("ln1_g", "ln1_b", "qkv_w", "qkv_b", "out_w", "out_b",
                              "ln2_g", "ln2_b", "fc1_w", "fc1_b", "fc2_w", "fc2_b")}
    for blk in raw["blocks"]:
        qw, qb = blk["qkv_w"], blk["qkv_b"]
        Wq, Wk, Wv = qw[:, :D], qw[:, D:2 * D], qw[:, 2 * D:]
        bq, bk_, bv = qb[:D], qb[D:2 * D], qb[2 * D:]
        wcols, bcols = [], []
        for h in range(heads):
            sl = slice(h * dh, (h + 1) * dh)
            for Wm, bm, s in ((Wq, bq, scale), (Wk, bk_, 1.0), (Wv, bv, 1.0)):
                wcols.append(jnp.zeros((D, hp), jnp.float32).at[:, :dh].set(Wm[:, sl] * s))
                bcols.append(jnp.zeros((hp,), jnp.float32).at[:dh].set(bm[sl] * s))
        stacks["qkv_w"].append(jnp.concatenate(wcols, axis=1).astype(jnp.bfloat16))
        stacks["qkv_b"].append(jnp.concatenate(bcols).reshape(1, heads * 3 * hp))

        ow_p = jnp.zeros((heads * hp, D), jnp.float32)
        for h in range(heads):
            ow_p = ow_p.at[h * hp:h * hp + dh, :].set(blk["out_w"][h * dh:(h + 1) * dh, :])
        stacks["out_w"].append(ow_p.astype(jnp.bfloat16))

        stacks["ln1_g"].append(blk["ln1_g"].reshape(1, D))
        stacks["ln1_b"].append(blk["ln1_b"].reshape(1, D))
        stacks["out_b"].append(blk["out_b"].reshape(1, D))
        stacks["ln2_g"].append(blk["ln2_g"].reshape(1, D))
        stacks["ln2_b"].append(blk["ln2_b"].reshape(1, D))
        stacks["fc1_w"].append(blk["fc1_w"].astype(jnp.bfloat16))
        stacks["fc1_b"].append(blk["fc1_b"].reshape(1, -1))
        stacks["fc2_w"].append(blk["fc2_w"].astype(jnp.bfloat16))
        stacks["fc2_b"].append(blk["fc2_b"].reshape(1, D))

    for k, v in stacks.items():
        p[k] = jnp.stack(v)
    return p


# TODO(synk): the real `self.visual` is an external pretrained CLIP ViT; here it is a small
# synthetic ViT with deterministic weights (no checkpoint loading).  The torchvision
# `Compose([ToTensor(), Normalize(...)])` transform is never used in forward() and is not translated.

if __name__ == "__main__":
    B, C, H, W = 2, 3, 32, 32
    PATCH, WIDTH, HEADS, LAYERS, EMBED = 8, 128, 4, 2, 64
    NUM_TOKENS = (H // PATCH) * (W // PATCH) + 1   # 17

    key = jax.random.PRNGKey(0)
    kx, kp = jax.random.split(key)
    x = jax.random.uniform(kx, (B, C, H, W), dtype=jnp.float32)   # image in [0, 1]
    raw = init_vit_params(kp, in_ch=C, patch=PATCH, width=WIDTH,
                          layers=LAYERS, embed_dim=EMBED, num_tokens=NUM_TOKENS)
    params = prepare_params(raw, patch=PATCH, heads=HEADS)

    fwd = jax.jit(functools.partial(visual_model_forward, patch=PATCH, heads=HEADS))
    out = jax.block_until_ready(fwd(x, params))
    assert out.shape == (B, EMBED), out.shape
    assert out.dtype == jnp.float32
    assert bool(jnp.all(jnp.isfinite(out)))
    print("KERNEL_OK")
</pallas_src>

<mosaic_0001>
module attributes {stable_mosaic.version = 11 : i64} {
  func.func @_vit_kernel(%arg0: i32, %arg1: i32, %arg2: memref<1x16x192xbf16, #tpu.memory_space<vmem>>, %arg3: memref<192x128xbf16, #tpu.memory_space<vmem>>, %arg4: memref<1x128xf32, #tpu.memory_space<vmem>>, %arg5: memref<1x128xf32, #tpu.memory_space<vmem>>, %arg6: memref<17x128xf32, #tpu.memory_space<vmem>>, %arg7: memref<1x128xf32, #tpu.memory_space<vmem>>, %arg8: memref<1x128xf32, #tpu.memory_space<vmem>>, %arg9: memref<1x1x128xf32, #tpu.memory_space<vmem>>, %arg10: memref<1x1x128xf32, #tpu.memory_space<vmem>>, %arg11: memref<1x128x1536xbf16, #tpu.memory_space<vmem>>, %arg12: memref<1x1x1536xf32, #tpu.memory_space<vmem>>, %arg13: memref<1x512x128xbf16, #tpu.memory_space<vmem>>, %arg14: memref<1x1x128xf32, #tpu.memory_space<vmem>>, %arg15: memref<1x1x128xf32, #tpu.memory_space<vmem>>, %arg16: memref<1x1x128xf32, #tpu.memory_space<vmem>>, %arg17: memref<1x128x512xbf16, #tpu.memory_space<vmem>>, %arg18: memref<1x1x512xf32, #tpu.memory_space<vmem>>, %arg19: memref<1x512x128xbf16, #tpu.memory_space<vmem>>, %arg20: memref<1x1x128xf32, #tpu.memory_space<vmem>>, %arg21: memref<1x128xf32, #tpu.memory_space<vmem>>, %arg22: memref<1x128xf32, #tpu.memory_space<vmem>>, %arg23: memref<128x64xbf16, #tpu.memory_space<vmem>>, %arg24: memref<1x1x64xf32, #tpu.memory_space<vmem>>, %arg25: memref<17x128xf32, #tpu.memory_space<vmem>>) attributes {dimension_semantics = [#tpu.dimension_semantics<parallel>, #tpu.dimension_semantics<arbitrary>], iteration_bounds = array<i64: 2, 2>, scalar_prefetch = 0 : i64, scratch_operands = 1 : i64, tpu.core_type = #tpu.core_type<tc>, window_params = [{transform_indices = @transform_0, window_bounds = array<i64: 1, 16, 192>}, {pipeline_mode = #tpu.pipeline_mode<synchronous>, transform_indices = @transform_1, window_bounds = array<i64: 192, 128>}, {pipeline_mode = #tpu.pipeline_mode<synchronous>, transform_indices = @transform_2, window_bounds = array<i64: 1, 128>}, {pipeline_mode = #tpu.pipeline_mode<synchronous>, transform_indices = @transform_3, window_bounds = array<i64: 1, 128>}, {pipeline_mode = #tpu.pipeline_mode<synchronous>, transform_indices = @transform_4, window_bounds = array<i64: 17, 128>}, {pipeline_mode = #tpu.pipeline_mode<synchronous>, transform_indices = @transform_5, window_bounds = array<i64: 1, 128>}, {pipeline_mode = #tpu.pipeline_mode<synchronous>, transform_indices = @transform_6, window_bounds = array<i64: 1, 128>}, {transform_indices = @transform_7, window_bounds = array<i64: 1, 1, 128>}, {transform_indices = @transform_8, window_bounds = array<i64: 1, 1, 128>}, {transform_indices = @transform_9, window_bounds = array<i64: 1, 128, 1536>}, {transform_indices = @transform_10, window_bounds = array<i64: 1, 1, 1536>}, {transform_indices = @transform_11, window_bounds = array<i64: 1, 512, 128>}, {transform_indices = @transform_12, window_bounds = array<i64: 1, 1, 128>}, {transform_indices = @transform_13, window_bounds = array<i64: 1, 1, 128>}, {transform_indices = @transform_14, window_bounds = array<i64: 1, 1, 128>}, {transform_indices = @transform_15, window_bounds = array<i64: 1, 128, 512>}, {transform_indices = @transform_16, window_bounds = array<i64: 1, 1, 512>}, {transform_indices = @transform_17, window_bounds = array<i64: 1, 512, 128>}, {transform_indices = @transform_18, window_bounds = array<i64: 1, 1, 128>}, {pipeline_mode = #tpu.pipeline_mode<synchronous>, transform_indices = @transform_19, window_bounds = array<i64: 1, 128>}, {pipeline_mode = #tpu.pipeline_mode<synchronous>, transform_indices = @transform_20, window_bounds = array<i64: 1, 128>}, {pipeline_mode = #tpu.pipeline_mode<synchronous>, transform_indices = @transform_21, window_bounds = array<i64: 128, 64>}, {transform_indices = @transform_22, window_bounds = array<i64: 1, 1, 64>}]} {
    %c0_i32 = arith.constant 0 : i32
    %0 = arith.cmpi eq, %arg1, %c0_i32 : i32
    %1 = arith.extui %0 : i1 to i32
    %c0_i32_0 = arith.constant 0 : i32
    %2 = arith.cmpi ne, %1, %c0_i32_0 : i32
    scf.if %2 {
      %c0_72 = arith.constant 0 : index
      %c0_73 = arith.constant 0 : index
      %c0_74 = arith.constant 0 : index
      %182 = vector.load %arg2[%c0_72, %c0_73, %c0_74] : memref<1x16x192xbf16, #tpu.memory_space<vmem>>, vector<1x16x192xbf16>
      %183 = vector.shape_cast %182 : vector<1x16x192xbf16> to vector<16x192xbf16>
      %c0_75 = arith.constant 0 : index
      %c0_76 = arith.constant 0 : index
      %184 = vector.load %arg3[%c0_75, %c0_76] : memref<192x128xbf16, #tpu.memory_space<vmem>>, vector<192x128xbf16>
      %cst_77 = arith.constant dense<0.000000e+00> : vector<16x128xf32>
      %185 = tpu.matmul %183, %184, %cst_77 {dimension_numbers = #tpu.dot_dimension_numbers<[1], [0], [0], [1], [0, 0, 1, 1], [], []>} : vector<16x192xbf16>, vector<192x128xbf16>, vector<16x128xf32> -> vector<16x128xf32>
      %c0_78 = arith.constant 0 : index
      %c0_79 = arith.constant 0 : index
      %186 = vector.load %arg4[%c0_78, %c0_79] : memref<1x128xf32, #tpu.memory_space<vmem>>, vector<1x128xf32>
      %187 = vector.broadcast %186 : vector<1x128xf32> to vector<16x128xf32>
      %188 = arith.addf %185, %187 : vector<16x128xf32>
      %c0_80 = arith.constant 0 : index
      %c0_81 = arith.constant 0 : index
      %189 = vector.load %arg5[%c0_80, %c0_81] : memref<1x128xf32, #tpu.memory_space<vmem>>, vector<1x128xf32>
      %190 = tpu.concatenate %189, %188 in 0 : vector<1x128xf32>, vector<16x128xf32> -> vector<17x128xf32>
      %c0_82 = arith.constant 0 : index
      %c0_83 = arith.constant 0 : index
      %191 = vector.load %arg6[%c0_82, %c0_83] : memref<17x128xf32, #tpu.memory_space<vmem>>, vector<17x128xf32>
      %192 = arith.addf %190, %191 : vector<17x128xf32>
      %c0_84 = arith.constant 0 : index
      %c0_85 = arith.constant 0 : index
      %193 = vector.load %arg7[%c0_84, %c0_85] : memref<1x128xf32, #tpu.memory_space<vmem>>, vector<1x128xf32>
      %c0_86 = arith.constant 0 : index
      %c0_87 = arith.constant 0 : index
      %194 = vector.load %arg8[%c0_86, %c0_87] : memref<1x128xf32, #tpu.memory_space<vmem>>, vector<1x128xf32>
      %cst_88 = arith.constant dense<0.000000e+00> : vector<17xf32>
      %195 = vector.multi_reduction <add>, %192, %cst_88 [1] : vector<17x128xf32> to vector<17xf32>
      %196 = vector.shape_cast %195 : vector<17xf32> to vector<17x1xf32>
      %cst_89 = arith.constant 1.280000e+02 : f32
      %197 = vector.broadcast %cst_89 : f32 to vector<17x1xf32>
      %198 = arith.divf %196, %197 : vector<17x1xf32>
      %199 = vector.broadcast %198 : vector<17x1xf32> to vector<17x128xf32>
      %200 = arith.subf %192, %199 : vector<17x128xf32>
      %201 = arith.mulf %200, %200 : vector<17x128xf32>
      %cst_90 = arith.constant dense<0.000000e+00> : vector<17xf32>
      %202 = vector.multi_reduction <add>, %201, %cst_90 [1] : vector<17x128xf32> to vector<17xf32>
      %203 = vector.shape_cast %202 : vector<17xf32> to vector<17x1xf32>
      %cst_91 = arith.constant 1.280000e+02 : f32
      %204 = vector.broadcast %cst_91 : f32 to vector<17x1xf32>
      %205 = arith.divf %203, %204 : vector<17x1xf32>
      %206 = vector.broadcast %198 : vector<17x1xf32> to vector<17x128xf32>
      %207 = arith.subf %192, %206 : vector<17x128xf32>
      %cst_92 = arith.constant 9.99999974E-6 : f32
      %208 = vector.broadcast %cst_92 : f32 to vector<17x1xf32>
      %209 = arith.addf %205, %208 : vector<17x1xf32>
      %210 = math.rsqrt %209 : vector<17x1xf32>
      %211 = vector.broadcast %210 : vector<17x1xf32> to vector<17x128xf32>
      %212 = arith.mulf %207, %211 : vector<17x128xf32>
      %213 = vector.broadcast %193 : vector<1x128xf32> to vector<17x128xf32>
      %214 = arith.mulf %212, %213 : vector<17x128xf32>
      %215 = vector.broadcast %194 : vector<1x128xf32> to vector<17x128xf32>
      %216 = arith.addf %214, %215 : vector<17x128xf32>
      %c0_93 = arith.constant 0 : index
      %c0_94 = arith.constant 0 : index
      %217 = vector.load %arg25[%c0_93, %c0_94] : memref<17x128xf32, #tpu.memory_space<vmem>>, vector<17x128xf32>
      tpu.vector_store %arg25[%c0_93, %c0_94], %216 {strides = array<i32>} : memref<17x128xf32, #tpu.memory_space<vmem>>, vector<17x128xf32>,
    } else {
    }
    %c0 = arith.constant 0 : index
    %c0_1 = arith.constant 0 : index
    %3 = vector.load %arg25[%c0, %c0_1] : memref<17x128xf32, #tpu.memory_space<vmem>>, vector<17x128xf32>
    %c0_2 = arith.constant 0 : index
    %c0_3 = arith.constant 0 : index
    %c0_4 = arith.constant 0 : index
    %4 = vector.load %arg9[%c0_2, %c0_3, %c0_4] : memref<1x1x128xf32, #tpu.memory_space<vmem>>, vector<1x1x128xf32>
    %5 = vector.shape_cast %4 : vector<1x1x128xf32> to vector<1x128xf32>
    %c0_5 = arith.constant 0 : index
    %c0_6 = arith.constant 0 : index
    %c0_7 = arith.constant 0 : index
    %6 = vector.load %arg10[%c0_5, %c0_6, %c0_7] : memref<1x1x128xf32, #tpu.memory_space<vmem>>, vector<1x1x128xf32>
    %7 = vector.shape_cast %6 : vector<1x1x128xf32> to vector<1x128xf32>
    %cst = arith.constant dense<0.000000e+00> : vector<17xf32>
    %8 = vector.multi_reduction <add>, %3, %cst [1] : vector<17x128xf32> to vector<17xf32>
    %9 = vector.shape_cast %8 : vector<17xf32> to vector<17x1xf32>
    %cst_8 = arith.constant 1.280000e+02 : f32
    %10 = vector.broadcast %cst_8 : f32 to vector<17x1xf32>
    %11 = arith.divf %9, %10 : vector<17x1xf32>
    %12 = vector.broadcast %11 : vector<17x1xf32> to vector<17x128xf32>
    %13 = arith.subf %3, %12 : vector<17x128xf32>
    %14 = arith.mulf %13, %13 : vector<17x128xf32>
    %cst_9 = arith.constant dense<0.000000e+00> : vector<17xf32>
    %15 = vector.multi_reduction <add>, %14, %cst_9 [1] : vector<17x128xf32> to vector<17xf32>
    %16 = vector.shape_cast %15 : vector<17xf32> to vector<17x1xf32>
    %cst_10 = arith.constant 1.280000e+02 : f32
    %17 = vector.broadcast %cst_10 : f32 to vector<17x1xf32>
    %18 = arith.divf %16, %17 : vector<17x1xf32>
    %19 = vector.broadcast %11 : vector<17x1xf32> to vector<17x128xf32>
    %20 = arith.subf %3, %19 : vector<17x128xf32>
    %cst_11 = arith.constant 9.99999974E-6 : f32
    %21 = vector.broadcast %cst_11 : f32 to vector<17x1xf32>
    %22 = arith.addf %18, %21 : vector<17x1xf32>
    %23 = math.rsqrt %22 : vector<17x1xf32>
    %24 = vector.broadcast %23 : vector<17x1xf32> to vector<17x128xf32>
    %25 = arith.mulf %20, %24 : vector<17x128xf32>
    %26 = vector.broadcast %5 : vector<1x128xf32> to vector<17x128xf32>
    %27 = arith.mulf %25, %26 : vector<17x128xf32>
    %28 = vector.broadcast %7 : vector<1x128xf32> to vector<17x128xf32>
    %29 = arith.addf %27, %28 : vector<17x128xf32>
    %30 = arith.truncf %29 : vector<17x128xf32> to vector<17x128xbf16>
    %c0_12 = arith.constant 0 : index
    %c0_13 = arith.constant 0 : index
    %c0_14 = arith.constant 0 : index
    %31 = vector.load %arg11[%c0_12, %c0_13, %c0_14] : memref<1x128x1536xbf16, #tpu.memory_space<vmem>>, vector<1x128x1536xbf16>
    %32 = vector.shape_cast %31 : vector<1x128x1536xbf16> to vector<128x1536xbf16>
    %cst_15 = arith.constant dense<0.000000e+00> : vector<17x1536xf32>
    %33 = tpu.matmul %30, %32, %cst_15 {dimension_numbers = #tpu.dot_dimension_numbers<[1], [0], [0], [1], [0, 0, 1, 1], [], []>} : vector<17x128xbf16>, vector<128x1536xbf16>, vector<17x1536xf32> -> vector<17x1536xf32>
    %c0_16 = arith.constant 0 : index
    %c0_17 = arith.constant 0 : index
    %c0_18 = arith.constant 0 : index
    %34 = vector.load %arg12[%c0_16, %c0_17, %c0_18] : memref<1x1x1536xf32, #tpu.memory_space<vmem>>, vector<1x1x1536xf32>
    %35 = vector.shape_cast %34 : vector<1x1x1536xf32> to vector<1x1536xf32>
    %36 = vector.broadcast %35 : vector<1x1536xf32> to vector<17x1536xf32>
    %37 = arith.addf %33, %36 : vector<17x1536xf32>
    %38 = vector.extract_strided_slice %37 {offsets = [0, 0], sizes = [17, 128], strides = [1, 1]} : vector<17x1536xf32> to vector<17x128xf32>
    %39 = arith.truncf %38 : vector<17x128xf32> to vector<17x128xbf16>
    %40 = vector.extract_strided_slice %37 {offsets = [0, 128], sizes = [17, 128], strides = [1, 1]} : vector<17x1536xf32> to vector<17x128xf32>
    %41 = arith.truncf %40 : vector<17x128xf32> to vector<17x128xbf16>
    %42 = vector.extract_strided_slice %37 {offsets = [0, 256], sizes = [17, 128], strides = [1, 1]} : vector<17x1536xf32> to vector<17x128xf32>
    %43 = arith.truncf %42 : vector<17x128xf32> to vector<17x128xbf16>
    %cst_19 = arith.constant dense<0.000000e+00> : vector<17x17xf32>
    %44 = tpu.matmul %39, %41, %cst_19 {dimension_numbers = #tpu.dot_dimension_numbers<[1], [1], [0], [0], [0, 0, 1, 0], [], []>} : vector<17x128xbf16>, vector<17x128xbf16>, vector<17x17xf32> -> vector<17x17xf32>
    %cst_20 = arith.constant dense<0xFF800000> : vector<17xf32>
    %45 = vector.multi_reduction <maximumf>, %44, %cst_20 [1] : vector<17x17xf32> to vector<17xf32>
    %46 = vector.shape_cast %45 : vector<17xf32> to vector<17x1xf32>
    %47 = vector.broadcast %46 : vector<17x1xf32> to vector<17x17xf32>
    %48 = arith.subf %44, %47 : vector<17x17xf32>
    %49 = math.exp %48 : vector<17x17xf32>
    %cst_21 = arith.constant dense<0.000000e+00> : vector<17xf32>
    %50 = vector.multi_reduction <add>, %49, %cst_21 [1] : vector<17x17xf32> to vector<17xf32>
    %51 = vector.shape_cast %50 : vector<17xf32> to vector<17x1xf32>
    %52 = arith.truncf %49 : vector<17x17xf32> to vector<17x17xbf16>
    %cst_22 = arith.constant dense<0.000000e+00> : vector<17x128xf32>
    %53 = tpu.matmul %52, %43, %cst_22 {dimension_numbers = #tpu.dot_dimension_numbers<[1], [0], [0], [1], [0, 0, 1, 1], [], []>} : vector<17x17xbf16>, vector<17x128xbf16>, vector<17x128xf32> -> vector<17x128xf32>
    %54 = tpu.reciprocal %51 {approx = true} : vector<17x1xf32> -> vector<17x1xf32>
    %55 = vector.broadcast %54 : vector<17x1xf32> to vector<17x128xf32>
    %56 = arith.mulf %53, %55 : vector<17x128xf32>
    %57 = arith.truncf %56 : vector<17x128xf32> to vector<17x128xbf16>
    %58 = vector.extract_strided_slice %37 {offsets = [0, 384], sizes = [17, 128], strides = [1, 1]} : vector<17x1536xf32> to vector<17x128xf32>
    %59 = arith.truncf %58 : vector<17x128xf32> to vector<17x128xbf16>
    %60 = vector.extract_strided_slice %37 {offsets = [0, 512], sizes = [17, 128], strides = [1, 1]} : vector<17x1536xf32> to vector<17x128xf32>
    %61 = arith.truncf %60 : vector<17x128xf32> to vector<17x128xbf16>
    %62 = vector.extract_strided_slice %37 {offsets = [0, 640], sizes = [17, 128], strides = [1, 1]} : vector<17x1536xf32> to vector<17x128xf32>
    %63 = arith.truncf %62 : vector<17x128xf32> to vector<17x128xbf16>
    %cst_23 = arith.constant dense<0.000000e+00> : vector<17x17xf32>
    %64 = tpu.matmul %59, %61, %cst_23 {dimension_numbers = #tpu.dot_dimension_numbers<[1], [1], [0], [0], [0, 0, 1, 0], [], []>} : vector<17x128xbf16>, vector<17x128xbf16>, vector<17x17xf32> -> vector<17x17xf32>
    %cst_24 = arith.constant dense<0xFF800000> : vector<17xf32>
    %65 = vector.multi_reduction <maximumf>, %64, %cst_24 [1] : vector<17x17xf32> to vector<17xf32>
    %66 = vector.shape_cast %65 : vector<17xf32> to vector<17x1xf32>
    %67 = vector.broadcast %66 : vector<17x1xf32> to vector<17x17xf32>
    %68 = arith.subf %64, %67 : vector<17x17xf32>
    %69 = math.exp %68 : vector<17x17xf32>
    %cst_25 = arith.constant dense<0.000000e+00> : vector<17xf32>
    %70 = vector.multi_reduction <add>, %69, %cst_25 [1] : vector<17x17xf32> to vector<17xf32>
    %71 = vector.shape_cast %70 : vector<17xf32> to vector<17x1xf32>
    %72 = arith.truncf %69 : vector<17x17xf32> to vector<17x17xbf16>
    %cst_26 = arith.constant dense<0.000000e+00> : vector<17x128xf32>
    %73 = tpu.matmul %72, %63, %cst_26 {dimension_numbers = #tpu.dot_dimension_numbers<[1], [0], [0], [1], [0, 0, 1, 1], [], []>} : vector<17x17xbf16>, vector<17x128xbf16>, vector<17x128xf32> -> vector<17x128xf32>
    %74 = tpu.reciprocal %71 {approx = true} : vector<17x1xf32> -> vector<17x1xf32>
    %75 = vector.broadcast %74 : vector<17x1xf32> to vector<17x128xf32>
    %76 = arith.mulf %73, %75 : vector<17x128xf32>
    %77 = arith.truncf %76 : vector<17x128xf32> to vector<17x128xbf16>
    %78 = vector.extract_strided_slice %37 {offsets = [0, 768], sizes = [17, 128], strides = [1, 1]} : vector<17x1536xf32> to vector<17x128xf32>
    %79 = arith.truncf %78 : vector<17x128xf32> to vector<17x128xbf16>
    %80 = vector.extract_strided_slice %37 {offsets = [0, 896], sizes = [17, 128], strides = [1, 1]} : vector<17x1536xf32> to vector<17x128xf32>
    %81 = arith.truncf %80 : vector<17x128xf32> to vector<17x128xbf16>
    %82 = vector.extract_strided_slice %37 {offsets = [0, 1024], sizes = [17, 128], strides = [1, 1]} : vector<17x1536xf32> to vector<17x128xf32>
    %83 = arith.truncf %82 : vector<17x128xf32> to vector<17x128xbf16>
    %cst_27 = arith.constant dense<0.000000e+00> : vector<17x17xf32>
    %84 = tpu.matmul %79, %81, %cst_27 {dimension_numbers = #tpu.dot_dimension_numbers<[1], [1], [0], [0], [0, 0, 1, 0], [], []>} : vector<17x128xbf16>, vector<17x128xbf16>, vector<17x17xf32> -> vector<17x17xf32>
    %cst_28 = arith.constant dense<0xFF800000> : vector<17xf32>
    %85 = vector.multi_reduction <maximumf>, %84, %cst_28 [1] : vector<17x17xf32> to vector<17xf32>
    %86 = vector.shape_cast %85 : vector<17xf32> to vector<17x1xf32>
    %87 = vector.broadcast %86 : vector<17x1xf32> to vector<17x17xf32>
    %88 = arith.subf %84, %87 : vector<17x17xf32>
    %89 = math.exp %88 : vector<17x17xf32>
    %cst_29 = arith.constant dense<0.000000e+00> : vector<17xf32>
    %90 = vector.multi_reduction <add>, %89, %cst_29 [1] : vector<17x17xf32> to vector<17xf32>
    %91 = vector.shape_cast %90 : vector<17xf32> to vector<17x1xf32>
    %92 = arith.truncf %89 : vector<17x17xf32> to vector<17x17xbf16>
    %cst_30 = arith.constant dense<0.000000e+00> : vector<17x128xf32>
    %93 = tpu.matmul %92, %83, %cst_30 {dimension_numbers = #tpu.dot_dimension_numbers<[1], [0], [0], [1], [0, 0, 1, 1], [], []>} : vector<17x17xbf16>, vector<17x128xbf16>, vector<17x128xf32> -> vector<17x128xf32>
    %94 = tpu.reciprocal %91 {approx = true} : vector<17x1xf32> -> vector<17x1xf32>
    %95 = vector.broadcast %94 : vector<17x1xf32> to vector<17x128xf32>
    %96 = arith.mulf %93, %95 : vector<17x128xf32>
    %97 = arith.truncf %96 : vector<17x128xf32> to vector<17x128xbf16>
    %98 = vector.extract_strided_slice %37 {offsets = [0, 1152], sizes = [17, 128], strides = [1, 1]} : vector<17x1536xf32> to vector<17x128xf32>
    %99 = arith.truncf %98 : vector<17x128xf32> to vector<17x128xbf16>
    %100 = vector.extract_strided_slice %37 {offsets = [0, 1280], sizes = [17, 128], strides = [1, 1]} : vector<17x1536xf32> to vector<17x128xf32>
    %101 = arith.truncf %100 : vector<17x128xf32> to vector<17x128xbf16>
    %102 = vector.extract_strided_slice %37 {offsets = [0, 1408], sizes = [17, 128], strides = [1, 1]} : vector<17x1536xf32> to vector<17x128xf32>
    %103 = arith.truncf %102 : vector<17x128xf32> to vector<17x128xbf16>
    %cst_31 = arith.constant dense<0.000000e+00> : vector<17x17xf32>
    %104 = tpu.matmul %99, %101, %cst_31 {dimension_numbers = #tpu.dot_dimension_numbers<[1], [1], [0], [0], [0, 0, 1, 0], [], []>} : vector<17x128xbf16>, vector<17x128xbf16>, vector<17x17xf32> -> vector<17x17xf32>
    %cst_32 = arith.constant dense<0xFF800000> : vector<17xf32>
    %105 = vector.multi_reduction <maximumf>, %104, %cst_32 [1] : vector<17x17xf32> to vector<17xf32>
    %106 = vector.shape_cast %105 : vector<17xf32> to vector<17x1xf32>
    %107 = vector.broadcast %106 : vector<17x1xf32> to vector<17x17xf32>
    %108 = arith.subf %104, %107 : vector<17x17xf32>
    %109 = math.exp %108 : vector<17x17xf32>
    %cst_33 = arith.constant dense<0.000000e+00> : vector<17xf32>
    %110 = vector.multi_reduction <add>, %109, %cst_33 [1] : vector<17x17xf32> to vector<17xf32>
    %111 = vector.shape_cast %110 : vector<17xf32> to vector<17x1xf32>
    %112 = arith.truncf %109 : vector<17x17xf32> to vector<17x17xbf16>
    %cst_34 = arith.constant dense<0.000000e+00> : vector<17x128xf32>
    %113 = tpu.matmul %112, %103, %cst_34 {dimension_numbers = #tpu.dot_dimension_numbers<[1], [0], [0], [1], [0, 0, 1, 1], [], []>} : vector<17x17xbf16>, vector<17x128xbf16>, vector<17x128xf32> -> vector<17x128xf32>
    %114 = tpu.reciprocal %111 {approx = true} : vector<17x1xf32> -> vector<17x1xf32>
    %115 = vector.broadcast %114 : vector<17x1xf32> to vector<17x128xf32>
    %116 = arith.mulf %113, %115 : vector<17x128xf32>
    %117 = arith.truncf %116 : vector<17x128xf32> to vector<17x128xbf16>
    %118 = tpu.concatenate %57, %77, %97, %117 in 1 : vector<17x128xbf16>, vector<17x128xbf16>, vector<17x128xbf16>, vector<17x128xbf16> -> vector<17x512xbf16>
    %c0_35 = arith.constant 0 : index
    %c0_36 = arith.constant 0 : index
    %c0_37 = arith.constant 0 : index
    %119 = vector.load %arg13[%c0_35, %c0_36, %c0_37] : memref<1x512x128xbf16, #tpu.memory_space<vmem>>, vector<1x512x128xbf16>
    %120 = vector.shape_cast %119 : vector<1x512x128xbf16> to vector<512x128xbf16>
    %cst_38 = arith.constant dense<0.000000e+00> : vector<17x128xf32>
    %121 = tpu.matmul %118, %120, %cst_38 {dimension_numbers = #tpu.dot_dimension_numbers<[1], [0], [0], [1], [0, 0, 1, 1], [], []>} : vector<17x512xbf16>, vector<512x128xbf16>, vector<17x128xf32> -> vector<17x128xf32>
    %c0_39 = arith.constant 0 : index
    %c0_40 = arith.constant 0 : index
    %c0_41 = arith.constant 0 : index
    %122 = vector.load %arg14[%c0_39, %c0_40, %c0_41] : memref<1x1x128xf32, #tpu.memory_space<vmem>>, vector<1x1x128xf32>
    %123 = vector.shape_cast %122 : vector<1x1x128xf32> to vector<1x128xf32>
    %124 = vector.broadcast %123 : vector<1x128xf32> to vector<17x128xf32>
    %125 = arith.addf %121, %124 : vector<17x128xf32>
    %126 = arith.addf %3, %125 : vector<17x128xf32>
    %c0_42 = arith.constant 0 : index
    %c0_43 = arith.constant 0 : index
    %c0_44 = arith.constant 0 : index
    %127 = vector.load %arg15[%c0_42, %c0_43, %c0_44] : memref<1x1x128xf32, #tpu.memory_space<vmem>>, vector<1x1x128xf32>
    %128 = vector.shape_cast %127 : vector<1x1x128xf32> to vector<1x128xf32>
    %c0_45 = arith.constant 0 : index
    %c0_46 = arith.constant 0 : index
    %c0_47 = arith.constant 0 : index
    %129 = vector.load %arg16[%c0_45, %c0_46, %c0_47] : memref<1x1x128xf32, #tpu.memory_space<vmem>>, vector<1x1x128xf32>
    %130 = vector.shape_cast %129 : vector<1x1x128xf32> to vector<1x128xf32>
    %cst_48 = arith.constant dense<0.000000e+00> : vector<17xf32>
    %131 = vector.multi_reduction <add>, %126, %cst_48 [1] : vector<17x128xf32> to vector<17xf32>
    %132 = vector.shape_cast %131 : vector<17xf32> to vector<17x1xf32>
    %cst_49 = arith.constant 1.280000e+02 : f32
    %133 = vector.broadcast %cst_49 : f32 to vector<17x1xf32>
    %134 = arith.divf %132, %133 : vector<17x1xf32>
    %135 = vector.broadcast %134 : vector<17x1xf32> to vector<17x128xf32>
    %136 = arith.subf %126, %135 : vector<17x128xf32>
    %137 = arith.mulf %136, %136 : vector<17x128xf32>
    %cst_50 = arith.constant dense<0.000000e+00> : vector<17xf32>
    %138 = vector.multi_reduction <add>, %137, %cst_50 [1] : vector<17x128xf32> to vector<17xf32>
    %139 = vector.shape_cast %138 : vector<17xf32> to vector<17x1xf32>
    %cst_51 = arith.constant 1.280000e+02 : f32
    %140 = vector.broadcast %cst_51 : f32 to vector<17x1xf32>
    %141 = arith.divf %139, %140 : vector<17x1xf32>
    %142 = vector.broadcast %134 : vector<17x1xf32> to vector<17x128xf32>
    %143 = arith.subf %126, %142 : vector<17x128xf32>
    %cst_52 = arith.constant 9.99999974E-6 : f32
    %144 = vector.broadcast %cst_52 : f32 to vector<17x1xf32>
    %145 = arith.addf %141, %144 : vector<17x1xf32>
    %146 = math.rsqrt %145 : vector<17x1xf32>
    %147 = vector.broadcast %146 : vector<17x1xf32> to vector<17x128xf32>
    %148 = arith.mulf %143, %147 : vector<17x128xf32>
    %149 = vector.broadcast %128 : vector<1x128xf32> to vector<17x128xf32>
    %150 = arith.mulf %148, %149 : vector<17x128xf32>
    %151 = vector.broadcast %130 : vector<1x128xf32> to vector<17x128xf32>
    %152 = arith.addf %150, %151 : vector<17x128xf32>
    %153 = arith.truncf %152 : vector<17x128xf32> to vector<17x128xbf16>
    %c0_53 = arith.constant 0 : index
    %c0_54 = arith.constant 0 : index
    %c0_55 = arith.constant 0 : index
    %154 = vector.load %arg17[%c0_53, %c0_54, %c0_55] : memref<1x128x512xbf16, #tpu.memory_space<vmem>>, vector<1x128x512xbf16>
    %155 = vector.shape_cast %154 : vector<1x128x512xbf16> to vector<128x512xbf16>
    %cst_56 = arith.constant dense<0.000000e+00> : vector<17x512xf32>
    %156 = tpu.matmul %153, %155, %cst_56 {dimension_numbers = #tpu.dot_dimension_numbers<[1], [0], [0], [1], [0, 0, 1, 1], [], []>} : vector<17x128xbf16>, vector<128x512xbf16>, vector<17x512xf32> -> vector<17x512xf32>
    %c0_57 = arith.constant 0 : index
    %c0_58 = arith.constant 0 : index
    %c0_59 = arith.constant 0 : index
    %157 = vector.load %arg18[%c0_57, %c0_58, %c0_59] : memref<1x1x512xf32, #tpu.memory_space<vmem>>, vector<1x1x512xf32>
    %158 = vector.shape_cast %157 : vector<1x1x512xf32> to vector<1x512xf32>
    %159 = vector.broadcast %158 : vector<1x512xf32> to vector<17x512xf32>
    %160 = arith.addf %156, %159 : vector<17x512xf32>
    %cst_60 = arith.constant 1.702000e+00 : f32
    %161 = vector.broadcast %cst_60 : f32 to vector<17x512xf32>
    %162 = arith.mulf %161, %160 : vector<17x512xf32>
    %163 = arith.negf %162 : vector<17x512xf32>
    %164 = math.exp %163 : vector<17x512xf32>
    %cst_61 = arith.constant 1.000000e+00 : f32
    %165 = vector.broadcast %cst_61 : f32 to vector<17x512xf32>
    %166 = arith.addf %165, %164 : vector<17x512xf32>
    %167 = arith.divf %165, %166 : vector<17x512xf32>
    %168 = arith.mulf %160, %167 : vector<17x512xf32>
    %169 = arith.truncf %168 : vector<17x512xf32> to vector<17x512xbf16>
    %c0_62 = arith.constant 0 : index
    %c0_63 = arith.constant 0 : index
    %c0_64 = arith.constant 0 : index
    %170 = vector.load %arg19[%c0_62, %c0_63, %c0_64] : memref<1x512x128xbf16, #tpu.memory_space<vmem>>, vector<1x512x128xbf16>
    %171 = vector.shape_cast %170 : vector<1x512x128xbf16> to vector<512x128xbf16>
    %cst_65 = arith.constant dense<0.000000e+00> : vector<17x128xf32>
    %172 = tpu.matmul %169, %171, %cst_65 {dimension_numbers = #tpu.dot_dimension_numbers<[1], [0], [0], [1], [0, 0, 1, 1], [], []>} : vector<17x512xbf16>, vector<512x128xbf16>, vector<17x128xf32> -> vector<17x128xf32>
    %c0_66 = arith.constant 0 : index
    %c0_67 = arith.constant 0 : index
    %c0_68 = arith.constant 0 : index
    %173 = vector.load %arg20[%c0_66, %c0_67, %c0_68] : memref<1x1x128xf32, #tpu.memory_space<vmem>>, vector<1x1x128xf32>
    %174 = vector.shape_cast %173 : vector<1x1x128xf32> to vector<1x128xf32>
    %175 = vector.broadcast %174 : vector<1x128xf32> to vector<17x128xf32>
    %176 = arith.addf %172, %175 : vector<17x128xf32>
    %177 = arith.addf %126, %176 : vector<17x128xf32>
    %c0_69 = arith.constant 0 : index
    %c0_70 = arith.constant 0 : index
    %178 = vector.load %arg25[%c0_69, %c0_70] : memref<17x128xf32, #tpu.memory_space<vmem>>, vector<17x128xf32>
    tpu.vector_store %arg25[%c0_69, %c0_70], %177 {strides = array<i32>} : memref<17x128xf32, #tpu.memory_space<vmem>>, vector<17x128xf32>,
    %c1_i32 = arith.constant 1 : i32
    %179 = arith.cmpi eq, %arg1, %c1_i32 : i32
    %180 = arith.extui %179 : i1 to i32
    %c0_i32_71 = arith.constant 0 : i32
    %181 = arith.cmpi ne, %180, %c0_i32_71 : i32
    scf.if %181 {
      %182 = vector.extract_strided_slice %177 {offsets = [0, 0], sizes = [1, 128], strides = [1, 1]} : vector<17x128xf32> to vector<1x128xf32>
      %c0_72 = arith.constant 0 : index
      %c0_73 = arith.constant 0 : index
      %183 = vector.load %arg21[%c0_72, %c0_73] : memref<1x128xf32, #tpu.memory_space<vmem>>, vector<1x128xf32>
      %c0_74 = arith.constant 0 : index
      %c0_75 = arith.constant 0 : index
      %184 = vector.load %arg22[%c0_74, %c0_75] : memref<1x128xf32, #tpu.memory_space<vmem>>, vector<1x128xf32>
      %cst_76 = arith.constant dense<0.000000e+00> : vector<1xf32>
      %185 = vector.multi_reduction <add>, %182, %cst_76 [1] : vector<1x128xf32> to vector<1xf32>
      %186 = vector.shape_cast %185 : vector<1xf32> to vector<1x1xf32>
      %cst_77 = arith.constant 1.280000e+02 : f32
      %187 = vector.broadcast %cst_77 : f32 to vector<1x1xf32>
      %188 = arith.divf %186, %187 : vector<1x1xf32>
      %189 = vector.broadcast %188 : vector<1x1xf32> to vector<1x128xf32>
      %190 = arith.subf %182, %189 : vector<1x128xf32>
      %191 = arith.mulf %190, %190 : vector<1x128xf32>
      %cst_78 = arith.constant dense<0.000000e+00> : vector<1xf32>
      %192 = vector.multi_reduction <add>, %191, %cst_78 [1] : vector<1x128xf32> to vector<1xf32>
      %193 = vector.shape_cast %192 : vector<1xf32> to vector<1x1xf32>
      %cst_79 = arith.constant 1.280000e+02 : f32
      %194 = vector.broadcast %cst_79 : f32 to vector<1x1xf32>
      %195 = arith.divf %193, %194 : vector<1x1xf32>
      %196 = vector.broadcast %188 : vector<1x1xf32> to vector<1x128xf32>
      %197 = arith.subf %182, %196 : vector<1x128xf32>
      %cst_80 = arith.constant 9.99999974E-6 : f32
      %198 = vector.broadcast %cst_80 : f32 to vector<1x1xf32>
      %199 = arith.addf %195, %198 : vector<1x1xf32>
      %200 = math.rsqrt %199 : vector<1x1xf32>
      %201 = vector.broadcast %200 : vector<1x1xf32> to vector<1x128xf32>
      %202 = arith.mulf %197, %201 : vector<1x128xf32>
      %203 = arith.mulf %202, %183 : vector<1x128xf32>
      %204 = arith.addf %203, %184 : vector<1x128xf32>
      %205 = arith.truncf %204 : vector<1x128xf32> to vector<1x128xbf16>
      %c0_81 = arith.constant 0 : index
      %c0_82 = arith.constant 0 : index
      %206 = vector.load %arg23[%c0_81, %c0_82] : memref<128x64xbf16, #tpu.memory_space<vmem>>, vector<128x64xbf16>
      %cst_83 = arith.constant dense<0.000000e+00> : vector<1x64xf32>
      %207 = tpu.matmul %205, %206, %cst_83 {dimension_numbers = #tpu.dot_dimension_numbers<[1], [0], [0], [1], [0, 0, 1, 1], [], []>} : vector<1x128xbf16>, vector<128x64xbf16>, vector<1x64xf32> -> vector<1x64xf32>
      %c0_84 = arith.constant 0 : index
      %c0_85 = arith.constant 0 : index
      %c0_86 = arith.constant 0 : index
      %208 = vector.load %arg24[%c0_84, %c0_85, %c0_86] : memref<1x1x64xf32, #tpu.memory_space<vmem>>, vector<1x1x64xf32>
      %209 = vector.shape_cast %208 : vector<1x1x64xf32> to vector<1x64xf32>
      %210 = vector.shape_cast %207 : vector<1x64xf32> to vector<1x1x64xf32>
      tpu.vector_store %arg24[%c0_84, %c0_85, %c0_86], %210 {strides = array<i32>} : memref<1x1x64xf32, #tpu.memory_space<vmem>>, vector<1x1x64xf32>,
    } else {
    }
    return
  }
  func.func @transform_0(%arg0: i32, %arg1: i32) -> (i32, i32, i32) {
    %c0_i32 = arith.constant 0 : i32
    %c0_i32_0 = arith.constant 0 : i32
    %c0_i32_1 = arith.constant 0 : i32
    return %arg0, %c0_i32, %c0_i32_0 : i32, i32, i32
  }
  func.func @transform_1(%arg0: i32, %arg1: i32) -> (i32, i32) {
    %c0_i32 = arith.constant 0 : i32
    %c0_i32_0 = arith.constant 0 : i32
    %c0_i32_1 = arith.constant 0 : i32
    return %c0_i32, %c0_i32_0 : i32, i32
  }
  func.func @transform_2(%arg0: i32, %arg1: i32) -> (i32, i32) {
    %c0_i32 = arith.constant 0 : i32
    %c0_i32_0 = arith.constant 0 : i32
    %c0_i32_1 = arith.constant 0 : i32
    return %c0_i32, %c0_i32_0 : i32, i32
  }
  func.func @transform_3(%arg0: i32, %arg1: i32) -> (i32, i32) {
    %c0_i32 = arith.constant 0 : i32
    %c0_i32_0 = arith.constant 0 : i32
    %c0_i32_1 = arith.constant 0 : i32
    return %c0_i32, %c0_i32_0 : i32, i32
  }
  func.func @transform_4(%arg0: i32, %arg1: i32) -> (i32, i32) {
    %c0_i32 = arith.constant 0 : i32
    %c0_i32_0 = arith.constant 0 : i32
    %c0_i32_1 = arith.constant 0 : i32
    return %c0_i32, %c0_i32_0 : i32, i32
  }
  func.func @transform_5(%arg0: i32, %arg1: i32) -> (i32, i32) {
    %c0_i32 = arith.constant 0 : i32
    %c0_i32_0 = arith.constant 0 : i32
    %c0_i32_1 = arith.constant 0 : i32
    return %c0_i32, %c0_i32_0 : i32, i32
  }
  func.func @transform_6(%arg0: i32, %arg1: i32) -> (i32, i32) {
    %c0_i32 = arith.constant 0 : i32
    %c0_i32_0 = arith.constant 0 : i32
    %c0_i32_1 = arith.constant 0 : i32
    return %c0_i32, %c0_i32_0 : i32, i32
  }
  func.func @transform_7(%arg0: i32, %arg1: i32) -> (i32, i32, i32) {
    %c0_i32 = arith.constant 0 : i32
    %c0_i32_0 = arith.constant 0 : i32
    %c0_i32_1 = arith.constant 0 : i32
    return %arg1, %c0_i32, %c0_i32_0 : i32, i32, i32
  }
  func.func @transform_8(%arg0: i32, %arg1: i32) -> (i32, i32, i32) {
    %c0_i32 = arith.constant 0 : i32
    %c0_i32_0 = arith.constant 0 : i32
    %c0_i32_1 = arith.constant 0 : i32
    return %arg1, %c0_i32, %c0_i32_0 : i32, i32, i32
  }
  func.func @transform_9(%arg0: i32, %arg1: i32) -> (i32, i32, i32) {
    %c0_i32 = arith.constant 0 : i32
    %c0_i32_0 = arith.constant 0 : i32
    %c0_i32_1 = arith.constant 0 : i32
    return %arg1, %c0_i32, %c0_i32_0 : i32, i32, i32
  }
  func.func @transform_10(%arg0: i32, %arg1: i32) -> (i32, i32, i32) {
    %c0_i32 = arith.constant 0 : i32
    %c0_i32_0 = arith.constant 0 : i32
    %c0_i32_1 = arith.constant 0 : i32
    return %arg1, %c0_i32, %c0_i32_0 : i32, i32, i32
  }
  func.func @transform_11(%arg0: i32, %arg1: i32) -> (i32, i32, i32) {
    %c0_i32 = arith.constant 0 : i32
    %c0_i32_0 = arith.constant 0 : i32
    %c0_i32_1 = arith.constant 0 : i32
    return %arg1, %c0_i32, %c0_i32_0 : i32, i32, i32
  }
  func.func @transform_12(%arg0: i32, %arg1: i32) -> (i32, i32, i32) {
    %c0_i32 = arith.constant 0 : i32
    %c0_i32_0 = arith.constant 0 : i32
    %c0_i32_1 = arith.constant 0 : i32
    return %arg1, %c0_i32, %c0_i32_0 : i32, i32, i32
  }
  func.func @transform_13(%arg0: i32, %arg1: i32) -> (i32, i32, i32) {
    %c0_i32 = arith.constant 0 : i32
    %c0_i32_0 = arith.constant 0 : i32
    %c0_i32_1 = arith.constant 0 : i32
    return %arg1, %c0_i32, %c0_i32_0 : i32, i32, i32
  }
  func.func @transform_14(%arg0: i32, %arg1: i32) -> (i32, i32, i32) {
    %c0_i32 = arith.constant 0 : i32
    %c0_i32_0 = arith.constant 0 : i32
    %c0_i32_1 = arith.constant 0 : i32
    return %arg1, %c0_i32, %c0_i32_0 : i32, i32, i32
  }
  func.func @transform_15(%arg0: i32, %arg1: i32) -> (i32, i32, i32) {
    %c0_i32 = arith.constant 0 : i32
    %c0_i32_0 = arith.constant 0 : i32
    %c0_i32_1 = arith.constant 0 : i32
    return %arg1, %c0_i32, %c0_i32_0 : i32, i32, i32
  }
  func.func @transform_16(%arg0: i32, %arg1: i32) -> (i32, i32, i32) {
    %c0_i32 = arith.constant 0 : i32
    %c0_i32_0 = arith.constant 0 : i32
    %c0_i32_1 = arith.constant 0 : i32
    return %arg1, %c0_i32, %c0_i32_0 : i32, i32, i32
  }
  func.func @transform_17(%arg0: i32, %arg1: i32) -> (i32, i32, i32) {
    %c0_i32 = arith.constant 0 : i32
    %c0_i32_0 = arith.constant 0 : i32
    %c0_i32_1 = arith.constant 0 : i32
    return %arg1, %c0_i32, %c0_i32_0 : i32, i32, i32
  }
  func.func @transform_18(%arg0: i32, %arg1: i32) -> (i32, i32, i32) {
    %c0_i32 = arith.constant 0 : i32
    %c0_i32_0 = arith.constant 0 : i32
    %c0_i32_1 = arith.constant 0 : i32
    return %arg1, %c0_i32, %c0_i32_0 : i32, i32, i32
  }
  func.func @transform_19(%arg0: i32, %arg1: i32) -> (i32, i32) {
    %c0_i32 = arith.constant 0 : i32
    %c0_i32_0 = arith.constant 0 : i32
    %c0_i32_1 = arith.constant 0 : i32
    return %c0_i32, %c0_i32_0 : i32, i32
  }
  func.func @transform_20(%arg0: i32, %arg1: i32) -> (i32, i32) {
    %c0_i32 = arith.constant 0 : i32
    %c0_i32_0 = arith.constant 0 : i32
    %c0_i32_1 = arith.constant 0 : i32
    return %c0_i32, %c0_i32_0 : i32, i32
  }
  func.func @transform_21(%arg0: i32, %arg1: i32) -> (i32, i32) {
    %c0_i32 = arith.constant 0 : i32
    %c0_i32_0 = arith.constant 0 : i32
    %c0_i32_1 = arith.constant 0 : i32
    return %c0_i32, %c0_i32_0 : i32, i32
  }
  func.func @transform_22(%arg0: i32, %arg1: i32) -> (i32, i32, i32) {
    %c0_i32 = arith.constant 0 : i32
    %c0_i32_0 = arith.constant 0 : i32
    %c0_i32_1 = arith.constant 0 : i32
    return %arg0, %c0_i32, %c0_i32_0 : i32, i32, i32
  }
}

</mosaic_0001>

<llo_original>
// kernel: visual_model_forward.1
$region0: #{visual_model_forward.1}
  #allocation0 [shape = 'u32[]', space=smem, size = 0x4, offset = 0x4, fixed_abs, tag = 'smem constant byte address 0x4 - core index']
  #allocation1 [shape = 'u32[144,128]{1,0:T(1,128)}', space=vmem, size = 0x12000, scoped, tag = 'internal scratch']
  #allocation2 [shape = 'f32[17,128]{1,0:T(8,128)}', space=vmem, size = 0x3000, scoped, tag = 'scratch operand']
  %s0 = inlined_call_operand.vmem [shape: bf16[2,16,192], index: 0, kind: input, shape index: {}]
  %s1 = inlined_call_operand.hbm [shape: bf16[192,128], index: 1, kind: input, shape index: {}]
  %s2 = inlined_call_operand.vmem [shape: f32[1,128], index: 2, kind: input, shape index: {}]
  %s3 = inlined_call_operand.vmem [shape: f32[1,128], index: 3, kind: input, shape index: {}]
  %s4 = inlined_call_operand.hbm [shape: f32[17,128], index: 4, kind: input, shape index: {}]
  %s5 = inlined_call_operand.hbm [shape: f32[1,128], index: 5, kind: input, shape index: {}]
  %s6 = inlined_call_operand.hbm [shape: f32[1,128], index: 6, kind: input, shape index: {}]
  %s7 = inlined_call_operand.vmem [shape: f32[2,1,128], index: 7, kind: input, shape index: {}]
  %s8 = inlined_call_operand.vmem [shape: f32[2,1,128], index: 8, kind: input, shape index: {}]
  %s9 = inlined_call_operand.vmem [shape: bf16[2,128,1536], index: 9, kind: input, shape index: {}]
  %s10 = inlined_call_operand.hbm [shape: f32[2,1,1536], index: 10, kind: input, shape index: {}]
  %s11 = inlined_call_operand.hbm [shape: bf16[2,512,128], index: 11, kind: input, shape index: {}]
  %s12 = inlined_call_operand.hbm [shape: f32[2,1,128], index: 12, kind: input, shape index: {}]
  %s13 = inlined_call_operand.hbm [shape: f32[2,1,128], index: 13, kind: input, shape index: {}]
  %s14 = inlined_call_operand.hbm [shape: f32[2,1,128], index: 14, kind: input, shape index: {}]
  %s15 = inlined_call_operand.vmem [shape: bf16[2,128,512], index: 15, kind: input, shape index: {}]
  %s16 = inlined_call_operand.vmem [shape: f32[2,1,512], index: 16, kind: input, shape index: {}]
  %s17 = inlined_call_operand.hbm [shape: bf16[2,512,128], index: 17, kind: input, shape index: {}]
  %s18 = inlined_call_operand.hbm [shape: f32[2,1,128], index: 18, kind: input, shape index: {}]
  %s19 = inlined_call_operand.hbm [shape: f32[1,128], index: 19, kind: input, shape index: {}]
  %s20 = inlined_call_operand.hbm [shape: f32[1,128], index: 20, kind: input, shape index: {}]
  %s21 = inlined_call_operand.vmem [shape: bf16[128,64], index: 21, kind: input, shape index: {}]
  %s22 = inlined_call_operand.hbm [shape: f32[2,1,64], index: 22, kind: output, shape index: {}]
  %s23 = sld [smem:[#allocation0]]
  $region181: #{visual_model_forward.1} parent=0
    _
  %s25 = ssub.s32 1, %s23
  %s26 = scalar_select 0, %s25, %s23
  $region1: #{visual_model_forward.1} parent=0
    #allocation3 [shape = 'u8[49152]{0}', space=vmem, size = 0xc000, scoped, tag = 'input window, operand 1, single buffered']
    #allocation4 [shape = 's32[2]{0}', space=sflag, size = 0x8, scoped, tag = 'scoped memory for visual_model_forward.1']
    #allocation5 [shape = 's32[2]{0}', space=sflag, size = 0x8, scoped, tag = 'scoped memory for visual_model_forward.1']
    #allocation6 [shape = 'u8[12288]{0}', space=vmem, size = 0x3000, scoped, tag = 'input window, operand 4, single buffered']
    #allocation7 [shape = 's32[1]{0}', space=sflag, size = 0x4, scoped, tag = 'scoped memory for visual_model_forward.1']
    #allocation8 [shape = 'u8[512]{0}', space=vmem, size = 0x400, scoped, tag = 'input window, operand 5, single buffered']
    #allocation9 [shape = 'u8[512]{0}', space=vmem, size = 0x400, scoped, tag = 'input window, operand 6, single buffered']
    #allocation10 [shape = 's32[1]{0}', space=sflag, size = 0x4, scoped, tag = 'scoped memory for visual_model_forward.1']
    #allocation11 [shape = 'u8[12288]{0}', space=vmem, size = 0x3000, scoped, tag = 'input window, operand 10']
    #allocation12 [shape = 'u8[262144]{0}', space=vmem, size = 0x40000, scoped, tag = 'input window, operand 11']
    #allocation13 [shape = 'u8[1024]{0}', space=vmem, size = 0x400, scoped, tag = 'input window, operand 12']
    #allocation14 [shape = 'u8[1024]{0}', space=vmem, size = 0x400, scoped, tag = 'input window, operand 13']
    #allocation15 [shape = 'u8[1024]{0}', space=vmem, size = 0x400, scoped, tag = 'input window, operand 14']
    #allocation16 [shape = 'u8[262144]{0}', space=vmem, size = 0x40000, scoped, tag = 'input window, operand 17']
    #allocation17 [shape = 'u8[1024]{0}', space=vmem, size = 0x400, scoped, tag = 'input window, operand 18']
    #allocation18 [shape = 'u8[512]{0}', space=vmem, size = 0x400, scoped, tag = 'input window, operand 19, single buffered']
    #allocation19 [shape = 'u8[512]{0}', space=vmem, size = 0x400, scoped, tag = 'input window, operand 20, single buffered']
    #allocation20 [shape = 'u8[1024]{0}', space=vmem, size = 0x400, scoped, tag = 'output window, operand 0']
    %27 = vsyncpa [#allocation4], 0
    %28 = vsyncpa [#allocation7], 0
    %29 = vsyncpa [#allocation10], 0
    %30 = vsyncpa [#allocation5], 0
    %s31 = scalar_lea.sflag [#allocation5], 1
    %32 = vsyncpa %s31, 0
    loop: start=0, step=1, limit=6
    $region2: #{visual_model_forward.1} parent=1 // loop_pre_header
      _
    $region3: #{visual_model_forward.1} parent=1 // loop_header
      %s34 = sphi 0, %s38
      %p35 = scmp.ge.s32.totalorder %s34, 6
      %s41 = sphi 0, %s53
      %s42 = sphi 0, %s49
      %s43 = sphi 0, %s41
      %s44 = sphi 0, %s42
      %s45 = sphi 0, %s43
      %s46 = sphi 0, %s44
      %s56 = sphi 0, %s58
      %s59 = sphi 0, %s56
      %s60 = sphi 0, %s59
      %s76 = sphi 0, %s60
      %s80 = sphi 0, %s80
      %s82 = sphi 0, %s80
      %s83 = sphi 0, %s82
      %s97 = sphi 0, %s83
      %s101 = sphi 0, %s101
      %s103 = sphi 0, %s101
      %s104 = sphi 0, %s103
      %s118 = sphi 0, %s104
      %s122 = sphi 0, %s122
      %s124 = sphi 0, %s122
      %s125 = sphi 0, %s124
      %s139 = sphi 0, %s125
      %s143 = sphi 0, %s143
      %s145 = sphi 0, %s143
      %s146 = sphi 0, %s145
      %s160 = sphi 0, %s146
      %s164 = sphi 0, %s164
      %s166 = sphi 0, %s164
      %s167 = sphi 0, %s166
      %s181 = sphi 0, %s167
      %s185 = sphi 0, %s185
      %s187 = sphi 0, %s185
      %s188 = sphi 0, %s187
      %s202 = sphi 0, %s188
      %s208 = sphi 0, %s210
      %s211 = sphi 0, %s208
      %s212 = sphi 0, %s211
      %s228 = sphi 0, %s212
      %s234 = sphi 0, %s236
      %s237 = sphi 0, %s234
      %s238 = sphi 0, %s237
      %s254 = sphi 0, %s238
      %s260 = sphi 0, %s262
      %s263 = sphi 0, %s260
      %s264 = sphi 0, %s263
      %s280 = sphi 0, %s264
      %s286 = sphi 0, %s288
      %s289 = sphi 0, %s286
      %s290 = sphi 0, %s289
      %s306 = sphi 0, %s290
      %s312 = sphi 0, %s314
      %s315 = sphi 0, %s312
      %s316 = sphi 0, %s315
      %s332 = sphi 0, %s316
      %s338 = sphi 0, %s340
      %s341 = sphi 0, %s338
      %s342 = sphi 0, %s341
      %s358 = sphi 0, %s342
      %s364 = sphi 0, %s366
      %s367 = sphi 0, %s364
      %s368 = sphi 0, %s367
      %s384 = sphi 0, %s368
      %s390 = sphi 0, %s392
      %s393 = sphi 0, %s390
      %s394 = sphi 0, %s393
      %s410 = sphi 0, %s394
      %s416 = sphi 0, %s418
      %s419 = sphi 0, %s416
      %s420 = sphi 0, %s419
      %s436 = sphi 0, %s420
      %s442 = sphi 0, %s444
      %s445 = sphi 0, %s442
      %s446 = sphi 0, %s445
      %s462 = sphi 0, %s446
      %s468 = sphi 0, %s470
      %s471 = sphi 0, %s468
      %s472 = sphi 0, %s471
      %s488 = sphi 0, %s472
      %s494 = sphi 0, %s496
      %s497 = sphi 0, %s494
      %s498 = sphi 0, %s497
      %s514 = sphi 0, %s498
      %s518 = sphi 0, %s518
      %s520 = sphi 0, %s518
      %s521 = sphi 0, %s520
      %s535 = sphi 0, %s521
      %s539 = sphi 0, %s539
      %s541 = sphi 0, %s539
      %s542 = sphi 0, %s541
      %s556 = sphi 0, %s542
      %s560 = sphi 0, %s560
      %s562 = sphi 0, %s560
      %s563 = sphi 0, %s562
      %s577 = sphi 0, %s563
      %s583 = sphi 0, %s585
      %s586 = sphi 0, %s583
      %s587 = sphi 0, %s586
      %s603 = sphi 0, %s587
    $region4: #{visual_model_forward.1} parent=1 // loop_header_branch
      %37 = sbr.rel (%p35) target = $region8
    $region5: #{visual_model_forward.1} parent=1 // loop_body
      %s39 = ssub.s32 %s34, 1
      %s40 = ssub.s32 %s34, 2
      %s47 = sadd.s32 1, %s42
      %p48 = scmp.ge.s32.totalorder %s47, 2
      %s49 = scalar_select %p48, 0, %s47
      %s50 = sadd.s32 1, %s41
      %s51 = scalar_select %p48, %s50, %s41
      %p52 = scmp.ge.s32.totalorder %s51, 2
      %s53 = scalar_select %p52, 0, %s51
      %s54 = ssub.s32 %s41, %s53
      %p55 = scmp.eq.s32.totalorder %s54, 0
      %s57 = sadd.s32 %s56, 1
      %s58 = scalar_select %p55, %s56, %s57
      %p61 = pneg %p55
      %p62 = scmp.eq.s32.totalorder %s34, 3
      %p63 = por %p61, %p62
      %p64 = scmp.ne.s32.totalorder %s56, %s59
      %p65 = scmp.eq.s32.totalorder %s34, 0
      %p66 = por %p64, %p65
      %p67 = scmp.ne.s32.totalorder %s56, %s59
      %p68 = scmp.eq.s32.totalorder %s39, 3
      %p69 = por %p67, %p68
      %p70 = scmp.ne.s32.totalorder %s59, %s60
      %p71 = scmp.eq.s32.totalorder %s39, 0
      %p72 = por %p70, %p71
      %p73 = scmp.ne.s32.totalorder %s59, %s60
      %p74 = scmp.eq.s32.totalorder %s40, 3
      %p75 = por %p73, %p74
      %p77 = scmp.ne.s32.totalorder %s60, %s76
      %p78 = scmp.eq.s32.totalorder %s40, 0
      %p79 = por %p77, %p78
      %s81 = sadd.s32 %s80, 1
      %p84 = scmp.eq.s32.totalorder %s34, 3
      %p85 = scmp.ne.s32.totalorder %s80, %s82
      %p86 = scmp.eq.s32.totalorder %s34, 0
      %p87 = por %p85, %p86
      %p88 = scmp.ne.s32.totalorder %s80, %s82
      %p89 = scmp.eq.s32.totalorder %s39, 3
      %p90 = por %p88, %p89
      %p91 = scmp.ne.s32.totalorder %s82, %s83
      %p92 = scmp.eq.s32.totalorder %s39, 0
      %p93 = por %p91, %p92
      %p94 = scmp.ne.s32.totalorder %s82, %s83
      %p95 = scmp.eq.s32.totalorder %s40, 3
      %p96 = por %p94, %p95
      %p98 = scmp.ne.s32.totalorder %s83, %s97
      %p99 = scmp.eq.s32.totalorder %s40, 0
      %p100 = por %p98, %p99
      %s102 = sadd.s32 %s101, 1
      %p105 = scmp.eq.s32.totalorder %s34, 3
      %p106 = scmp.ne.s32.totalorder %s101, %s103
      %p107 = scmp.eq.s32.totalorder %s34, 0
      %p108 = por %p106, %p107
      %p109 = scmp.ne.s32.totalorder %s101, %s103
      %p110 = scmp.eq.s32.totalorder %s39, 3
      %p111 = por %p109, %p110
      %p112 = scmp.ne.s32.totalorder %s103, %s104
      %p113 = scmp.eq.s32.totalorder %s39, 0
      %p114 = por %p112, %p113
      %p115 = scmp.ne.s32.totalorder %s103, %s104
      %p116 = scmp.eq.s32.totalorder %s40, 3
      %p117 = por %p115, %p116
      %p119 = scmp.ne.s32.totalorder %s104, %s118
      %p120 = scmp.eq.s32.totalorder %s40, 0
      %p121 = por %p119, %p120
      %s123 = sadd.s32 %s122, 1
      %p126 = scmp.eq.s32.totalorder %s34, 3
      %p127 = scmp.ne.s32.totalorder %s122, %s124
      %p128 = scmp.eq.s32.totalorder %s34, 0
      %p129 = por %p127, %p128
      %p130 = scmp.ne.s32.totalorder %s122, %s124
      %p131 = scmp.eq.s32.totalorder %s39, 3
      %p132 = por %p130, %p131
      %p133 = scmp.ne.s32.totalorder %s124, %s125
      %p134 = scmp.eq.s32.totalorder %s39, 0
      %p135 = por %p133, %p134
      %p136 = scmp.ne.s32.totalorder %s124, %s125
      %p137 = scmp.eq.s32.totalorder %s40, 3
      %p138 = por %p136, %p137
      %p140 = scmp.ne.s32.totalorder %s125, %s139
      %p141 = scmp.eq.s32.totalorder %s40, 0
      %p142 = por %p140, %p141
      %s144 = sadd.s32 %s143, 1
      %p147 = scmp.eq.s32.totalorder %s34, 3
      %p148 = scmp.ne.s32.totalorder %s143, %s145
      %p149 = scmp.eq.s32.totalorder %s34, 0
      %p150 = por %p148, %p149
      %p151 = scmp.ne.s32.totalorder %s143, %s145
      %p152 = scmp.eq.s32.totalorder %s39, 3
      %p153 = por %p151, %p152
      %p154 = scmp.ne.s32.totalorder %s145, %s146
      %p155 = scmp.eq.s32.totalorder %s39, 0
      %p156 = por %p154, %p155
      %p157 = scmp.ne.s32.totalorder %s145, %s146
      %p158 = scmp.eq.s32.totalorder %s40, 3
      %p159 = por %p157, %p158
      %p161 = scmp.ne.s32.totalorder %s146, %s160
      %p162 = scmp.eq.s32.totalorder %s40, 0
      %p163 = por %p161, %p162
      %s165 = sadd.s32 %s164, 1
      %p168 = scmp.eq.s32.totalorder %s34, 3
      %p169 = scmp.ne.s32.totalorder %s164, %s166
      %p170 = scmp.eq.s32.totalorder %s34, 0
      %p171 = por %p169, %p170
      %p172 = scmp.ne.s32.totalorder %s164, %s166
      %p173 = scmp.eq.s32.totalorder %s39, 3
      %p174 = por %p172, %p173
      %p175 = scmp.ne.s32.totalorder %s166, %s167
      %p176 = scmp.eq.s32.totalorder %s39, 0
      %p177 = por %p175, %p176
      %p178 = scmp.ne.s32.totalorder %s166, %s167
      %p179 = scmp.eq.s32.totalorder %s40, 3
      %p180 = por %p178, %p179
      %p182 = scmp.ne.s32.totalorder %s167, %s181
      %p183 = scmp.eq.s32.totalorder %s40, 0
      %p184 = por %p182, %p183
      %s186 = sadd.s32 %s185, 1
      %p189 = scmp.eq.s32.totalorder %s34, 3
      %p190 = scmp.ne.s32.totalorder %s185, %s187
      %p191 = scmp.eq.s32.totalorder %s34, 0
      %p192 = por %p190, %p191
      %p193 = scmp.ne.s32.totalorder %s185, %s187
      %p194 = scmp.eq.s32.totalorder %s39, 3
      %p195 = por %p193, %p194
      %p196 = scmp.ne.s32.totalorder %s187, %s188
      %p197 = scmp.eq.s32.totalorder %s39, 0
      %p198 = por %p196, %p197
      %p199 = scmp.ne.s32.totalorder %s187, %s188
      %p200 = scmp.eq.s32.totalorder %s40, 3
      %p201 = por %p199, %p200
      %p203 = scmp.ne.s32.totalorder %s188, %s202
      %p204 = scmp.eq.s32.totalorder %s40, 0
      %p205 = por %p203, %p204
      %s206 = ssub.s32 %s42, %s49
      %p207 = scmp.eq.s32.totalorder %s206, 0
      %s209 = sadd.s32 %s208, 1
      %s210 = scalar_select %p207, %s208, %s209
      %p213 = pneg %p207
      %p214 = scmp.eq.s32.totalorder %s34, 3
      %p215 = por %p213, %p214
      %p216 = scmp.ne.s32.totalorder %s208, %s211
      %p217 = scmp.eq.s32.totalorder %s34, 0
      %p218 = por %p216, %p217
      %p219 = scmp.ne.s32.totalorder %s208, %s211
      %p220 = scmp.eq.s32.totalorder %s39, 3
      %p221 = por %p219, %p220
      %p222 = scmp.ne.s32.totalorder %s211, %s212
      %p223 = scmp.eq.s32.totalorder %s39, 0
      %p224 = por %p222, %p223
      %p225 = scmp.ne.s32.totalorder %s211, %s212
      %p226 = scmp.eq.s32.totalorder %s40, 3
      %p227 = por %p225, %p226
      %p229 = scmp.ne.s32.totalorder %s212, %s228
      %p230 = scmp.eq.s32.totalorder %s40, 0
      %p231 = por %p229, %p230
      %s232 = ssub.s32 %s42, %s49
      %p233 = scmp.eq.s32.totalorder %s232, 0
      %s235 = sadd.s32 %s234, 1
      %s236 = scalar_select %p233, %s234, %s235
      %p239 = pneg %p233
      %p240 = scmp.eq.s32.totalorder %s34, 3
      %p241 = por %p239, %p240
      %p242 = scmp.ne.s32.totalorder %s234, %s237
      %p243 = scmp.eq.s32.totalorder %s34, 0
      %p244 = por %p242, %p243
      %p245 = scmp.ne.s32.totalorder %s234, %s237
      %p246 = scmp.eq.s32.totalorder %s39, 3
      %p247 = por %p245, %p246
      %p248 = scmp.ne.s32.totalorder %s237, %s238
      %p249 = scmp.eq.s32.totalorder %s39, 0
      %p250 = por %p248, %p249
      %p251 = scmp.ne.s32.totalorder %s237, %s238
      %p252 = scmp.eq.s32.totalorder %s40, 3
      %p253 = por %p251, %p252
      %p255 = scmp.ne.s32.totalorder %s238, %s254
      %p256 = scmp.eq.s32.totalorder %s40, 0
      %p257 = por %p255, %p256
      %s258 = ssub.s32 %s42, %s49
      %p259 = scmp.eq.s32.totalorder %s258, 0
      %s261 = sadd.s32 %s260, 1
      %s262 = scalar_select %p259, %s260, %s261
      %p265 = pneg %p259
      %p266 = scmp.eq.s32.totalorder %s34, 3
      %p267 = por %p265, %p266
      %p268 = scmp.ne.s32.totalorder %s260, %s263
      %p269 = scmp.eq.s32.totalorder %s34, 0
      %p270 = por %p268, %p269
      %p271 = scmp.ne.s32.totalorder %s260, %s263
      %p272 = scmp.eq.s32.totalorder %s39, 3
      %p273 = por %p271, %p272
      %p274 = scmp.ne.s32.totalorder %s263, %s264
      %p275 = scmp.eq.s32.totalorder %s39, 0
      %p276 = por %p274, %p275
      %p277 = scmp.ne.s32.totalorder %s263, %s264
      %p278 = scmp.eq.s32.totalorder %s40, 3
      %p279 = por %p277, %p278
      %p281 = scmp.ne.s32.totalorder %s264, %s280
      %p282 = scmp.eq.s32.totalorder %s40, 0
      %p283 = por %p281, %p282
      %s284 = ssub.s32 %s42, %s49
      %p285 = scmp.eq.s32.totalorder %s284, 0
      %s287 = sadd.s32 %s286, 1
      %s288 = scalar_select %p285, %s286, %s287
      %p291 = pneg %p285
      %p292 = scmp.eq.s32.totalorder %s34, 3
      %p293 = por %p291, %p292
      %p294 = scmp.ne.s32.totalorder %s286, %s289
      %p295 = scmp.eq.s32.totalorder %s34, 0
      %p296 = por %p294, %p295
      %p297 = scmp.ne.s32.totalorder %s286, %s289
      %p298 = scmp.eq.s32.totalorder %s39, 3
      %p299 = por %p297, %p298
      %p300 = scmp.ne.s32.totalorder %s289, %s290
      %p301 = scmp.eq.s32.totalorder %s39, 0
      %p302 = por %p300, %p301
      %p303 = scmp.ne.s32.totalorder %s289, %s290
      %p304 = scmp.eq.s32.totalorder %s40, 3
      %p305 = por %p303, %p304
      %p307 = scmp.ne.s32.totalorder %s290, %s306
      %p308 = scmp.eq.s32.totalorder %s40, 0
      %p309 = por %p307, %p308
      %s310 = ssub.s32 %s42, %s49
      %p311 = scmp.eq.s32.totalorder %s310, 0
      %s313 = sadd.s32 %s312, 1
      %s314 = scalar_select %p311, %s312, %s313
      %p317 = pneg %p311
      %p318 = scmp.eq.s32.totalorder %s34, 3
      %p319 = por %p317, %p318
      %p320 = scmp.ne.s32.totalorder %s312, %s315
      %p321 = scmp.eq.s32.totalorder %s34, 0
      %p322 = por %p320, %p321
      %p323 = scmp.ne.s32.totalorder %s312, %s315
      %p324 = scmp.eq.s32.totalorder %s39, 3
      %p325 = por %p323, %p324
      %p326 = scmp.ne.s32.totalorder %s315, %s316
      %p327 = scmp.eq.s32.totalorder %s39, 0
      %p328 = por %p326, %p327
      %p329 = scmp.ne.s32.totalorder %s315, %s316
      %p330 = scmp.eq.s32.totalorder %s40, 3
      %p331 = por %p329, %p330
      %p333 = scmp.ne.s32.totalorder %s316, %s332
      %p334 = scmp.eq.s32.totalorder %s40, 0
      %p335 = por %p333, %p334
      %s336 = ssub.s32 %s42, %s49
      %p337 = scmp.eq.s32.totalorder %s336, 0
      %s339 = sadd.s32 %s338, 1
      %s340 = scalar_select %p337, %s338, %s339
      %p343 = pneg %p337
      %p344 = scmp.eq.s32.totalorder %s34, 3
      %p345 = por %p343, %p344
      %p346 = scmp.ne.s32.totalorder %s338, %s341
      %p347 = scmp.eq.s32.totalorder %s34, 0
      %p348 = por %p346, %p347
      %p349 = scmp.ne.s32.totalorder %s338, %s341
      %p350 = scmp.eq.s32.totalorder %s39, 3
      %p351 = por %p349, %p350
      %p352 = scmp.ne.s32.totalorder %s341, %s342
      %p353 = scmp.eq.s32.totalorder %s39, 0
      %p354 = por %p352, %p353
      %p355 = scmp.ne.s32.totalorder %s341, %s342
      %p356 = scmp.eq.s32.totalorder %s40, 3
      %p357 = por %p355, %p356
      %p359 = scmp.ne.s32.totalorder %s342, %s358
      %p360 = scmp.eq.s32.totalorder %s40, 0
      %p361 = por %p359, %p360
      %s362 = ssub.s32 %s42, %s49
      %p363 = scmp.eq.s32.totalorder %s362, 0
      %s365 = sadd.s32 %s364, 1
      %s366 = scalar_select %p363, %s364, %s365
      %p369 = pneg %p363
      %p370 = scmp.eq.s32.totalorder %s34, 3
      %p371 = por %p369, %p370
      %p372 = scmp.ne.s32.totalorder %s364, %s367
      %p373 = scmp.eq.s32.totalorder %s34, 0
      %p374 = por %p372, %p373
      %p375 = scmp.ne.s32.totalorder %s364, %s367
      %p376 = scmp.eq.s32.totalorder %s39, 3
      %p377 = por %p375, %p376
      %p378 = scmp.ne.s32.totalorder %s367, %s368
      %p379 = scmp.eq.s32.totalorder %s39, 0
      %p380 = por %p378, %p379
      %p381 = scmp.ne.s32.totalorder %s367, %s368
      %p382 = scmp.eq.s32.totalorder %s40, 3
      %p383 = por %p381, %p382
      %p385 = scmp.ne.s32.totalorder %s368, %s384
      %p386 = scmp.eq.s32.totalorder %s40, 0
      %p387 = por %p385, %p386
      %s388 = ssub.s32 %s42, %s49
      %p389 = scmp.eq.s32.totalorder %s388, 0
      %s391 = sadd.s32 %s390, 1
      %s392 = scalar_select %p389, %s390, %s391
      %p395 = pneg %p389
      %p396 = scmp.eq.s32.totalorder %s34, 3
      %p397 = por %p395, %p396
      %p398 = scmp.ne.s32.totalorder %s390, %s393
      %p399 = scmp.eq.s32.totalorder %s34, 0
      %p400 = por %p398, %p399
      %p401 = scmp.ne.s32.totalorder %s390, %s393
      %p402 = scmp.eq.s32.totalorder %s39, 3
      %p403 = por %p401, %p402
      %p404 = scmp.ne.s32.totalorder %s393, %s394
      %p405 = scmp.eq.s32.totalorder %s39, 0
      %p406 = por %p404, %p405
      %p407 = scmp.ne.s32.totalorder %s393, %s394
      %p408 = scmp.eq.s32.totalorder %s40, 3
      %p409 = por %p407, %p408
      %p411 = scmp.ne.s32.totalorder %s394, %s410
      %p412 = scmp.eq.s32.totalorder %s40, 0
      %p413 = por %p411, %p412
      %s414 = ssub.s32 %s42, %s49
      %p415 = scmp.eq.s32.totalorder %s414, 0
      %s417 = sadd.s32 %s416, 1
      %s418 = scalar_select %p415, %s416, %s417
      %p421 = pneg %p415
      %p422 = scmp.eq.s32.totalorder %s34, 3
      %p423 = por %p421, %p422
      %p424 = scmp.ne.s32.totalorder %s416, %s419
      %p425 = scmp.eq.s32.totalorder %s34, 0
      %p426 = por %p424, %p425
      %p427 = scmp.ne.s32.totalorder %s416, %s419
      %p428 = scmp.eq.s32.totalorder %s39, 3
      %p429 = por %p427, %p428
      %p430 = scmp.ne.s32.totalorder %s419, %s420
      %p431 = scmp.eq.s32.totalorder %s39, 0
      %p432 = por %p430, %p431
      %p433 = scmp.ne.s32.totalorder %s419, %s420
      %p434 = scmp.eq.s32.totalorder %s40, 3
      %p435 = por %p433, %p434
      %p437 = scmp.ne.s32.totalorder %s420, %s436
      %p438 = scmp.eq.s32.totalorder %s40, 0
      %p439 = por %p437, %p438
      %s440 = ssub.s32 %s42, %s49
      %p441 = scmp.eq.s32.totalorder %s440, 0
      %s443 = sadd.s32 %s442, 1
      %s444 = scalar_select %p441, %s442, %s443
      %p447 = pneg %p441
      %p448 = scmp.eq.s32.totalorder %s34, 3
      %p449 = por %p447, %p448
      %p450 = scmp.ne.s32.totalorder %s442, %s445
      %p451 = scmp.eq.s32.totalorder %s34, 0
      %p452 = por %p450, %p451
      %p453 = scmp.ne.s32.totalorder %s442, %s445
      %p454 = scmp.eq.s32.totalorder %s39, 3
      %p455 = por %p453, %p454
      %p456 = scmp.ne.s32.totalorder %s445, %s446
      %p457 = scmp.eq.s32.totalorder %s39, 0
      %p458 = por %p456, %p457
      %p459 = scmp.ne.s32.totalorder %s445, %s446
      %p460 = scmp.eq.s32.totalorder %s40, 3
      %p461 = por %p459, %p460
      %p463 = scmp.ne.s32.totalorder %s446, %s462
      %p464 = scmp.eq.s32.totalorder %s40, 0
      %p465 = por %p463, %p464
      %s466 = ssub.s32 %s42, %s49
      %p467 = scmp.eq.s32.totalorder %s466, 0
      %s469 = sadd.s32 %s468, 1
      %s470 = scalar_select %p467, %s468, %s469
      %p473 = pneg %p467
      %p474 = scmp.eq.s32.totalorder %s34, 3
      %p475 = por %p473, %p474
      %p476 = scmp.ne.s32.totalorder %s468, %s471
      %p477 = scmp.eq.s32.totalorder %s34, 0
      %p478 = por %p476, %p477
      %p479 = scmp.ne.s32.totalorder %s468, %s471
      %p480 = scmp.eq.s32.totalorder %s39, 3
      %p481 = por %p479, %p480
      %p482 = scmp.ne.s32.totalorder %s471, %s472
      %p483 = scmp.eq.s32.totalorder %s39, 0
      %p484 = por %p482, %p483
      %p485 = scmp.ne.s32.totalorder %s471, %s472
      %p486 = scmp.eq.s32.totalorder %s40, 3
      %p487 = por %p485, %p486
      %p489 = scmp.ne.s32.totalorder %s472, %s488
      %p490 = scmp.eq.s32.totalorder %s40, 0
      %p491 = por %p489, %p490
      %s492 = ssub.s32 %s42, %s49
      %p493 = scmp.eq.s32.totalorder %s492, 0
      %s495 = sadd.s32 %s494, 1
      %s496 = scalar_select %p493, %s494, %s495
      %p499 = pneg %p493
      %p500 = scmp.eq.s32.totalorder %s34, 3
      %p501 = por %p499, %p500
      %p502 = scmp.ne.s32.totalorder %s494, %s497
      %p503 = scmp.eq.s32.totalorder %s34, 0
      %p504 = por %p502, %p503
      %p505 = scmp.ne.s32.totalorder %s494, %s497
      %p506 = scmp.eq.s32.totalorder %s39, 3
      %p507 = por %p505, %p506
      %p508 = scmp.ne.s32.totalorder %s497, %s498
      %p509 = scmp.eq.s32.totalorder %s39, 0
      %p510 = por %p508, %p509
      %p511 = scmp.ne.s32.totalorder %s497, %s498
      %p512 = scmp.eq.s32.totalorder %s40, 3
      %p513 = por %p511, %p512
      %p515 = scmp.ne.s32.totalorder %s498, %s514
      %p516 = scmp.eq.s32.totalorder %s40, 0
      %p517 = por %p515, %p516
      %s519 = sadd.s32 %s518, 1
      %p522 = scmp.eq.s32.totalorder %s34, 3
      %p523 = scmp.ne.s32.totalorder %s518, %s520
      %p524 = scmp.eq.s32.totalorder %s34, 0
      %p525 = por %p523, %p524
      %p526 = scmp.ne.s32.totalorder %s518, %s520
      %p527 = scmp.eq.s32.totalorder %s39, 3
      %p528 = por %p526, %p527
      %p529 = scmp.ne.s32.totalorder %s520, %s521
      %p530 = scmp.eq.s32.totalorder %s39, 0
      %p531 = por %p529, %p530
      %p532 = scmp.ne.s32.totalorder %s520, %s521
      %p533 = scmp.eq.s32.totalorder %s40, 3
      %p534 = por %p532, %p533
      %p536 = scmp.ne.s32.totalorder %s521, %s535
      %p537 = scmp.eq.s32.totalorder %s40, 0
      %p538 = por %p536, %p537
      %s540 = sadd.s32 %s539, 1
      %p543 = scmp.eq.s32.totalorder %s34, 3
      %p544 = scmp.ne.s32.totalorder %s539, %s541
      %p545 = scmp.eq.s32.totalorder %s34, 0
      %p546 = por %p544, %p545
      %p547 = scmp.ne.s32.totalorder %s539, %s541
      %p548 = scmp.eq.s32.totalorder %s39, 3
      %p549 = por %p547, %p548
      %p550 = scmp.ne.s32.totalorder %s541, %s542
      %p551 = scmp.eq.s32.totalorder %s39, 0
      %p552 = por %p550, %p551
      %p553 = scmp.ne.s32.totalorder %s541, %s542
      %p554 = scmp.eq.s32.totalorder %s40, 3
      %p555 = por %p553, %p554
      %p557 = scmp.ne.s32.totalorder %s542, %s556
      %p558 = scmp.eq.s32.totalorder %s40, 0
      %p559 = por %p557, %p558
      %s561 = sadd.s32 %s560, 1
      %p564 = scmp.eq.s32.totalorder %s34, 3
      %p565 = scmp.ne.s32.totalorder %s560, %s562
      %p566 = scmp.eq.s32.totalorder %s34, 0
      %p567 = por %p565, %p566
      %p568 = scmp.ne.s32.totalorder %s560, %s562
      %p569 = scmp.eq.s32.totalorder %s39, 3
      %p570 = por %p568, %p569
      %p571 = scmp.ne.s32.totalorder %s562, %s563
      %p572 = scmp.eq.s32.totalorder %s39, 0
      %p573 = por %p571, %p572
      %p574 = scmp.ne.s32.totalorder %s562, %s563
      %p575 = scmp.eq.s32.totalorder %s40, 3
      %p576 = por %p574, %p575
      %p578 = scmp.ne.s32.totalorder %s563, %s577
      %p579 = scmp.eq.s32.totalorder %s40, 0
      %p580 = por %p578, %p579
      %s581 = ssub.s32 %s41, %s53
      %p582 = scmp.eq.s32.totalorder %s581, 0
      %s584 = sadd.s32 %s583, 1
      %s585 = scalar_select %p582, %s583, %s584
      %p588 = pneg %p582
      %p589 = scmp.eq.s32.totalorder %s34, 3
      %p590 = por %p588, %p589
      %p591 = scmp.ne.s32.totalorder %s583, %s586
      %p592 = scmp.eq.s32.totalorder %s34, 0
      %p593 = por %p591, %p592
      %p594 = scmp.ne.s32.totalorder %s583, %s586
      %p595 = scmp.eq.s32.totalorder %s39, 3
      %p596 = por %p594, %p595
      %p597 = scmp.ne.s32.totalorder %s586, %s587
      %p598 = scmp.eq.s32.totalorder %s39, 0
      %p599 = por %p597, %p598
      %p600 = scmp.ne.s32.totalorder %s586, %s587
      %p601 = scmp.eq.s32.totalorder %s40, 3
      %p602 = por %p600, %p601
      %p604 = scmp.ne.s32.totalorder %s587, %s603
      %p605 = scmp.eq.s32.totalorder %s40, 0
      %p606 = por %p604, %p605
      %p607 = scmp.le.s32.totalorder 1, %s34
      %p608 = scmp.lt.s32.totalorder %s34, 5
      %p609 = pnand %p607, %p608
      %p610 = pneg %p609
      // Predicated region
      $region9: #{visual_model_forward.1} parent=5 // pred_check
        _
      $region10: #{visual_model_forward.1} parent=5 // pred_check_branch
        %612 = sbr.rel (%p609) target = $region12
      $region11: #{visual_model_forward.1} parent=5 // pred_region
        %s613 = ssub.s32 %s34, 1
        // Predicated region
        $region13: #{visual_model_forward.1} parent=11 // pred_check
          %p614 = pneg %p93
        $region14: #{visual_model_forward.1} parent=11 // pred_check_branch
          %616 = sbr.rel (%p614) target = $region16
        $region15: #{visual_model_forward.1} parent=11 // pred_region
          %s618 = ssub.s32 1536, 1536
          %619 = vsyncadd [#allocation4], %s618
          %s620 = sshll.u32 [#allocation3], 4
          %s621 = int_to_ptr.vmem [resolvable:$true] %s620
          %626 = dma.hbm_to_vmem [thread:$0]  %s1, 1536, %s621, [#allocation4], 64, 64, 4
        $region16: #{visual_model_forward.1} parent=11 // pred_fallthru
          _
        // Predicated region
        $region17: #{visual_model_forward.1} parent=11 // pred_check
          %p627 = pneg %p114
        $region18: #{visual_model_forward.1} parent=11 // pred_check_branch
          %629 = sbr.rel (%p627) target = $region20
        $region19: #{visual_model_forward.1} parent=11 // pred_region
          _
        $region20: #{visual_model_forward.1} parent=11 // pred_fallthru
          _
        // Predicated region
        $region21: #{visual_model_forward.1} parent=11 // pred_check
          %p630 = pneg %p135
        $region22: #{visual_model_forward.1} parent=11 // pred_check_branch
          %632 = sbr.rel (%p630) target = $region24
        $region23: #{visual_model_forward.1} parent=11 // pred_region
          _
        $region24: #{visual_model_forward.1} parent=11 // pred_fallthru
          _
        // Predicated region
        $region25: #{visual_model_forward.1} parent=11 // pred_check
          %p633 = pneg %p156
        $region26: #{visual_model_forward.1} parent=11 // pred_check_branch
          %635 = sbr.rel (%p633) target = $region28
        $region27: #{visual_model_forward.1} parent=11 // pred_region
          %s637 = ssub.s32 384, 384
          %638 = vsyncadd [#allocation7], %s637
          %s639 = sshll.u32 [#allocation6], 4
          %s640 = int_to_ptr.vmem [resolvable:$true] %s639
          %645 = dma.hbm_to_vmem [thread:$0]  %s4, 384, %s640, [#allocation7], 128, 128, 8
        $region28: #{visual_model_forward.1} parent=11 // pred_fallthru
          _
        // Predicated region
        $region29: #{visual_model_forward.1} parent=11 // pred_check
          %p646 = pneg %p177
        $region30: #{visual_model_forward.1} parent=11 // pred_check_branch
          %648 = sbr.rel (%p646) target = $region32
        $region31: #{visual_model_forward.1} parent=11 // pred_region
          %s650 = ssub.s32 16, 16
          %651 = vsyncadd [#allocation7], %s650
          %s653 = sshll.u32 [#allocation8], 4
          %s654 = int_to_ptr.vmem [resolvable:$true] %s653
          %656 = dma.hbm_to_vmem [thread:$0]  %s5, 16, %s654, [#allocation7]
        $region32: #{visual_model_forward.1} parent=11 // pred_fallthru
          _
        // Predicated region
        $region33: #{visual_model_forward.1} parent=11 // pred_check
          %p657 = pneg %p198
        $region34: #{visual_model_forward.1} parent=11 // pred_check_branch
          %659 = sbr.rel (%p657) target = $region36
        $region35: #{visual_model_forward.1} parent=11 // pred_region
          %s661 = ssub.s32 16, 16
          %662 = vsyncadd [#allocation10], %s661
          %s664 = sshll.u32 [#allocation9], 4
          %s665 = int_to_ptr.vmem [resolvable:$true] %s664
          %667 = dma.hbm_to_vmem [thread:$0]  %s6, 16, %s665, [#allocation10]
        $region36: #{visual_model_forward.1} parent=11 // pred_fallthru
          _
        // Predicated region
        $region37: #{visual_model_forward.1} parent=11 // pred_check
          %p668 = pneg %p531
        $region38: #{visual_model_forward.1} parent=11 // pred_check_branch
          %670 = sbr.rel (%p668) target = $region40
        $region39: #{visual_model_forward.1} parent=11 // pred_region
          %s672 = ssub.s32 16, 16
          %673 = vsyncadd [#allocation7], %s672
          %s675 = sshll.u32 [#allocation18], 4
          %s676 = int_to_ptr.vmem [resolvable:$true] %s675
          %678 = dma.hbm_to_vmem [thread:$0]  %s19, 16, %s676, [#allocation7]
        $region40: #{visual_model_forward.1} parent=11 // pred_fallthru
          _
        // Predicated region
        $region41: #{visual_model_forward.1} parent=11 // pred_check
          %p679 = pneg %p552
        $region42: #{visual_model_forward.1} parent=11 // pred_check_branch
          %681 = sbr.rel (%p679) target = $region44
        $region43: #{visual_model_forward.1} parent=11 // pred_region
          %s683 = ssub.s32 16, 16
          %684 = vsyncadd [#allocation10], %s683
          %s686 = sshll.u32 [#allocation19], 4
          %s687 = int_to_ptr.vmem [resolvable:$true] %s686
          %689 = dma.hbm_to_vmem [thread:$0]  %s20, 16, %s687, [#allocation10]
        $region44: #{visual_model_forward.1} parent=11 // pred_fallthru
          _
        // Predicated region
        $region45: #{visual_model_forward.1} parent=11 // pred_check
          %p690 = pneg %p573
        $region46: #{visual_model_forward.1} parent=11 // pred_check_branch
          %692 = sbr.rel (%p690) target = $region48
        $region47: #{visual_model_forward.1} parent=11 // pred_region
          _
        $region48: #{visual_model_forward.1} parent=11 // pred_fallthru
          _
      $region12: #{visual_model_forward.1} parent=5 // pred_fallthru
        _
      %p693 = scmp.lt.s32.totalorder %s34, 4
      // Predicated region
      $region49: #{visual_model_forward.1} parent=5 // pred_check
        %p694 = pneg %p693
      $region50: #{visual_model_forward.1} parent=5 // pred_check_branch
        %696 = sbr.rel (%p694) target = $region52
      $region51: #{visual_model_forward.1} parent=5 // pred_region
        // Predicated region
        $region53: #{visual_model_forward.1} parent=51 // pred_check
          %p697 = pneg %p66
        $region54: #{visual_model_forward.1} parent=51 // pred_check_branch
          %699 = sbr.rel (%p697) target = $region56
        $region55: #{visual_model_forward.1} parent=51 // pred_region
          %p700 = scmp.lt.s32.totalorder %s41, 1
          %s701 = scalar_select %p700, %s41, 1
          %s702 = smul.addr %s701, 4
          %s703 = smul.addr %s702, 4
          %s704 = scalar_lea.vmem %s0, %s703
        $region56: #{visual_model_forward.1} parent=51 // pred_fallthru
          _
        // Predicated region
        $region57: #{visual_model_forward.1} parent=51 // pred_check
          %p705 = pneg %p218
        $region58: #{visual_model_forward.1} parent=51 // pred_check_branch
          %707 = sbr.rel (%p705) target = $region60
        $region59: #{visual_model_forward.1} parent=51 // pred_region
          %p708 = scmp.lt.s32.totalorder %s42, 1
          %s709 = scalar_select %p708, %s42, 1
          %s710 = scalar_lea.vmem %s7, %s709
        $region60: #{visual_model_forward.1} parent=51 // pred_fallthru
          _
        // Predicated region
        $region61: #{visual_model_forward.1} parent=51 // pred_check
          %p711 = pneg %p244
        $region62: #{visual_model_forward.1} parent=51 // pred_check_branch
          %713 = sbr.rel (%p711) target = $region64
        $region63: #{visual_model_forward.1} parent=51 // pred_region
          %p714 = scmp.lt.s32.totalorder %s42, 1
          %s715 = scalar_select %p714, %s42, 1
          %s716 = scalar_lea.vmem %s8, %s715
        $region64: #{visual_model_forward.1} parent=51 // pred_fallthru
          _
        // Predicated region
        $region65: #{visual_model_forward.1} parent=51 // pred_check
          %p717 = pneg %p270
        $region66: #{visual_model_forward.1} parent=51 // pred_check_branch
          %719 = sbr.rel (%p717) target = $region68
        $region67: #{visual_model_forward.1} parent=51 // pred_region
          %p720 = scmp.lt.s32.totalorder %s42, 1
          %s721 = scalar_select %p720, %s42, 1
          %s722 = smul.addr %s721, 192
          %s723 = smul.addr %s722, 4
          %s724 = scalar_lea.vmem %s9, %s723
        $region68: #{visual_model_forward.1} parent=51 // pred_fallthru
          _
        // Predicated region
        $region69: #{visual_model_forward.1} parent=51 // pred_check
          %p725 = pneg %p296
        $region70: #{visual_model_forward.1} parent=51 // pred_check_branch
          %727 = sbr.rel (%p725) target = $region72
        $region71: #{visual_model_forward.1} parent=51 // pred_region
          %s728 = sand.u32 %s34, 1
          %s729 = scalar_lea.sflag [#allocation4], %s728
          %s730 = sand.u32 %s286, 1
          %s731 = smul.addr %s730, 12
          %s732 = scalar_lea.vmem [#allocation11], %s731
          %s734 = ssub.s32 192, 192
          %735 = vsyncadd %s729, %s734
          %s736 = smul.addr %s42, 12
          %s737 = smul.addr %s736, 16
          %s738 = scalar_lea.hbm %s10, %s737
          %s740 = sshll.u32 %s732, 4
          %s741 = int_to_ptr.vmem [resolvable:$true] %s740
          %743 = dma.hbm_to_vmem [thread:$0]  %s738, 192, %s741, %s729
        $region72: #{visual_model_forward.1} parent=51 // pred_fallthru
          _
        // Predicated region
        $region73: #{visual_model_forward.1} parent=51 // pred_check
          %p744 = pneg %p322
        $region74: #{visual_model_forward.1} parent=51 // pred_check_branch
          %746 = sbr.rel (%p744) target = $region76
        $region75: #{visual_model_forward.1} parent=51 // pred_region
          %s747 = sand.u32 %s34, 1
          %s748 = scalar_lea.sflag [#allocation4], %s747
          %s749 = sand.u32 %s312, 1
          %s750 = smul.addr %s749, 256
          %s751 = scalar_lea.vmem [#allocation12], %s750
          %s753 = ssub.s32 4096, 4096
          %754 = vsyncadd %s748, %s753
          %s755 = smul.addr %s42, 64
          %s756 = smul.addr %s755, 64
          %s757 = scalar_lea.hbm %s11, %s756
          %s758 = sshll.u32 %s751, 4
          %s759 = int_to_ptr.vmem [resolvable:$true] %s758
          %764 = dma.hbm_to_vmem [thread:$0]  %s757, 4096, %s759, %s748, 64, 64, 4
        $region76: #{visual_model_forward.1} parent=51 // pred_fallthru
          _
        // Predicated region
        $region77: #{visual_model_forward.1} parent=51 // pred_check
          %p765 = pneg %p348
        $region78: #{visual_model_forward.1} parent=51 // pred_check_branch
          %767 = sbr.rel (%p765) target = $region80
        $region79: #{visual_model_forward.1} parent=51 // pred_region
          %s768 = sand.u32 %s34, 1
          %s769 = scalar_lea.sflag [#allocation4], %s768
          %s770 = sand.u32 %s338, 1
          %s771 = scalar_lea.vmem [#allocation13], %s770
          %s773 = ssub.s32 16, 16
          %774 = vsyncadd %s769, %s773
          %s775 = smul.addr %s42, 16
          %s776 = scalar_lea.hbm %s12, %s775
          %s778 = sshll.u32 %s771, 4
          %s779 = int_to_ptr.vmem [resolvable:$true] %s778
          %781 = dma.hbm_to_vmem [thread:$0]  %s776, 16, %s779, %s769
        $region80: #{visual_model_forward.1} parent=51 // pred_fallthru
          _
        // Predicated region
        $region81: #{visual_model_forward.1} parent=51 // pred_check
          %p782 = pneg %p374
        $region82: #{visual_model_forward.1} parent=51 // pred_check_branch
          %784 = sbr.rel (%p782) target = $region84
        $region83: #{visual_model_forward.1} parent=51 // pred_region
          %s785 = sand.u32 %s34, 1
          %s786 = scalar_lea.sflag [#allocation4], %s785
          %s787 = sand.u32 %s364, 1
          %s788 = scalar_lea.vmem [#allocation14], %s787
          %s790 = ssub.s32 16, 16
          %791 = vsyncadd %s786, %s790
          %s792 = smul.addr %s42, 16
          %s793 = scalar_lea.hbm %s13, %s792
          %s795 = sshll.u32 %s788, 4
          %s796 = int_to_ptr.vmem [resolvable:$true] %s795
          %798 = dma.hbm_to_vmem [thread:$0]  %s793, 16, %s796, %s786
        $region84: #{visual_model_forward.1} parent=51 // pred_fallthru
          _
        // Predicated region
        $region85: #{visual_model_forward.1} parent=51 // pred_check
          %p799 = pneg %p400
        $region86: #{visual_model_forward.1} parent=51 // pred_check_branch
          %801 = sbr.rel (%p799) target = $region88
        $region87: #{visual_model_forward.1} parent=51 // pred_region
          %s802 = sand.u32 %s34, 1
          %s803 = scalar_lea.sflag [#allocation4], %s802
          %s804 = sand.u32 %s390, 1
          %s805 = scalar_lea.vmem [#allocation15], %s804
          %s807 = ssub.s32 16, 16
          %808 = vsyncadd %s803, %s807
          %s809 = smul.addr %s42, 16
          %s810 = scalar_lea.hbm %s14, %s809
          %s812 = sshll.u32 %s805, 4
          %s813 = int_to_ptr.vmem [resolvable:$true] %s812
          %815 = dma.hbm_to_vmem [thread:$0]  %s810, 16, %s813, %s803
        $region88: #{visual_model_forward.1} parent=51 // pred_fallthru
          _
        // Predicated region
        $region89: #{visual_model_forward.1} parent=51 // pred_check
          %p816 = pneg %p426
        $region90: #{visual_model_forward.1} parent=51 // pred_check_branch
          %818 = sbr.rel (%p816) target = $region92
        $region91: #{visual_model_forward.1} parent=51 // pred_region
          %p819 = scmp.lt.s32.totalorder %s42, 1
          %s820 = scalar_select %p819, %s42, 1
          %s821 = smul.addr %s820, 64
          %s822 = smul.addr %s821, 4
          %s823 = scalar_lea.vmem %s15, %s822
        $region92: #{visual_model_forward.1} parent=51 // pred_fallthru
          _
        // Predicated region
        $region93: #{visual_model_forward.1} parent=51 // pred_check
          %p824 = pneg %p452
        $region94: #{visual_model_forward.1} parent=51 // pred_check_branch
          %826 = sbr.rel (%p824) target = $region96
        $region95: #{visual_model_forward.1} parent=51 // pred_region
          %p827 = scmp.lt.s32.totalorder %s42, 1
          %s828 = scalar_select %p827, %s42, 1
          %s829 = smul.addr %s828, 4
          %s830 = scalar_lea.vmem %s16, %s829
        $region96: #{visual_model_forward.1} parent=51 // pred_fallthru
          _
        // Predicated region
        $region97: #{visual_model_forward.1} parent=51 // pred_check
          %p831 = pneg %p478
        $region98: #{visual_model_forward.1} parent=51 // pred_check_branch
          %833 = sbr.rel (%p831) target = $region100
        $region99: #{visual_model_forward.1} parent=51 // pred_region
          %s834 = sand.u32 %s34, 1
          %s835 = scalar_lea.sflag [#allocation4], %s834
          %s836 = sand.u32 %s468, 1
          %s837 = smul.addr %s836, 256
          %s838 = scalar_lea.vmem [#allocation16], %s837
          %s840 = ssub.s32 4096, 4096
          %841 = vsyncadd %s835, %s840
          %s842 = smul.addr %s42, 64
          %s843 = smul.addr %s842, 64
          %s844 = scalar_lea.hbm %s17, %s843
          %s845 = sshll.u32 %s838, 4
          %s846 = int_to_ptr.vmem [resolvable:$true] %s845
          %851 = dma.hbm_to_vmem [thread:$0]  %s844, 4096, %s846, %s835, 64, 64, 4
        $region100: #{visual_model_forward.1} parent=51 // pred_fallthru
          _
        // Predicated region
        $region101: #{visual_model_forward.1} parent=51 // pred_check
          %p852 = pneg %p504
        $region102: #{visual_model_forward.1} parent=51 // pred_check_branch
          %854 = sbr.rel (%p852) target = $region104
        $region103: #{visual_model_forward.1} parent=51 // pred_region
          %s855 = sand.u32 %s34, 1
          %s856 = scalar_lea.sflag [#allocation4], %s855
          %s857 = sand.u32 %s494, 1
          %s858 = scalar_lea.vmem [#allocation17], %s857
          %s860 = ssub.s32 16, 16
          %861 = vsyncadd %s856, %s860
          %s862 = smul.addr %s42, 16
          %s863 = scalar_lea.hbm %s18, %s862
          %s865 = sshll.u32 %s858, 4
          %s866 = int_to_ptr.vmem [resolvable:$true] %s865
          %868 = dma.hbm_to_vmem [thread:$0]  %s863, 16, %s866, %s856
        $region104: #{visual_model_forward.1} parent=51 // pred_fallthru
          _
      $region52: #{visual_model_forward.1} parent=5 // pred_fallthru
        _
      %p869 = scmp.le.s32.totalorder 1, %s34
      %p870 = scmp.lt.s32.totalorder %s34, 5
      %p871 = pnand %p869, %p870
      %p872 = pneg %p871
      // Predicated region
      $region105: #{visual_model_forward.1} parent=5 // pred_check
        _
      $region106: #{visual_model_forward.1} parent=5 // pred_check_branch
        %874 = sbr.rel (%p871) target = $region108
      $region107: #{visual_model_forward.1} parent=5 // pred_region
        %s875 = ssub.s32 %s34, 1
        // Predicated region
        $region109: #{visual_model_forward.1} parent=107 // pred_check
          %p876 = pneg %p93
        $region110: #{visual_model_forward.1} parent=107 // pred_check_branch
          %878 = sbr.rel (%p876) target = $region112
        $region111: #{visual_model_forward.1} parent=107 // pred_region
          %879 = dma.done [#allocation4], 1536
        $region112: #{visual_model_forward.1} parent=107 // pred_fallthru
          _
        // Predicated region
        $region113: #{visual_model_forward.1} parent=107 // pred_check
          %p880 = pneg %p156
        $region114: #{visual_model_forward.1} parent=107 // pred_check_branch
          %882 = sbr.rel (%p880) target = $region116
        $region115: #{visual_model_forward.1} parent=107 // pred_region
          %883 = dma.done [#allocation7], 384
        $region116: #{visual_model_forward.1} parent=107 // pred_fallthru
          _
        // Predicated region
        $region117: #{visual_model_forward.1} parent=107 // pred_check
          %p884 = pneg %p177
        $region118: #{visual_model_forward.1} parent=107 // pred_check_branch
          %886 = sbr.rel (%p884) target = $region120
        $region119: #{visual_model_forward.1} parent=107 // pred_region
          %887 = dma.done [#allocation7], 16
        $region120: #{visual_model_forward.1} parent=107 // pred_fallthru
          _
        // Predicated region
        $region121: #{visual_model_forward.1} parent=107 // pred_check
          %p888 = pneg %p198
        $region122: #{visual_model_forward.1} parent=107 // pred_check_branch
          %890 = sbr.rel (%p888) target = $region124
        $region123: #{visual_model_forward.1} parent=107 // pred_region
          %891 = dma.done [#allocation10], 16
        $region124: #{visual_model_forward.1} parent=107 // pred_fallthru
          _
        %s892 = sand.u32 %s39, 1
        %s893 = scalar_lea.sflag [#allocation4], %s892
        %s894 = sand.u32 %s289, 1
        %s895 = smul.addr %s894, 12
        %s896 = scalar_lea.vmem [#allocation11], %s895
        // Predicated region
        $region125: #{visual_model_forward.1} parent=107 // pred_check
          %p897 = pneg %p302
        $region126: #{visual_model_forward.1} parent=107 // pred_check_branch
          %899 = sbr.rel (%p897) target = $region128
        $region127: #{visual_model_forward.1} parent=107 // pred_region
          %900 = dma.done %s893, 192
        $region128: #{visual_model_forward.1} parent=107 // pred_fallthru
          _
        %s901 = sand.u32 %s39, 1
        %s902 = scalar_lea.sflag [#allocation4], %s901
        %s903 = sand.u32 %s315, 1
        %s904 = smul.addr %s903, 256
        %s905 = scalar_lea.vmem [#allocation12], %s904
        // Predicated region
        $region129: #{visual_model_forward.1} parent=107 // pred_check
          %p906 = pneg %p328
        $region130: #{visual_model_forward.1} parent=107 // pred_check_branch
          %908 = sbr.rel (%p906) target = $region132
        $region131: #{visual_model_forward.1} parent=107 // pred_region
          %909 = dma.done %s902, 4096
        $region132: #{visual_model_forward.1} parent=107 // pred_fallthru
          _
        %s910 = sand.u32 %s39, 1
        %s911 = scalar_lea.sflag [#allocation4], %s910
        %s912 = sand.u32 %s341, 1
        %s913 = scalar_lea.vmem [#allocation13], %s912
        // Predicated region
        $region133: #{visual_model_forward.1} parent=107 // pred_check
          %p914 = pneg %p354
        $region134: #{visual_model_forward.1} parent=107 // pred_check_branch
          %916 = sbr.rel (%p914) target = $region136
        $region135: #{visual_model_forward.1} parent=107 // pred_region
          %917 = dma.done %s911, 16
        $region136: #{visual_model_forward.1} parent=107 // pred_fallthru
          _
        %s918 = sand.u32 %s39, 1
        %s919 = scalar_lea.sflag [#allocation4], %s918
        %s920 = sand.u32 %s367, 1
        %s921 = scalar_lea.vmem [#allocation14], %s920
        // Predicated region
        $region137: #{visual_model_forward.1} parent=107 // pred_check
          %p922 = pneg %p380
        $region138: #{visual_model_forward.1} parent=107 // pred_check_branch
          %924 = sbr.rel (%p922) target = $region140
        $region139: #{visual_model_forward.1} parent=107 // pred_region
          %925 = dma.done %s919, 16
        $region140: #{visual_model_forward.1} parent=107 // pred_fallthru
          _
        %s926 = sand.u32 %s39, 1
        %s927 = scalar_lea.sflag [#allocation4], %s926
        %s928 = sand.u32 %s393, 1
        %s929 = scalar_lea.vmem [#allocation15], %s928
        // Predicated region
        $region141: #{visual_model_forward.1} parent=107 // pred_check
          %p930 = pneg %p406
        $region142: #{visual_model_forward.1} parent=107 // pred_check_branch
          %932 = sbr.rel (%p930) target = $region144
        $region143: #{visual_model_forward.1} parent=107 // pred_region
          %933 = dma.done %s927, 16
        $region144: #{visual_model_forward.1} parent=107 // pred_fallthru
          _
        %s934 = sand.u32 %s39, 1
        %s935 = scalar_lea.sflag [#allocation4], %s934
        %s936 = sand.u32 %s471, 1
        %s937 = smul.addr %s936, 256
        %s938 = scalar_lea.vmem [#allocation16], %s937
        // Predicated region
        $region145: #{visual_model_forward.1} parent=107 // pred_check
          %p939 = pneg %p484
        $region146: #{visual_model_forward.1} parent=107 // pred_check_branch
          %941 = sbr.rel (%p939) target = $region148
        $region147: #{visual_model_forward.1} parent=107 // pred_region
          %942 = dma.done %s935, 4096
        $region148: #{visual_model_forward.1} parent=107 // pred_fallthru
          _
        %s943 = sand.u32 %s39, 1
        %s944 = scalar_lea.sflag [#allocation4], %s943
        %s945 = sand.u32 %s497, 1
        %s946 = scalar_lea.vmem [#allocation17], %s945
        // Predicated region
        $region149: #{visual_model_forward.1} parent=107 // pred_check
          %p947 = pneg %p510
        $region150: #{visual_model_forward.1} parent=107 // pred_check_branch
          %949 = sbr.rel (%p947) target = $region152
        $region151: #{visual_model_forward.1} parent=107 // pred_region
          %950 = dma.done %s944, 16
        $region152: #{visual_model_forward.1} parent=107 // pred_fallthru
          _
        // Predicated region
        $region153: #{visual_model_forward.1} parent=107 // pred_check
          %p951 = pneg %p531
        $region154: #{visual_model_forward.1} parent=107 // pred_check_branch
          %953 = sbr.rel (%p951) target = $region156
        $region155: #{visual_model_forward.1} parent=107 // pred_region
          %954 = dma.done [#allocation7], 16
        $region156: #{visual_model_forward.1} parent=107 // pred_fallthru
          _
        // Predicated region
        $region157: #{visual_model_forward.1} parent=107 // pred_check
          %p955 = pneg %p552
        $region158: #{visual_model_forward.1} parent=107 // pred_check_branch
          %957 = sbr.rel (%p955) target = $region160
        $region159: #{visual_model_forward.1} parent=107 // pred_region
          %958 = dma.done [#allocation10], 16
        $region160: #{visual_model_forward.1} parent=107 // pred_fallthru
          _
        %p959 = scmp.lt.s32.totalorder %s43, 1
        %s960 = scalar_select %p959, %s43, 1
        %s961 = smul.addr %s960, 4
        %s962 = smul.addr %s961, 4
        %s963 = scalar_lea.vmem %s0, %s962
        %p964 = pneg %p72
        %p965 = pneg %p69
        %p966 = pneg %p93
        %p967 = pneg %p90
        %p968 = pneg %p114
        %p969 = pneg %p111
        %p970 = pneg %p135
        %p971 = pneg %p132
        %p972 = pneg %p156
        %p973 = pneg %p153
        %p974 = pneg %p177
        %p975 = pneg %p174
        %p976 = pneg %p198
        %p977 = pneg %p195
        %p978 = scmp.lt.s32.totalorder %s44, 1
        %s979 = scalar_select %p978, %s44, 1
        %s980 = scalar_lea.vmem %s7, %s979
        %p981 = pneg %p224
        %p982 = pneg %p221
        %p983 = scmp.lt.s32.totalorder %s44, 1
        %s984 = scalar_select %p983, %s44, 1
        %s985 = scalar_lea.vmem %s8, %s984
        %p986 = pneg %p250
        %p987 = pneg %p247
        %p988 = scmp.lt.s32.totalorder %s44, 1
        %s989 = scalar_select %p988, %s44, 1
        %s990 = smul.addr %s989, 192
        %s991 = smul.addr %s990, 4
        %s992 = scalar_lea.vmem %s9, %s991
        %p993 = pneg %p276
        %p994 = pneg %p273
        %s995 = sand.u32 %s39, 1
        %s996 = scalar_lea.sflag [#allocation4], %s995
        %s997 = sand.u32 %s289, 1
        %s998 = smul.addr %s997, 12
        %s999 = scalar_lea.vmem [#allocation11], %s998
        %p1000 = pneg %p302
        %p1001 = pneg %p299
        %s1002 = sand.u32 %s39, 1
        %s1003 = scalar_lea.sflag [#allocation4], %s1002
        %s1004 = sand.u32 %s315, 1
        %s1005 = smul.addr %s1004, 256
        %s1006 = scalar_lea.vmem [#allocation12], %s1005
        %p1007 = pneg %p328
        %p1008 = pneg %p325
        %s1009 = sand.u32 %s39, 1
        %s1010 = scalar_lea.sflag [#allocation4], %s1009
        %s1011 = sand.u32 %s341, 1
        %s1012 = scalar_lea.vmem [#allocation13], %s1011
        %p1013 = pneg %p354
        %p1014 = pneg %p351
        %s1015 = sand.u32 %s39, 1
        %s1016 = scalar_lea.sflag [#allocation4], %s1015
        %s1017 = sand.u32 %s367, 1
        %s1018 = scalar_lea.vmem [#allocation14], %s1017
        %p1019 = pneg %p380
        %p1020 = pneg %p377
        %s1021 = sand.u32 %s39, 1
        %s1022 = scalar_lea.sflag [#allocation4], %s1021
        %s1023 = sand.u32 %s393, 1
        %s1024 = scalar_lea.vmem [#allocation15], %s1023
        %p1025 = pneg %p406
        %p1026 = pneg %p403
        %p1027 = scmp.lt.s32.totalorder %s44, 1
        %s1028 = scalar_select %p1027, %s44, 1
        %s1029 = smul.addr %s1028, 64
        %s1030 = smul.addr %s1029, 4
        %s1031 = scalar_lea.vmem %s15, %s1030
        %p1032 = pneg %p432
        %p1033 = pneg %p429
        %p1034 = scmp.lt.s32.totalorder %s44, 1
        %s1035 = scalar_select %p1034, %s44, 1
        %s1036 = smul.addr %s1035, 4
        %s1037 = scalar_lea.vmem %s16, %s1036
        %p1038 = pneg %p458
        %p1039 = pneg %p455
        %s1040 = sand.u32 %s39, 1
        %s1041 = scalar_lea.sflag [#allocation4], %s1040
        %s1042 = sand.u32 %s471, 1
        %s1043 = smul.addr %s1042, 256
        %s1044 = scalar_lea.vmem [#allocation16], %s1043
        %p1045 = pneg %p484
        %p1046 = pneg %p481
        %s1047 = sand.u32 %s39, 1
        %s1048 = scalar_lea.sflag [#allocation4], %s1047
        %s1049 = sand.u32 %s497, 1
        %s1050 = scalar_lea.vmem [#allocation17], %s1049
        %p1051 = pneg %p510
        %p1052 = pneg %p507
        %p1053 = pneg %p531
        %p1054 = pneg %p528
        %p1055 = pneg %p552
        %p1056 = pneg %p549
        %p1057 = pneg %p573
        %p1058 = pneg %p570
        %p1059 = pneg %p599
        %p1060 = pneg %p596
        %s1061 = sand.u32 %s586, 1
        %s1062 = scalar_lea.sflag [#allocation5], %s1061
        %s1063 = sand.u32 %s586, 1
        %s1064 = scalar_lea.vmem [#allocation20], %s1063
        %p1065 = scmp.lt.s32.totalorder %s43, 1
        %s1066 = scalar_select %p1065, %s43, 1
        %s1067 = smul.addr %s1066, 4
        %s1068 = smul.addr %s1067, 4
        %s1069 = scalar_lea.vmem %s0, %s1068
        %p1070 = scmp.lt.s32.totalorder %s44, 1
        %s1071 = scalar_select %p1070, %s44, 1
        %s1072 = scalar_lea.vmem %s7, %s1071
        %p1073 = scmp.lt.s32.totalorder %s44, 1
        %s1074 = scalar_select %p1073, %s44, 1
        %s1075 = scalar_lea.vmem %s8, %s1074
        %p1076 = scmp.lt.s32.totalorder %s44, 1
        %s1077 = scalar_select %p1076, %s44, 1
        %s1078 = smul.addr %s1077, 192
        %s1079 = smul.addr %s1078, 4
        %s1080 = scalar_lea.vmem %s9, %s1079
        %p1081 = scmp.lt.s32.totalorder %s44, 1
        %s1082 = scalar_select %p1081, %s44, 1
        %s1083 = smul.addr %s1082, 64
        %s1084 = smul.addr %s1083, 4
        %s1085 = scalar_lea.vmem %s15, %s1084
        %p1086 = scmp.lt.s32.totalorder %s44, 1
        %s1087 = scalar_select %p1086, %s44, 1
        %s1088 = smul.addr %s1087, 4
        %s1089 = scalar_lea.vmem %s16, %s1088
        %p1091 = scmp.eq.s32.totalorder %s44, 0
        // Predicated region
        $region161: #{visual_model_forward.1} parent=107 // pred_check
          %p1092 = pneg %p1091
        $region162: #{visual_model_forward.1} parent=107 // pred_check_branch
          %1094 = sbr.rel (%p1092) target = $region164
        $region163: #{visual_model_forward.1} parent=107 // pred_region
          %v1095 = vld [vmem:[%s1069] sm:$0xff]
          %v1096 = vld [vmem:[%s1069 + $0x8] sm:$0xff]
          %v1097 = vld [vmem:[#allocation3] sm:$0xf]
          %v1098 = vld [vmem:[#allocation3 + $0x4] sm:$0xf]
          %v1099 = vld [vmem:[#allocation3 + $0x8] sm:$0xf]
          %v1100 = vld [vmem:[#allocation3 + $0xc] sm:$0xf]
          %v1101 = vld [vmem:[#allocation3 + $0x10] sm:$0xf]
          %v1102 = vld [vmem:[#allocation3 + $0x14] sm:$0xf]
          %v1103 = vld [vmem:[#allocation3 + $0x18] sm:$0xf]
          %v1104 = vld [vmem:[#allocation3 + $0x1c] sm:$0xf]
          %v1105 = vld [vmem:[#allocation3 + $0x20] sm:$0xf]
          %v1106 = vld [vmem:[#allocation3 + $0x24] sm:$0xf]
          %v1107 = vld [vmem:[#allocation3 + $0x28] sm:$0xf]
          %v1108 = vld [vmem:[#allocation3 + $0x2c] sm:$0xf]
          %v1109 = vld [vmem:[#allocation3 + $0x30] sm:$0xf]
          %v1110 = vld [vmem:[#allocation3 + $0x34] sm:$0xf]
          %v1111 = vld [vmem:[#allocation3 + $0x38] sm:$0xf]
          %v1112 = vld [vmem:[#allocation3 + $0x3c] sm:$0xf]
          %v1113 = vld [vmem:[#allocation3 + $0x40] sm:$0xf]
          %v1114 = vld [vmem:[#allocation3 + $0x44] sm:$0xf]
          %v1115 = vld [vmem:[#allocation3 + $0x48] sm:$0xf]
          %v1116 = vld [vmem:[#allocation3 + $0x4c] sm:$0xf]
          %v1117 = vld [vmem:[#allocation3 + $0x50] sm:$0xf]
          %v1118 = vld [vmem:[#allocation3 + $0x54] sm:$0xf]
          %v1119 = vld [vmem:[#allocation3 + $0x58] sm:$0xf]
          %v1120 = vld [vmem:[#allocation3 + $0x5c] sm:$0xf]
          %v1121 = vld [vmem:[%s2] sm:$0x1]
          %v1123 = vlaneseq
          %v1124 = vshrl.u32 %v1123, 7
          %v1125 = vsub.s32 0, %v1124
          %v1126 = vrot.slane %v1121, %v1125
          %v1130 = vunpack.c.l.b16 %v1095
          %v1131 = vunpack.c.h.b16 %v1095
          %v1132 = vunpack.c.l.b16 %v1096
          %v1133 = vunpack.c.h.b16 %v1096
          %v1134 = vpack.c.b16 %v1132, %v1130
          %v1135 = vpack.c.b16 %v1133, %v1131
          %v1161 = vunpack.c.l.b16 %v1097
          %v1162 = vunpack.c.l.b16 %v1098
          %v1163 = vunpack.c.l.b16 %v1099
          %v1164 = vunpack.c.l.b16 %v1100
          %v1165 = vunpack.c.l.b16 %v1101
          %v1166 = vunpack.c.l.b16 %v1102
          %v1167 = vunpack.c.l.b16 %v1103
          %v1168 = vunpack.c.l.b16 %v1104
          %v1169 = vunpack.c.l.b16 %v1105
          %v1170 = vunpack.c.l.b16 %v1106
          %v1171 = vunpack.c.l.b16 %v1107
          %v1172 = vunpack.c.l.b16 %v1108
          %v1173 = vunpack.c.l.b16 %v1109
          %v1174 = vunpack.c.l.b16 %v1110
          %v1175 = vunpack.c.l.b16 %v1111
          %v1176 = vunpack.c.l.b16 %v1112
          %v1177 = vunpack.c.l.b16 %v1113
          %v1178 = vunpack.c.l.b16 %v1114
          %v1179 = vunpack.c.l.b16 %v1115
          %v1180 = vunpack.c.l.b16 %v1116
          %v1181 = vunpack.c.l.b16 %v1117
          %v1182 = vunpack.c.l.b16 %v1118
          %v1183 = vunpack.c.l.b16 %v1119
          %v1184 = vunpack.c.l.b16 %v1120
          %v1185 = vpack.c.b16 %v1162, %v1161
          %v1186 = vpack.c.b16 %v1164, %v1163
          %v1187 = vpack.c.b16 %v1166, %v1165
          %v1188 = vpack.c.b16 %v1168, %v1167
          %v1189 = vpack.c.b16 %v1170, %v1169
          %v1190 = vpack.c.b16 %v1172, %v1171
          %v1191 = vpack.c.b16 %v1174, %v1173
          %v1192 = vpack.c.b16 %v1176, %v1175
          %v1193 = vpack.c.b16 %v1178, %v1177
          %v1194 = vpack.c.b16 %v1180, %v1179
          %v1195 = vpack.c.b16 %v1182, %v1181
          %v1196 = vpack.c.b16 %v1184, %v1183
          %vm1209 = vcmask 523264
          %v1211 = vsel %vm1209, %v1135, 0
          %1213 = vmatprep.subr.bf16.mxu0 0
          %1214 = vmatpush1.bf16.msra.mxu0 %v1185
          %1215 = vmatprep.subr.bf16.mxu0 0
          %1216 = vmatpush1.bf16.msra.mxu0 %v1186
          %1217 = vmatprep.subr.bf16.mxu0 0
          %1218 = vmatpush1.bf16.msra.mxu0 %v1187
          %1219 = vmatprep.subr.bf16.mxu0 0
          %1220 = vmatpush1.bf16.msra.mxu0 %v1188
          %1221 = vmatprep.subr.bf16.mxu0 0
          %1222 = vmatpush1.bf16.msra.mxu0 %v1189
          %1223 = vmatprep.subr.bf16.mxu0 0
          %1224 = vmatpush1.bf16.msra.mxu0 %v1190
          %1225 = vmatprep.subr.bf16.mxu0 0
          %1226 = vmatpush1.bf16.msra.mxu0 %v1191
          %1227 = vmatprep.subr.bf16.mxu0 0
          %1228 = vmatpush1.bf16.msra.mxu0 %v1192
          %1229 = vmatprep.subr.bf16.mxu0 0
          %1230 = vmatpush1.bf16.msra.mxu0 %v1193
          %1231 = vmatprep.subr.bf16.mxu0 0
          %1232 = vmatpush1.bf16.msra.mxu0 %v1194
          %1233 = vmatprep.subr.bf16.mxu0 0
          %1234 = vmatpush1.bf16.msra.mxu0 %v1195
          %1235 = vmatprep.subr.bf16.mxu0 0
          %1236 = vmatpush1.bf16.msra.mxu0 %v1196
          %1237 = vmatprep.subr.bf16.mxu0 0
          %1238 = vmatpush1.bf16.msra.mxu0 0
          %1239 = vmatprep.subr.bf16.mxu0 0
          %1240 = vmatpush1.bf16.msra.mxu0 0
          %1241 = vmatprep.subr.bf16.mxu0 0
          %1242 = vmatpush1.bf16.msra.mxu0 0
          %1243 = vmatprep.subr.bf16.mxu0 0
          %1244 = vmatpush1.bf16.msra.mxu0 0
          %1245 = vmatprep.mubr.bf16.mxu0 %v1211
          %1246 = vmatmul.mubr.bf16.gmra.mrb[0].mxu0 %v1134
          %v1247 = vpop.f32.mrb[0].mxu0
          %v1248 = vadd.f32 %v1126, %v1247
          %v1249 = vpop.f32.mrb[0].mxu0
          %v1250 = vpop.f32.mrb[0].mxu0
          %v1251 = vadd.f32 %v1126, %v1250
          %v1252 = vpop.f32.mrb[0].mxu0
          %1253 = vdwg.mxu0
          %v1254 = vld [vmem:[%s3] sm:$0x1]
          %vm1257 = vcmask 1040384
          %v1258 = vrot.slane %v1248, 7
          %v1259 = vrot.slane %v1251, 7
          %v1260 = vsel %vm1257, %v1258, %v1259
          %v1264 = vsel %vm1257, %v1254, %v1258
          %v1265 = vld [vmem:[#allocation6] sm:$0xff]
          %v1266 = vld [vmem:[#allocation6 + $0x8] sm:$0xff]
          %v1267 = vld [vmem:[#allocation6 + $0x10] sm:$0x1]
          %v1268 = vadd.f32 %v1264, %v1265
          %v1269 = vadd.f32 %v1260, %v1266
          %v1270 = vadd.f32 %v1259, %v1267
          %v1271 = vld [vmem:[#allocation8] sm:$0x1]
          %v1272 = vld [vmem:[#allocation9] sm:$0x1]
          %1273 = vadd.xlane.f32.xlu0 %v1268
          %v1274 = vpop.xlane.xlu0 %1273
          %1275 = vadd.xlane.f32.xlu0 %v1269
          %v1276 = vpop.xlane.xlu0 %1275
          %v1277 = vsel %vm1257, %v1270, 0.0
          %1278 = vadd.xlane.f32.xlu0 %v1277
          %v1279 = vpop.xlane.xlu0 %1278
          %v1280 = vrcp.pop 128.0
          %v1281 = vmul.f32 %v1274, %v1280
          %v1282 = vmul.f32 %v1276, %v1280
          %v1283 = vmul.f32 %v1279, %v1280
          %v1284 = vsub.f32 %v1268, %v1281
          %v1285 = vsub.f32 %v1269, %v1282
          %v1286 = vsub.f32 %v1270, %v1283
          %v1287 = vmul.f32 %v1284, %v1284
          %v1288 = vmul.f32 %v1285, %v1285
          %v1289 = vmul.f32 %v1286, %v1286
          %1290 = vadd.xlane.f32.xlu0 %v1287
          %v1291 = vpop.xlane.xlu0 %1290
          %1292 = vadd.xlane.f32.xlu0 %v1288
          %v1293 = vpop.xlane.xlu0 %1292
          %v1294 = vsel %vm1257, %v1289, 0.0
          %1295 = vadd.xlane.f32.xlu0 %v1294
          %v1296 = vpop.xlane.xlu0 %1295
          %v1297 = vmul.f32 %v1291, %v1280
          %v1298 = vmul.f32 %v1293, %v1280
          %v1299 = vmul.f32 %v1296, %v1280
          %v1300 = vadd.f32 %v1297, 1e-05
          %v1301 = vadd.f32 %v1298, 1e-05
          %v1302 = vadd.f32 %v1299, 1e-05
          %v1303 = vrsqrt.pop %v1300
          %v1304 = vrsqrt.pop %v1301
          %v1305 = vrsqrt.pop %v1302
          %v1306 = vmul.f32 %v1284, %v1303
          %v1307 = vmul.f32 %v1285, %v1304
          %v1308 = vmul.f32 %v1286, %v1305
          %v1310 = vlaneseq
          %v1311 = vshrl.u32 %v1310, 7
          %v1312 = vsub.s32 0, %v1311
          %v1313 = vrot.slane %v1271, %v1312
          %v1315 = vmul.f32 %v1306, %v1313
          %v1316 = vmul.f32 %v1307, %v1313
          %v1317 = vmul.f32 %v1308, %v1313
          %v1319 = vlaneseq
          %v1320 = vshrl.u32 %v1319, 7
          %v1321 = vsub.s32 0, %v1320
          %v1322 = vrot.slane %v1272, %v1321
          %v1324 = vadd.f32 %v1315, %v1322
          %v1325 = vadd.f32 %v1316, %v1322
          %v1326 = vadd.f32 %v1317, %v1322
          %1327 = vst [vmem:[#allocation2] sm:$0xff] %v1324
          %1328 = vst [vmem:[#allocation2 + $0x8] sm:$0xff] %v1325
          %1329 = vst [vmem:[#allocation2 + $0x10] sm:$0x1] %v1326
        $region164: #{visual_model_forward.1} parent=107 // pred_fallthru
          _
        %v1330 = vld [vmem:[#allocation2] sm:$0xff]
        %v1331 = vld [vmem:[#allocation2 + $0x8] sm:$0xff]
        %v1332 = vld [vmem:[#allocation2 + $0x10] sm:$0x1]
        %v1333 = vld [vmem:[%s1072] sm:$0x1]
        %v1334 = vld [vmem:[%s1075] sm:$0x1]
        %1335 = vadd.xlane.f32.xlu0 %v1330
        %v1336 = vpop.xlane.xlu0 %1335
        %1337 = vadd.xlane.f32.xlu0 %v1331
        %v1338 = vpop.xlane.xlu0 %1337
        %vm1339 = vcmask 1040384
        %v1340 = vsel %vm1339, %v1332, 0.0
        %1341 = vadd.xlane.f32.xlu0 %v1340
        %v1342 = vpop.xlane.xlu0 %1341
        %v1343 = vrcp.pop 128.0
        %v1344 = vmul.f32 %v1336, %v1343
        %v1345 = vmul.f32 %v1338, %v1343
        %v1346 = vmul.f32 %v1342, %v1343
        %v1347 = vsub.f32 %v1330, %v1344
        %v1348 = vsub.f32 %v1331, %v1345
        %v1349 = vsub.f32 %v1332, %v1346
        %v1350 = vmul.f32 %v1347, %v1347
        %v1351 = vmul.f32 %v1348, %v1348
        %v1352 = vmul.f32 %v1349, %v1349
        %1353 = vadd.xlane.f32.xlu0 %v1350
        %v1354 = vpop.xlane.xlu0 %1353
        %1355 = vadd.xlane.f32.xlu0 %v1351
        %v1356 = vpop.xlane.xlu0 %1355
        %v1357 = vsel %vm1339, %v1352, 0.0
        %1358 = vadd.xlane.f32.xlu0 %v1357
        %v1359 = vpop.xlane.xlu0 %1358
        %v1360 = vmul.f32 %v1354, %v1343
        %v1361 = vmul.f32 %v1356, %v1343
        %v1362 = vmul.f32 %v1359, %v1343
        %v1363 = vadd.f32 %v1360, 1e-05
        %v1364 = vadd.f32 %v1361, 1e-05
        %v1365 = vadd.f32 %v1362, 1e-05
        %v1366 = vrsqrt.pop %v1363
        %v1367 = vrsqrt.pop %v1364
        %v1368 = vrsqrt.pop %v1365
        %v1369 = vmul.f32 %v1347, %v1366
        %v1370 = vmul.f32 %v1348, %v1367
        %v1371 = vmul.f32 %v1349, %v1368
        %v1373 = vlaneseq
        %v1374 = vshrl.u32 %v1373, 7
        %v1375 = vsub.s32 0, %v1374
        %v1376 = vrot.slane %v1333, %v1375
        %v1378 = vmul.f32 %v1369, %v1376
        %v1379 = vmul.f32 %v1370, %v1376
        %v1380 = vmul.f32 %v1371, %v1376
        %v1382 = vlaneseq
        %v1383 = vshrl.u32 %v1382, 7
        %v1384 = vsub.s32 0, %v1383
        %v1385 = vrot.slane %v1334, %v1384
        %v1387 = vadd.f32 %v1378, %v1385
        %v1388 = vadd.f32 %v1379, %v1385
        %v1389 = vadd.f32 %v1380, %v1385
        %v1390 = vpack.c.bf16 %v1388, %v1387
        %v1391 = vpack.c.bf16 %v1389, %v1389
        %v1392 = vld [vmem:[%s1080] sm:$0xff]
        %v1393 = vld [vmem:[%s1080 + $0x8] sm:$0xff]
        %v1394 = vld [vmem:[%s1080 + $0x10] sm:$0xff]
        %v1395 = vld [vmem:[%s1080 + $0x18] sm:$0xff]
        %v1396 = vld [vmem:[%s1080 + $0x20] sm:$0xff]
        %v1397 = vld [vmem:[%s1080 + $0x28] sm:$0xff]
        %v1398 = vld [vmem:[%s1080 + $0x30] sm:$0xff]
        %v1399 = vld [vmem:[%s1080 + $0x38] sm:$0xff]
        %v1400 = vld [vmem:[%s1080 + $0x40] sm:$0xff]
        %v1401 = vld [vmem:[%s1080 + $0x48] sm:$0xff]
        %v1402 = vld [vmem:[%s1080 + $0x50] sm:$0xff]
        %v1403 = vld [vmem:[%s1080 + $0x58] sm:$0xff]
        %v1404 = vld [vmem:[%s1080 + $0x60] sm:$0xff]
        %v1405 = vld [vmem:[%s1080 + $0x68] sm:$0xff]
        %v1406 = vld [vmem:[%s1080 + $0x70] sm:$0xff]
        %v1407 = vld [vmem:[%s1080 + $0x78] sm:$0xff]
        %v1408 = vld [vmem:[%s1080 + $0x80] sm:$0xff]
        %v1409 = vld [vmem:[%s1080 + $0x88] sm:$0xff]
        %v1410 = vld [vmem:[%s1080 + $0x90] sm:$0xff]
        %v1411 = vld [vmem:[%s1080 + $0x98] sm:$0xff]
        %v1412 = vld [vmem:[%s1080 + $0xa0] sm:$0xff]
        %v1413 = vld [vmem:[%s1080 + $0xa8] sm:$0xff]
        %v1414 = vld [vmem:[%s1080 + $0xb0] sm:$0xff]
        %v1415 = vld [vmem:[%s1080 + $0xb8] sm:$0xff]
        %v1416 = vld [vmem:[%s1080 + $0xc0] sm:$0xff]
        %v1417 = vld [vmem:[%s1080 + $0xc8] sm:$0xff]
        %v1418 = vld [vmem:[%s1080 + $0xd0] sm:$0xff]
        %v1419 = vld [vmem:[%s1080 + $0xd8] sm:$0xff]
        %v1420 = vld [vmem:[%s1080 + $0xe0] sm:$0xff]
        %v1421 = vld [vmem:[%s1080 + $0xe8] sm:$0xff]
        %v1422 = vld [vmem:[%s1080 + $0xf0] sm:$0xff]
        %v1423 = vld [vmem:[%s1080 + $0xf8] sm:$0xff]
        %v1424 = vld [vmem:[%s1080 + $0x100] sm:$0xff]
        %v1425 = vld [vmem:[%s1080 + $0x108] sm:$0xff]
        %v1426 = vld [vmem:[%s1080 + $0x110] sm:$0xff]
        %v1427 = vld [vmem:[%s1080 + $0x118] sm:$0xff]
        %v1428 = vld [vmem:[%s1080 + $0x120] sm:$0xff]
        %v1429 = vld [vmem:[%s1080 + $0x128] sm:$0xff]
        %v1430 = vld [vmem:[%s1080 + $0x130] sm:$0xff]
        %v1431 = vld [vmem:[%s1080 + $0x138] sm:$0xff]
        %v1432 = vld [vmem:[%s1080 + $0x140] sm:$0xff]
        %v1433 = vld [vmem:[%s1080 + $0x148] sm:$0xff]
        %v1434 = vld [vmem:[%s1080 + $0x150] sm:$0xff]
        %v1435 = vld [vmem:[%s1080 + $0x158] sm:$0xff]
        %v1436 = vld [vmem:[%s1080 + $0x160] sm:$0xff]
        %v1437 = vld [vmem:[%s1080 + $0x168] sm:$0xff]
        %v1438 = vld [vmem:[%s1080 + $0x170] sm:$0xff]
        %v1439 = vld [vmem:[%s1080 + $0x178] sm:$0xff]
        %v1440 = vld [vmem:[%s1080 + $0x180] sm:$0xff]
        %v1441 = vld [vmem:[%s1080 + $0x188] sm:$0xff]
        %v1442 = vld [vmem:[%s1080 + $0x190] sm:$0xff]
        %v1443 = vld [vmem:[%s1080 + $0x198] sm:$0xff]
        %v1444 = vld [vmem:[%s1080 + $0x1a0] sm:$0xff]
        %v1445 = vld [vmem:[%s1080 + $0x1a8] sm:$0xff]
        %v1446 = vld [vmem:[%s1080 + $0x1b0] sm:$0xff]
        %v1447 = vld [vmem:[%s1080 + $0x1b8] sm:$0xff]
        %v1448 = vld [vmem:[%s1080 + $0x1c0] sm:$0xff]
        %v1449 = vld [vmem:[%s1080 + $0x1c8] sm:$0xff]
        %v1450 = vld [vmem:[%s1080 + $0x1d0] sm:$0xff]
        %v1451 = vld [vmem:[%s1080 + $0x1d8] sm:$0xff]
        %v1452 = vld [vmem:[%s1080 + $0x1e0] sm:$0xff]
        %v1453 = vld [vmem:[%s1080 + $0x1e8] sm:$0xff]
        %v1454 = vld [vmem:[%s1080 + $0x1f0] sm:$0xff]
        %v1455 = vld [vmem:[%s1080 + $0x1f8] sm:$0xff]
        %v1456 = vld [vmem:[%s1080 + $0x200] sm:$0xff]
        %v1457 = vld [vmem:[%s1080 + $0x208] sm:$0xff]
        %v1458 = vld [vmem:[%s1080 + $0x210] sm:$0xff]
        %v1459 = vld [vmem:[%s1080 + $0x218] sm:$0xff]
        %v1460 = vld [vmem:[%s1080 + $0x220] sm:$0xff]
        %v1461 = vld [vmem:[%s1080 + $0x228] sm:$0xff]
        %v1462 = vld [vmem:[%s1080 + $0x230] sm:$0xff]
        %v1463 = vld [vmem:[%s1080 + $0x238] sm:$0xff]
        %v1464 = vld [vmem:[%s1080 + $0x240] sm:$0xff]
        %v1465 = vld [vmem:[%s1080 + $0x248] sm:$0xff]
        %v1466 = vld [vmem:[%s1080 + $0x250] sm:$0xff]
        %v1467 = vld [vmem:[%s1080 + $0x258] sm:$0xff]
        %v1468 = vld [vmem:[%s1080 + $0x260] sm:$0xff]
        %v1469 = vld [vmem:[%s1080 + $0x268] sm:$0xff]
        %v1470 = vld [vmem:[%s1080 + $0x270] sm:$0xff]
        %v1471 = vld [vmem:[%s1080 + $0x278] sm:$0xff]
        %v1472 = vld [vmem:[%s1080 + $0x280] sm:$0xff]
        %v1473 = vld [vmem:[%s1080 + $0x288] sm:$0xff]
        %v1474 = vld [vmem:[%s1080 + $0x290] sm:$0xff]
        %v1475 = vld [vmem:[%s1080 + $0x298] sm:$0xff]
        %v1476 = vld [vmem:[%s1080 + $0x2a0] sm:$0xff]
        %v1477 = vld [vmem:[%s1080 + $0x2a8] sm:$0xff]
        %v1478 = vld [vmem:[%s1080 + $0x2b0] sm:$0xff]
        %v1479 = vld [vmem:[%s1080 + $0x2b8] sm:$0xff]
        %v1480 = vld [vmem:[%s1080 + $0x2c0] sm:$0xff]
        %v1481 = vld [vmem:[%s1080 + $0x2c8] sm:$0xff]
        %v1482 = vld [vmem:[%s1080 + $0x2d0] sm:$0xff]
        %v1483 = vld [vmem:[%s1080 + $0x2d8] sm:$0xff]
        %v1484 = vld [vmem:[%s1080 + $0x2e0] sm:$0xff]
        %v1485 = vld [vmem:[%s1080 + $0x2e8] sm:$0xff]
        %v1486 = vld [vmem:[%s1080 + $0x2f0] sm:$0xff]
        %v1487 = vld [vmem:[%s1080 + $0x2f8] sm:$0xff]
        %v1488 = vld [vmem:[%s896] sm:$0xff]
        %v1489 = vld [vmem:[%s896 + $0x8] sm:$0xf]
        %v1492 = vlaneseq
        %v1493 = vshrl.u32 %v1492, 7
        %v1494 = vsub.s32 0, %v1493
        %v1495 = vrot.slane %v1488, %v1494
        %v1496 = vlaneseq
        %v1497 = vshrl.u32 %v1496, 7
        %v1498 = vsub.s32 1, %v1497
        %v1499 = vrot.slane %v1488, %v1498
        %v1500 = vlaneseq
        %v1501 = vshrl.u32 %v1500, 7
        %v1502 = vsub.s32 2, %v1501
        %v1503 = vrot.slane %v1488, %v1502
        %v1504 = vlaneseq
        %v1505 = vshrl.u32 %v1504, 7
        %v1506 = vsub.s32 3, %v1505
        %v1507 = vrot.slane %v1488, %v1506
        %v1508 = vlaneseq
        %v1509 = vshrl.u32 %v1508, 7
        %v1510 = vsub.s32 4, %v1509
        %v1511 = vrot.slane %v1488, %v1510
        %v1512 = vlaneseq
        %v1513 = vshrl.u32 %v1512, 7
        %v1514 = vsub.s32 5, %v1513
        %v1515 = vrot.slane %v1488, %v1514
        %v1516 = vlaneseq
        %v1517 = vshrl.u32 %v1516, 7
        %v1518 = vsub.s32 6, %v1517
        %v1519 = vrot.slane %v1488, %v1518
        %v1520 = vlaneseq
        %v1521 = vshrl.u32 %v1520, 7
        %v1522 = vsub.s32 7, %v1521
        %v1523 = vrot.slane %v1488, %v1522
        %v1524 = vlaneseq
        %v1525 = vshrl.u32 %v1524, 7
        %v1526 = vsub.s32 0, %v1525
        %v1527 = vrot.slane %v1489, %v1526
        %v1528 = vlaneseq
        %v1529 = vshrl.u32 %v1528, 7
        %v1530 = vsub.s32 1, %v1529
        %v1531 = vrot.slane %v1489, %v1530
        %v1532 = vlaneseq
        %v1533 = vshrl.u32 %v1532, 7
        %v1534 = vsub.s32 2, %v1533
        %v1535 = vrot.slane %v1489, %v1534
        %v1536 = vlaneseq
        %v1537 = vshrl.u32 %v1536, 7
        %v1538 = vsub.s32 3, %v1537
        %v1539 = vrot.slane %v1489, %v1538
        %v1648 = vunpack.c.l.b16 %v1392
        %v1649 = vunpack.c.h.b16 %v1392
        %v1650 = vunpack.c.l.b16 %v1393
        %v1651 = vunpack.c.h.b16 %v1393
        %v1652 = vunpack.c.l.b16 %v1394
        %v1653 = vunpack.c.h.b16 %v1394
        %v1654 = vunpack.c.l.b16 %v1395
        %v1655 = vunpack.c.h.b16 %v1395
        %v1656 = vunpack.c.l.b16 %v1396
        %v1657 = vunpack.c.h.b16 %v1396
        %v1658 = vunpack.c.l.b16 %v1397
        %v1659 = vunpack.c.h.b16 %v1397
        %v1660 = vunpack.c.l.b16 %v1398
        %v1661 = vunpack.c.h.b16 %v1398
        %v1662 = vunpack.c.l.b16 %v1399
        %v1663 = vunpack.c.h.b16 %v1399
        %v1664 = vunpack.c.l.b16 %v1400
        %v1665 = vunpack.c.h.b16 %v1400
        %v1666 = vunpack.c.l.b16 %v1401
        %v1667 = vunpack.c.h.b16 %v1401
        %v1668 = vunpack.c.l.b16 %v1402
        %v1669 = vunpack.c.h.b16 %v1402
        %v1670 = vunpack.c.l.b16 %v1403
        %v1671 = vunpack.c.h.b16 %v1403
        %v1672 = vunpack.c.l.b16 %v1404
        %v1673 = vunpack.c.h.b16 %v1404
        %v1674 = vunpack.c.l.b16 %v1405
        %v1675 = vunpack.c.h.b16 %v1405
        %v1676 = vunpack.c.l.b16 %v1406
        %v1677 = vunpack.c.h.b16 %v1406
        %v1678 = vunpack.c.l.b16 %v1407
        %v1679 = vunpack.c.h.b16 %v1407
        %v1680 = vunpack.c.l.b16 %v1408
        %v1681 = vunpack.c.h.b16 %v1408
        %v1682 = vunpack.c.l.b16 %v1409
        %v1683 = vunpack.c.h.b16 %v1409
        %v1684 = vunpack.c.l.b16 %v1410
        %v1685 = vunpack.c.h.b16 %v1410
        %v1686 = vunpack.c.l.b16 %v1411
        %v1687 = vunpack.c.h.b16 %v1411
        %v1688 = vunpack.c.l.b16 %v1412
        %v1689 = vunpack.c.h.b16 %v1412
        %v1690 = vunpack.c.l.b16 %v1413
        %v1691 = vunpack.c.h.b16 %v1413
        %v1692 = vunpack.c.l.b16 %v1414
        %v1693 = vunpack.c.h.b16 %v1414
        %v1694 = vunpack.c.l.b16 %v1415
        %v1695 = vunpack.c.h.b16 %v1415
        %v1696 = vunpack.c.l.b16 %v1416
        %v1697 = vunpack.c.h.b16 %v1416
        %v1698 = vunpack.c.l.b16 %v1417
        %v1699 = vunpack.c.h.b16 %v1417
        %v1700 = vunpack.c.l.b16 %v1418
        %v1701 = vunpack.c.h.b16 %v1418
        %v1702 = vunpack.c.l.b16 %v1419
        %v1703 = vunpack.c.h.b16 %v1419
        %v1704 = vunpack.c.l.b16 %v1420
        %v1705 = vunpack.c.h.b16 %v1420
        %v1706 = vunpack.c.l.b16 %v1421
        %v1707 = vunpack.c.h.b16 %v1421
        %v1708 = vunpack.c.l.b16 %v1422
        %v1709 = vunpack.c.h.b16 %v1422
        %v1710 = vunpack.c.l.b16 %v1423
        %v1711 = vunpack.c.h.b16 %v1423
        %v1712 = vunpack.c.l.b16 %v1424
        %v1713 = vunpack.c.h.b16 %v1424
        %v1714 = vunpack.c.l.b16 %v1425
        %v1715 = vunpack.c.h.b16 %v1425
        %v1716 = vunpack.c.l.b16 %v1426
        %v1717 = vunpack.c.h.b16 %v1426
        %v1718 = vunpack.c.l.b16 %v1427
        %v1719 = vunpack.c.h.b16 %v1427
        %v1720 = vunpack.c.l.b16 %v1428
        %v1721 = vunpack.c.h.b16 %v1428
        %v1722 = vunpack.c.l.b16 %v1429
        %v1723 = vunpack.c.h.b16 %v1429
        %v1724 = vunpack.c.l.b16 %v1430
        %v1725 = vunpack.c.h.b16 %v1430
        %v1726 = vunpack.c.l.b16 %v1431
        %v1727 = vunpack.c.h.b16 %v1431
        %v1728 = vunpack.c.l.b16 %v1432
        %v1729 = vunpack.c.h.b16 %v1432
        %v1730 = vunpack.c.l.b16 %v1433
        %v1731 = vunpack.c.h.b16 %v1433
        %v1732 = vunpack.c.l.b16 %v1434
        %v1733 = vunpack.c.h.b16 %v1434
        %v1734 = vunpack.c.l.b16 %v1435
        %v1735 = vunpack.c.h.b16 %v1435
        %v1736 = vunpack.c.l.b16 %v1436
        %v1737 = vunpack.c.h.b16 %v1436
        %v1738 = vunpack.c.l.b16 %v1437
        %v1739 = vunpack.c.h.b16 %v1437
        %v1740 = vunpack.c.l.b16 %v1438
        %v1741 = vunpack.c.h.b16 %v1438
        %v1742 = vunpack.c.l.b16 %v1439
        %v1743 = vunpack.c.h.b16 %v1439
        %v1744 = vunpack.c.l.b16 %v1440
        %v1745 = vunpack.c.h.b16 %v1440
        %v1746 = vunpack.c.l.b16 %v1441
        %v1747 = vunpack.c.h.b16 %v1441
        %v1748 = vunpack.c.l.b16 %v1442
        %v1749 = vunpack.c.h.b16 %v1442
        %v1750 = vunpack.c.l.b16 %v1443
        %v1751 = vunpack.c.h.b16 %v1443
        %v1752 = vunpack.c.l.b16 %v1444
        %v1753 = vunpack.c.h.b16 %v1444
        %v1754 = vunpack.c.l.b16 %v1445
        %v1755 = vunpack.c.h.b16 %v1445
        %v1756 = vunpack.c.l.b16 %v1446
        %v1757 = vunpack.c.h.b16 %v1446
        %v1758 = vunpack.c.l.b16 %v1447
        %v1759 = vunpack.c.h.b16 %v1447
        %v1760 = vunpack.c.l.b16 %v1448
        %v1761 = vunpack.c.h.b16 %v1448
        %v1762 = vunpack.c.l.b16 %v1449
        %v1763 = vunpack.c.h.b16 %v1449
        %v1764 = vunpack.c.l.b16 %v1450
        %v1765 = vunpack.c.h.b16 %v1450
        %v1766 = vunpack.c.l.b16 %v1451
        %v1767 = vunpack.c.h.b16 %v1451
        %v1768 = vunpack.c.l.b16 %v1452
        %v1769 = vunpack.c.h.b16 %v1452
        %v1770 = vunpack.c.l.b16 %v1453
        %v1771 = vunpack.c.h.b16 %v1453
        %v1772 = vunpack.c.l.b16 %v1454
        %v1773 = vunpack.c.h.b16 %v1454
        %v1774 = vunpack.c.l.b16 %v1455
        %v1775 = vunpack.c.h.b16 %v1455
        %v1776 = vunpack.c.l.b16 %v1456
        %v1777 = vunpack.c.h.b16 %v1456
        %v1778 = vunpack.c.l.b16 %v1457
        %v1779 = vunpack.c.h.b16 %v1457
        %v1780 = vunpack.c.l.b16 %v1458
        %v1781 = vunpack.c.h.b16 %v1458
        %v1782 = vunpack.c.l.b16 %v1459
        %v1783 = vunpack.c.h.b16 %v1459
        %v1784 = vunpack.c.l.b16 %v1460
        %v1785 = vunpack.c.h.b16 %v1460
        %v1786 = vunpack.c.l.b16 %v1461
        %v1787 = vunpack.c.h.b16 %v1461
        %v1788 = vunpack.c.l.b16 %v1462
        %v1789 = vunpack.c.h.b16 %v1462
        %v1790 = vunpack.c.l.b16 %v1463
        %v1791 = vunpack.c.h.b16 %v1463
        %v1792 = vunpack.c.l.b16 %v1464
        %v1793 = vunpack.c.h.b16 %v1464
        %v1794 = vunpack.c.l.b16 %v1465
        %v1795 = vunpack.c.h.b16 %v1465
        %v1796 = vunpack.c.l.b16 %v1466
        %v1797 = vunpack.c.h.b16 %v1466
        %v1798 = vunpack.c.l.b16 %v1467
        %v1799 = vunpack.c.h.b16 %v1467
        %v1800 = vunpack.c.l.b16 %v1468
        %v1801 = vunpack.c.h.b16 %v1468
        %v1802 = vunpack.c.l.b16 %v1469
        %v1803 = vunpack.c.h.b16 %v1469
        %v1804 = vunpack.c.l.b16 %v1470
        %v1805 = vunpack.c.h.b16 %v1470
        %v1806 = vunpack.c.l.b16 %v1471
        %v1807 = vunpack.c.h.b16 %v1471
        %v1808 = vunpack.c.l.b16 %v1472
        %v1809 = vunpack.c.h.b16 %v1472
        %v1810 = vunpack.c.l.b16 %v1473
        %v1811 = vunpack.c.h.b16 %v1473
        %v1812 = vunpack.c.l.b16 %v1474
        %v1813 = vunpack.c.h.b16 %v1474
        %v1814 = vunpack.c.l.b16 %v1475
        %v1815 = vunpack.c.h.b16 %v1475
        %v1816 = vunpack.c.l.b16 %v1476
        %v1817 = vunpack.c.h.b16 %v1476
        %v1818 = vunpack.c.l.b16 %v1477
        %v1819 = vunpack.c.h.b16 %v1477
        %v1820 = vunpack.c.l.b16 %v1478
        %v1821 = vunpack.c.h.b16 %v1478
        %v1822 = vunpack.c.l.b16 %v1479
        %v1823 = vunpack.c.h.b16 %v1479
        %v1824 = vunpack.c.l.b16 %v1480
        %v1825 = vunpack.c.h.b16 %v1480
        %v1826 = vunpack.c.l.b16 %v1481
        %v1827 = vunpack.c.h.b16 %v1481
        %v1828 = vunpack.c.l.b16 %v1482
        %v1829 = vunpack.c.h.b16 %v1482
        %v1830 = vunpack.c.l.b16 %v1483
        %v1831 = vunpack.c.h.b16 %v1483
        %v1832 = vunpack.c.l.b16 %v1484
        %v1833 = vunpack.c.h.b16 %v1484
        %v1834 = vunpack.c.l.b16 %v1485
        %v1835 = vunpack.c.h.b16 %v1485
        %v1836 = vunpack.c.l.b16 %v1486
        %v1837 = vunpack.c.h.b16 %v1486
        %v1838 = vunpack.c.l.b16 %v1487
        %v1839 = vunpack.c.h.b16 %v1487
        %v1840 = vpack.c.b16 %v1660, %v1648
        %v1841 = vpack.c.b16 %v1661, %v1649
        %v1842 = vpack.c.b16 %v1662, %v1650
        %v1843 = vpack.c.b16 %v1663, %v1651
        %v1844 = vpack.c.b16 %v1664, %v1652
        %v1845 = vpack.c.b16 %v1665, %v1653
        %v1846 = vpack.c.b16 %v1666, %v1654
        %v1847 = vpack.c.b16 %v1667, %v1655
        %v1848 = vpack.c.b16 %v1668, %v1656
        %v1849 = vpack.c.b16 %v1669, %v1657
        %v1850 = vpack.c.b16 %v1670, %v1658
        %v1851 = vpack.c.b16 %v1671, %v1659
        %v1852 = vpack.c.b16 %v1684, %v1672
        %v1853 = vpack.c.b16 %v1685, %v1673
        %v1854 = vpack.c.b16 %v1686, %v1674
        %v1855 = vpack.c.b16 %v1687, %v1675
        %v1856 = vpack.c.b16 %v1688, %v1676
        %v1857 = vpack.c.b16 %v1689, %v1677
        %v1858 = vpack.c.b16 %v1690, %v1678
        %v1859 = vpack.c.b16 %v1691, %v1679
        %v1860 = vpack.c.b16 %v1692, %v1680
        %v1861 = vpack.c.b16 %v1693, %v1681
        %v1862 = vpack.c.b16 %v1694, %v1682
        %v1863 = vpack.c.b16 %v1695, %v1683
        %v1864 = vpack.c.b16 %v1708, %v1696
        %v1865 = vpack.c.b16 %v1709, %v1697
        %v1866 = vpack.c.b16 %v1710, %v1698
        %v1867 = vpack.c.b16 %v1711, %v1699
        %v1868 = vpack.c.b16 %v1712, %v1700
        %v1869 = vpack.c.b16 %v1713, %v1701
        %v1870 = vpack.c.b16 %v1714, %v1702
        %v1871 = vpack.c.b16 %v1715, %v1703
        %v1872 = vpack.c.b16 %v1716, %v1704
        %v1873 = vpack.c.b16 %v1717, %v1705
        %v1874 = vpack.c.b16 %v1718, %v1706
        %v1875 = vpack.c.b16 %v1719, %v1707
        %v1876 = vpack.c.b16 %v1732, %v1720
        %v1877 = vpack.c.b16 %v1733, %v1721
        %v1878 = vpack.c.b16 %v1734, %v1722
        %v1879 = vpack.c.b16 %v1735, %v1723
        %v1880 = vpack.c.b16 %v1736, %v1724
        %v1881 = vpack.c.b16 %v1737, %v1725
        %v1882 = vpack.c.b16 %v1738, %v1726
        %v1883 = vpack.c.b16 %v1739, %v1727
        %v1884 = vpack.c.b16 %v1740, %v1728
        %v1885 = vpack.c.b16 %v1741, %v1729
        %v1886 = vpack.c.b16 %v1742, %v1730
        %v1887 = vpack.c.b16 %v1743, %v1731
        %v1888 = vpack.c.b16 %v1756, %v1744
        %v1889 = vpack.c.b16 %v1757, %v1745
        %v1890 = vpack.c.b16 %v1758, %v1746
        %v1891 = vpack.c.b16 %v1759, %v1747
        %v1892 = vpack.c.b16 %v1760, %v1748
        %v1893 = vpack.c.b16 %v1761, %v1749
        %v1894 = vpack.c.b16 %v1762, %v1750
        %v1895 = vpack.c.b16 %v1763, %v1751
        %v1896 = vpack.c.b16 %v1764, %v1752
        %v1897 = vpack.c.b16 %v1765, %v1753
        %v1898 = vpack.c.b16 %v1766, %v1754
        %v1899 = vpack.c.b16 %v1767, %v1755
        %v1900 = vpack.c.b16 %v1780, %v1768
        %v1901 = vpack.c.b16 %v1781, %v1769
        %v1902 = vpack.c.b16 %v1782, %v1770
        %v1903 = vpack.c.b16 %v1783, %v1771
        %v1904 = vpack.c.b16 %v1784, %v1772
        %v1905 = vpack.c.b16 %v1785, %v1773
        %v1906 = vpack.c.b16 %v1786, %v1774
        %v1907 = vpack.c.b16 %v1787, %v1775
        %v1908 = vpack.c.b16 %v1788, %v1776
        %v1909 = vpack.c.b16 %v1789, %v1777
        %v1910 = vpack.c.b16 %v1790, %v1778
        %v1911 = vpack.c.b16 %v1791, %v1779
        %v1912 = vpack.c.b16 %v1804, %v1792
        %v1913 = vpack.c.b16 %v1805, %v1793
        %v1914 = vpack.c.b16 %v1806, %v1794
        %v1915 = vpack.c.b16 %v1807, %v1795
        %v1916 = vpack.c.b16 %v1808, %v1796
        %v1917 = vpack.c.b16 %v1809, %v1797
        %v1918 = vpack.c.b16 %v1810, %v1798
        %v1919 = vpack.c.b16 %v1811, %v1799
        %v1920 = vpack.c.b16 %v1812, %v1800
        %v1921 = vpack.c.b16 %v1813, %v1801
        %v1922 = vpack.c.b16 %v1814, %v1802
        %v1923 = vpack.c.b16 %v1815, %v1803
        %v1924 = vpack.c.b16 %v1828, %v1816
        %v1925 = vpack.c.b16 %v1829, %v1817
        %v1926 = vpack.c.b16 %v1830, %v1818
        %v1927 = vpack.c.b16 %v1831, %v1819
        %v1928 = vpack.c.b16 %v1832, %v1820
        %v1929 = vpack.c.b16 %v1833, %v1821
        %v1930 = vpack.c.b16 %v1834, %v1822
        %v1931 = vpack.c.b16 %v1835, %v1823
        %v1932 = vpack.c.b16 %v1836, %v1824
        %v1933 = vpack.c.b16 %v1837, %v1825
        %v1934 = vpack.c.b16 %v1838, %v1826
        %v1935 = vpack.c.b16 %v1839, %v1827
        %2032 = vmatprep.subr.bf16.mxu0 %v1841
        %2033 = vmatpush1.bf16.msra.mxu0 %v1840
        %2034 = vmatprep.subr.bf16.mxu0 %v1853
        %2035 = vmatpush1.bf16.msra.mxu0 %v1852
        %2036 = vmatprep.subr.bf16.mxu0 %v1865
        %2037 = vmatpush1.bf16.msra.mxu0 %v1864
        %2038 = vmatprep.subr.bf16.mxu0 %v1877
        %2039 = vmatpush1.bf16.msra.mxu0 %v1876
        %2040 = vmatprep.subr.bf16.mxu0 %v1889
        %2041 = vmatpush1.bf16.msra.mxu0 %v1888
        %2042 = vmatprep.subr.bf16.mxu0 %v1901
        %2043 = vmatpush1.bf16.msra.mxu0 %v1900
        %2044 = vmatprep.subr.bf16.mxu0 %v1913
        %2045 = vmatpush1.bf16.msra.mxu0 %v1912
        %2046 = vmatprep.subr.bf16.mxu0 %v1925
        %2047 = vmatpush1.bf16.msra.mxu0 %v1924
        %2048 = vmatprep.subr.bf16.mxu0 0
        %2049 = vmatpush1.bf16.msra.mxu0 0
        %2050 = vmatprep.subr.bf16.mxu0 0
        %2051 = vmatpush1.bf16.msra.mxu0 0
        %2052 = vmatprep.subr.bf16.mxu0 0
        %2053 = vmatpush1.bf16.msra.mxu0 0
        %2054 = vmatprep.subr.bf16.mxu0 0
        %2055 = vmatpush1.bf16.msra.mxu0 0
        %2056 = vmatprep.subr.bf16.mxu0 0
        %2057 = vmatpush1.bf16.msra.mxu0 0
        %2058 = vmatprep.subr.bf16.mxu0 0
        %2059 = vmatpush1.bf16.msra.mxu0 0
        %2060 = vmatprep.subr.bf16.mxu0 0
        %2061 = vmatpush1.bf16.msra.mxu0 0
        %2062 = vmatprep.subr.bf16.mxu0 0
        %2063 = vmatpush1.bf16.msra.mxu0 0
        %2064 = vmatprep.mubr.bf16.mxu0 0
        %2065 = vmatmul.mubr.bf16.gmra.mrb[0].mxu0 %v1390
        %v2066 = vpop.f32.mrb[0].mxu0
        %v2067 = vadd.f32 %v1495, %v2066
        %v2068 = vpop.f32.mrb[0].mxu0
        %v2069 = vadd.f32 %v1499, %v2068
        %v2070 = vpop.f32.mrb[0].mxu0
        %v2071 = vadd.f32 %v1495, %v2070
        %v2072 = vpop.f32.mrb[0].mxu0
        %v2073 = vadd.f32 %v1499, %v2072
        %2074 = vmatprep.mubr.bf16.mxu0 0
        %2075 = vmatmul.mubr.bf16.gmra.mrb[0].mxu0 %v1391
        %v2076 = vpop.f32.mrb[0].mxu0
        %v2077 = vadd.f32 %v1495, %v2076
        %v2078 = vpop.f32.mrb[0].mxu0
        %v2079 = vadd.f32 %v1499, %v2078
        %v2080 = vpop.f32.mrb[0].mxu0
        %v2081 = vpop.f32.mrb[0].mxu0
        %2082 = vdwg.mxu0
        %2083 = vmatprep.subr.bf16.mxu0 %v1843
        %2084 = vmatpush1.bf16.msra.mxu0 %v1842
        %2085 = vmatprep.subr.bf16.mxu0 %v1855
        %2086 = vmatpush1.bf16.msra.mxu0 %v1854
        %2087 = vmatprep.subr.bf16.mxu0 %v1867
        %2088 = vmatpush1.bf16.msra.mxu0 %v1866
        %2089 = vmatprep.subr.bf16.mxu0 %v1879
        %2090 = vmatpush1.bf16.msra.mxu0 %v1878
        %2091 = vmatprep.subr.bf16.mxu0 %v1891
        %2092 = vmatpush1.bf16.msra.mxu0 %v1890
        %2093 = vmatprep.subr.bf16.mxu0 %v1903
        %2094 = vmatpush1.bf16.msra.mxu0 %v1902
        %2095 = vmatprep.subr.bf16.mxu0 %v1915
        %2096 = vmatpush1.bf16.msra.mxu0 %v1914
        %2097 = vmatprep.subr.bf16.mxu0 %v1927
        %2098 = vmatpush1.bf16.msra.mxu0 %v1926
        %2099 = vmatprep.subr.bf16.mxu0 0
        %2100 = vmatpush1.bf16.msra.mxu0 0
        %2101 = vmatprep.subr.bf16.mxu0 0
        %2102 = vmatpush1.bf16.msra.mxu0 0
        %2103 = vmatprep.subr.bf16.mxu0 0
        %2104 = vmatpush1.bf16.msra.mxu0 0
        %2105 = vmatprep.subr.bf16.mxu0 0
        %2106 = vmatpush1.bf16.msra.mxu0 0
        %2107 = vmatprep.subr.bf16.mxu0 0
        %2108 = vmatpush1.bf16.msra.mxu0 0
        %2109 = vmatprep.subr.bf16.mxu0 0
        %2110 = vmatpush1.bf16.msra.mxu0 0
        %2111 = vmatprep.subr.bf16.mxu0 0
        %2112 = vmatpush1.bf16.msra.mxu0 0
        %2113 = vmatprep.subr.bf16.mxu0 0
        %2114 = vmatpush1.bf16.msra.mxu0 0
        %2115 = vmatprep.mubr.bf16.mxu0 0
        %2116 = vmatmul.mubr.bf16.gmra.mrb[0].mxu0 %v1390
        %v2117 = vpop.f32.mrb[0].mxu0
        %v2118 = vadd.f32 %v1503, %v2117
        %v2119 = vpop.f32.mrb[0].mxu0
        %v2120 = vadd.f32 %v1507, %v2119
        %v2121 = vpop.f32.mrb[0].mxu0
        %v2122 = vadd.f32 %v1503, %v2121
        %v2123 = vpop.f32.mrb[0].mxu0
        %v2124 = vadd.f32 %v1507, %v2123
        %2125 = vmatprep.mubr.bf16.mxu0 0
        %2126 = vmatmul.mubr.bf16.gmra.mrb[0].mxu0 %v1391
        %v2127 = vpop.f32.mrb[0].mxu0
        %v2128 = vadd.f32 %v1503, %v2127
        %v2129 = vpop.f32.mrb[0].mxu0
        %v2130 = vadd.f32 %v1507, %v2129
        %v2131 = vpop.f32.mrb[0].mxu0
        %v2132 = vpop.f32.mrb[0].mxu0
        %2133 = vdwg.mxu0
        %2134 = vmatprep.subr.bf16.mxu0 %v1845
        %2135 = vmatpush1.bf16.msra.mxu0 %v1844
        %2136 = vmatprep.subr.bf16.mxu0 %v1857
        %2137 = vmatpush1.bf16.msra.mxu0 %v1856
        %2138 = vmatprep.subr.bf16.mxu0 %v1869
        %2139 = vmatpush1.bf16.msra.mxu0 %v1868
        %2140 = vmatprep.subr.bf16.mxu0 %v1881
        %2141 = vmatpush1.bf16.msra.mxu0 %v1880
        %2142 = vmatprep.subr.bf16.mxu0 %v1893
        %2143 = vmatpush1.bf16.msra.mxu0 %v1892
        %2144 = vmatprep.subr.bf16.mxu0 %v1905
        %2145 = vmatpush1.bf16.msra.mxu0 %v1904
        %2146 = vmatprep.subr.bf16.mxu0 %v1917
        %2147 = vmatpush1.bf16.msra.mxu0 %v1916
        %2148 = vmatprep.subr.bf16.mxu0 %v1929
        %2149 = vmatpush1.bf16.msra.mxu0 %v1928
        %2150 = vmatprep.subr.bf16.mxu0 0
        %2151 = vmatpush1.bf16.msra.mxu0 0
        %2152 = vmatprep.subr.bf16.mxu0 0
        %2153 = vmatpush1.bf16.msra.mxu0 0
        %2154 = vmatprep.subr.bf16.mxu0 0
        %2155 = vmatpush1.bf16.msra.mxu0 0
        %2156 = vmatprep.subr.bf16.mxu0 0
        %2157 = vmatpush1.bf16.msra.mxu0 0
        %2158 = vmatprep.subr.bf16.mxu0 0
        %2159 = vmatpush1.bf16.msra.mxu0 0
        %2160 = vmatprep.subr.bf16.mxu0 0
        %2161 = vmatpush1.bf16.msra.mxu0 0
        %2162 = vmatprep.subr.bf16.mxu0 0
        %2163 = vmatpush1.bf16.msra.mxu0 0
        %2164 = vmatprep.subr.bf16.mxu0 0
        %2165 = vmatpush1.bf16.msra.mxu0 0
        %2166 = vmatprep.mubr.bf16.mxu0 0
        %2167 = vmatmul.mubr.bf16.gmra.mrb[0].mxu0 %v1390
        %v2168 = vpop.f32.mrb[0].mxu0
        %v2169 = vadd.f32 %v1511, %v2168
        %v2170 = vpop.f32.mrb[0].mxu0
        %v2171 = vadd.f32 %v1515, %v2170
        %v2172 = vpop.f32.mrb[0].mxu0
        %v2173 = vadd.f32 %v1511, %v2172
        %v2174 = vpop.f32.mrb[0].mxu0
        %v2175 = vadd.f32 %v1515, %v2174
        %2176 = vmatprep.mubr.bf16.mxu0 0
        %2177 = vmatmul.mubr.bf16.gmra.mrb[0].mxu0 %v1391
        %v2178 = vpop.f32.mrb[0].mxu0
        %v2179 = vadd.f32 %v1511, %v2178
        %v2180 = vpop.f32.mrb[0].mxu0
        %v2181 = vadd.f32 %v1515, %v2180
        %v2182 = vpop.f32.mrb[0].mxu0
        %v2183 = vpop.f32.mrb[0].mxu0
        %2184 = vdwg.mxu0
        %2185 = vmatprep.subr.bf16.mxu0 %v1847
        %2186 = vmatpush1.bf16.msra.mxu0 %v1846
        %2187 = vmatprep.subr.bf16.mxu0 %v1859
        %2188 = vmatpush1.bf16.msra.mxu0 %v1858
        %2189 = vmatprep.subr.bf16.mxu0 %v1871
        %2190 = vmatpush1.bf16.msra.mxu0 %v1870
        %2191 = vmatprep.subr.bf16.mxu0 %v1883
        %2192 = vmatpush1.bf16.msra.mxu0 %v1882
        %2193 = vmatprep.subr.bf16.mxu0 %v1895
        %2194 = vmatpush1.bf16.msra.mxu0 %v1894
        %2195 = vmatprep.subr.bf16.mxu0 %v1907
        %2196 = vmatpush1.bf16.msra.mxu0 %v1906
        %2197 = vmatprep.subr.bf16.mxu0 %v1919
        %2198 = vmatpush1.bf16.msra.mxu0 %v1918
        %2199 = vmatprep.subr.bf16.mxu0 %v1931
        %2200 = vmatpush1.bf16.msra.mxu0 %v1930
        %2201 = vmatprep.subr.bf16.mxu0 0
        %2202 = vmatpush1.bf16.msra.mxu0 0
        %2203 = vmatprep.subr.bf16.mxu0 0
        %2204 = vmatpush1.bf16.msra.mxu0 0
        %2205 = vmatprep.subr.bf16.mxu0 0
        %2206 = vmatpush1.bf16.msra.mxu0 0
        %2207 = vmatprep.subr.bf16.mxu0 0
        %2208 = vmatpush1.bf16.msra.mxu0 0
        %2209 = vmatprep.subr.bf16.mxu0 0
        %2210 = vmatpush1.bf16.msra.mxu0 0
        %2211 = vmatprep.subr.bf16.mxu0 0
        %2212 = vmatpush1.bf16.msra.mxu0 0
        %2213 = vmatprep.subr.bf16.mxu0 0
        %2214 = vmatpush1.bf16.msra.mxu0 0
        %2215 = vmatprep.subr.bf16.mxu0 0
        %2216 = vmatpush1.bf16.msra.mxu0 0
        %2217 = vmatprep.mubr.bf16.mxu0 0
        %2218 = vmatmul.mubr.bf16.gmra.mrb[0].mxu0 %v1390
        %v2219 = vpop.f32.mrb[0].mxu0
        %v2220 = vadd.f32 %v1519, %v2219
        %v2221 = vpop.f32.mrb[0].mxu0
        %v2222 = vadd.f32 %v1523, %v2221
        %v2223 = vpop.f32.mrb[0].mxu0
        %v2224 = vadd.f32 %v1519, %v2223
        %v2225 = vpop.f32.mrb[0].mxu0
        %v2226 = vadd.f32 %v1523, %v2225
        %2227 = vmatprep.mubr.bf16.mxu0 0
        %2228 = vmatmul.mubr.bf16.gmra.mrb[0].mxu0 %v1391
        %v2229 = vpop.f32.mrb[0].mxu0
        %v2230 = vadd.f32 %v1519, %v2229
        %v2231 = vpop.f32.mrb[0].mxu0
        %v2232 = vadd.f32 %v1523, %v2231
        %v2233 = vpop.f32.mrb[0].mxu0
        %v2234 = vpop.f32.mrb[0].mxu0
        %2235 = vdwg.mxu0
        %2236 = vmatprep.subr.bf16.mxu0 %v1849
        %2237 = vmatpush1.bf16.msra.mxu0 %v1848
        %2238 = vmatprep.subr.bf16.mxu0 %v1861
        %2239 = vmatpush1.bf16.msra.mxu0 %v1860
        %2240 = vmatprep.subr.bf16.mxu0 %v1873
        %2241 = vmatpush1.bf16.msra.mxu0 %v1872
        %2242 = vmatprep.subr.bf16.mxu0 %v1885
        %2243 = vmatpush1.bf16.msra.mxu0 %v1884
        %2244 = vmatprep.subr.bf16.mxu0 %v1897
        %2245 = vmatpush1.bf16.msra.mxu0 %v1896
        %2246 = vmatprep.subr.bf16.mxu0 %v1909
        %2247 = vmatpush1.bf16.msra.mxu0 %v1908
        %2248 = vmatprep.subr.bf16.mxu0 %v1921
        %2249 = vmatpush1.bf16.msra.mxu0 %v1920
        %2250 = vmatprep.subr.bf16.mxu0 %v1933
        %2251 = vmatpush1.bf16.msra.mxu0 %v1932
        %2252 = vmatprep.subr.bf16.mxu0 0
        %2253 = vmatpush1.bf16.msra.mxu0 0
        %2254 = vmatprep.subr.bf16.mxu0 0
        %2255 = vmatpush1.bf16.msra.mxu0 0
        %2256 = vmatprep.subr.bf16.mxu0 0
        %2257 = vmatpush1.bf16.msra.mxu0 0
        %2258 = vmatprep.subr.bf16.mxu0 0
        %2259 = vmatpush1.bf16.msra.mxu0 0
        %2260 = vmatprep.subr.bf16.mxu0 0
        %2261 = vmatpush1.bf16.msra.mxu0 0
        %2262 = vmatprep.subr.bf16.mxu0 0
        %2263 = vmatpush1.bf16.msra.mxu0 0
        %2264 = vmatprep.subr.bf16.mxu0 0
        %2265 = vmatpush1.bf16.msra.mxu0 0
        %2266 = vmatprep.subr.bf16.mxu0 0
        %2267 = vmatpush1.bf16.msra.mxu0 0
        %2268 = vmatprep.mubr.bf16.mxu0 0
        %2269 = vmatmul.mubr.bf16.gmra.mrb[0].mxu0 %v1390
        %v2270 = vpop.f32.mrb[0].mxu0
        %v2271 = vadd.f32 %v1527, %v2270
        %v2272 = vpop.f32.mrb[0].mxu0
        %v2273 = vadd.f32 %v1531, %v2272
        %v2274 = vpop.f32.mrb[0].mxu0
        %v2275 = vadd.f32 %v1527, %v2274
        %v2276 = vpop.f32.mrb[0].mxu0
        %v2277 = vadd.f32 %v1531, %v2276
        %2278 = vmatprep.mubr.bf16.mxu0 0
        %2279 = vmatmul.mubr.bf16.gmra.mrb[0].mxu0 %v1391
        %v2280 = vpop.f32.mrb[0].mxu0
        %v2281 = vadd.f32 %v1527, %v2280
        %v2282 = vpop.f32.mrb[0].mxu0
        %v2283 = vadd.f32 %v1531, %v2282
        %v2284 = vpop.f32.mrb[0].mxu0
        %v2285 = vpop.f32.mrb[0].mxu0
        %2286 = vdwg.mxu0
        %2287 = vmatprep.subr.bf16.mxu0 %v1851
        %2288 = vmatpush1.bf16.msra.mxu0 %v1850
        %2289 = vmatprep.subr.bf16.mxu0 %v1863
        %2290 = vmatpush1.bf16.msra.mxu0 %v1862
        %2291 = vmatprep.subr.bf16.mxu0 %v1875
        %2292 = vmatpush1.bf16.msra.mxu0 %v1874
        %2293 = vmatprep.subr.bf16.mxu0 %v1887
        %2294 = vmatpush1.bf16.msra.mxu0 %v1886
        %2295 = vmatprep.subr.bf16.mxu0 %v1899
        %2296 = vmatpush1.bf16.msra.mxu0 %v1898
        %2297 = vmatprep.subr.bf16.mxu0 %v1911
        %2298 = vmatpush1.bf16.msra.mxu0 %v1910
        %2299 = vmatprep.subr.bf16.mxu0 %v1923
        %2300 = vmatpush1.bf16.msra.mxu0 %v1922
        %2301 = vmatprep.subr.bf16.mxu0 %v1935
        %2302 = vmatpush1.bf16.msra.mxu0 %v1934
        %2303 = vmatprep.subr.bf16.mxu0 0
        %2304 = vmatpush1.bf16.msra.mxu0 0
        %2305 = vmatprep.subr.bf16.mxu0 0
        %2306 = vmatpush1.bf16.msra.mxu0 0
        %2307 = vmatprep.subr.bf16.mxu0 0
        %2308 = vmatpush1.bf16.msra.mxu0 0
        %2309 = vmatprep.subr.bf16.mxu0 0
        %2310 = vmatpush1.bf16.msra.mxu0 0
        %2311 = vmatprep.subr.bf16.mxu0 0
        %2312 = vmatpush1.bf16.msra.mxu0 0
        %2313 = vmatprep.subr.bf16.mxu0 0
        %2314 = vmatpush1.bf16.msra.mxu0 0
        %2315 = vmatprep.subr.bf16.mxu0 0
        %2316 = vmatpush1.bf16.msra.mxu0 0
        %2317 = vmatprep.subr.bf16.mxu0 0
        %2318 = vmatpush1.bf16.msra.mxu0 0
        %2319 = vmatprep.mubr.bf16.mxu0 0
        %2320 = vmatmul.mubr.bf16.gmra.mrb[0].mxu0 %v1390
        %v2321 = vpop.f32.mrb[0].mxu0
        %v2322 = vadd.f32 %v1535, %v2321
        %v2323 = vpop.f32.mrb[0].mxu0
        %v2324 = vadd.f32 %v1539, %v2323
        %v2325 = vpop.f32.mrb[0].mxu0
        %v2326 = vadd.f32 %v1535, %v2325
        %v2327 = vpop.f32.mrb[0].mxu0
        %v2328 = vadd.f32 %v1539, %v2327
        %2329 = vmatprep.mubr.bf16.mxu0 0
        %2330 = vmatmul.mubr.bf16.gmra.mrb[0].mxu0 %v1391
        %v2331 = vpop.f32.mrb[0].mxu0
        %v2332 = vadd.f32 %v1535, %v2331
        %v2333 = vpop.f32.mrb[0].mxu0
        %v2334 = vadd.f32 %v1539, %v2333
        %v2335 = vpop.f32.mrb[0].mxu0
        %v2336 = vpop.f32.mrb[0].mxu0
        %2337 = vdwg.mxu0
        %v2338 = vpack.c.bf16 %v2071, %v2067
        %v2339 = vpack.c.bf16 %v2077, %v2077
        %v2340 = vpack.c.bf16 %v2073, %v2069
        %v2341 = vpack.c.bf16 %v2079, %v2079
        %v2342 = vpack.c.bf16 %v2122, %v2118
        %v2343 = vpack.c.bf16 %v2128, %v2128
        %2344 = vmatprep.subr.bf16.mxu0 0
        %2345 = vmatpush1.bf16.xpose.msra.mxu0 %v2340
        %2346 = vmatprep.subr.bf16.mxu0 0
        %2347 = vmatpush1.bf16.xpose.msra.mxu0 %v2341
        %2348 = vmatprep.subr.bf16.mxu0 0
        %2349 = vmatpush1.bf16.xpose.msra.mxu0 0
        %2350 = vmatprep.subr.bf16.mxu0 0
        %2351 = vmatpush1.bf16.xpose.msra.mxu0 0
        %2352 = vmatprep.subr.bf16.mxu0 0
        %2353 = vmatpush1.bf16.xpose.msra.mxu0 0
        %2354 = vmatprep.subr.bf16.mxu0 0
        %2355 = vmatpush1.bf16.xpose.msra.mxu0 0
        %2356 = vmatprep.subr.bf16.mxu0 0
        %2357 = vmatpush1.bf16.xpose.msra.mxu0 0
        %2358 = vmatprep.subr.bf16.mxu0 0
        %2359 = vmatpush1.bf16.xpose.msra.mxu0 0
        %2360 = vmatprep.subr.bf16.mxu0 0
        %2361 = vmatpush1.bf16.xpose.msra.mxu0 0
        %2362 = vmatprep.subr.bf16.mxu0 0
        %2363 = vmatpush1.bf16.xpose.msra.mxu0 0
        %2364 = vmatprep.subr.bf16.mxu0 0
        %2365 = vmatpush1.bf16.xpose.msra.mxu0 0
        %2366 = vmatprep.subr.bf16.mxu0 0
        %2367 = vmatpush1.bf16.xpose.msra.mxu0 0
        %2368 = vmatprep.subr.bf16.mxu0 0
        %2369 = vmatpush1.bf16.xpose.msra.mxu0 0
        %2370 = vmatprep.subr.bf16.mxu0 0
        %2371 = vmatpush1.bf16.xpose.msra.mxu0 0
        %2372 = vmatprep.subr.bf16.mxu0 0
        %2373 = vmatpush1.bf16.xpose.msra.mxu0 0
        %2374 = vmatprep.subr.bf16.mxu0 0
        %2375 = vmatpush1.bf16.xpose.msra.mxu0 0
        %2376 = vmatprep.mubr.bf16.mxu0 0
        %2377 = vmatmul.mubr.bf16.gmra.mrb[0].mxu0 %v2338
        %v2378 = vpop.f32.mrb[0].mxu0
        %v2379 = vadd.f32 0.0, %v2378
        %v2380 = vpop.f32.mrb[0].mxu0
        %v2381 = vpop.f32.mrb[0].mxu0
        %v2382 = vadd.f32 0.0, %v2381
        %v2383 = vpop.f32.mrb[0].mxu0
        %2384 = vmatprep.mubr.bf16.mxu0 0
        %2385 = vmatmul.mubr.bf16.gmra.mrb[0].mxu0 %v2339
        %v2386 = vpop.f32.mrb[0].mxu0
        %v2387 = vadd.f32 0.0, %v2386
        %v2388 = vpop.f32.mrb[0].mxu0
        %v2389 = vpop.f32.mrb[0].mxu0
        %v2390 = vpop.f32.mrb[0].mxu0
        %2391 = vdwg.mxu0
        %vm2392 = vcmask 138240
        %v2393 = vsel %vm2392, %v2379, -inf
        %2394 = vmax.xlane.f32.xlu0 %v2393
        %v2395 = vpop.xlane.xlu0 %2394
        %v2396 = vsel %vm2392, %v2382, -inf
        %2397 = vmax.xlane.f32.xlu0 %v2396
        %v2398 = vpop.xlane.xlu0 %2397
        %vm2399 = vcmask 131072
        %v2400 = vsel %vm2399, %v2387, -inf
        %2401 = vmax.xlane.f32.xlu0 %v2400
        %v2402 = vpop.xlane.xlu0 %2401
        %v2403 = vsub.f32 %v2379, %v2395
        %v2404 = vsub.f32 %v2382, %v2398
        %v2405 = vsub.f32 %v2387, %v2402
        %v2406 = vmul.f32 %v2403, 1.442695
        %v2407 = vpow.pop %v2406
        %v2408 = vmul.f32 %v2404, 1.442695
        %v2409 = vpow.pop %v2408
        %v2410 = vmul.f32 %v2405, 1.442695
        %v2411 = vpow.pop %v2410
        %v2412 = vsel %vm2392, %v2407, 0.0
        %2413 = vadd.xlane.f32.xlu0 %v2412
        %v2414 = vpop.xlane.xlu0 %2413
        %v2415 = vsel %vm2392, %v2409, 0.0
        %2416 = vadd.xlane.f32.xlu0 %v2415
        %v2417 = vpop.xlane.xlu0 %2416
        %v2418 = vsel %vm2399, %v2411, 0.0
        %2419 = vadd.xlane.f32.xlu0 %v2418
        %v2420 = vpop.xlane.xlu0 %2419
        %v2421 = vpack.c.bf16 %v2409, %v2407
        %v2422 = vpack.c.bf16 %v2411, %v2411
        %v2424 = vsel %vm2392, %v2421, 0
        %v2427 = vsel %vm2392, %v2422, 0
        %v2429 = vsel 0, 4294967295, 65535
        %v2430 = vsel %vm1339, %v2429, 0
        %v2432 = vand.u32 %v2343, %v2430
        %2434 = vmatprep.subr.bf16.mxu0 0
        %2435 = vmatpush1.bf16.msra.mxu0 %v2342
        %2436 = vmatprep.subr.bf16.mxu0 0
        %2437 = vmatpush1.bf16.msra.mxu0 %v2432
        %2438 = vmatprep.subr.bf16.mxu0 0
        %2439 = vmatpush1.bf16.msra.mxu0 0
        %2440 = vmatprep.subr.bf16.mxu0 0
        %2441 = vmatpush1.bf16.msra.mxu0 0
        %2442 = vmatprep.subr.bf16.mxu0 0
        %2443 = vmatpush1.bf16.msra.mxu0 0
        %2444 = vmatprep.subr.bf16.mxu0 0
        %2445 = vmatpush1.bf16.msra.mxu0 0
        %2446 = vmatprep.subr.bf16.mxu0 0
        %2447 = vmatpush1.bf16.msra.mxu0 0
        %2448 = vmatprep.subr.bf16.mxu0 0
        %2449 = vmatpush1.bf16.msra.mxu0 0
        %2450 = vmatprep.subr.bf16.mxu0 0
        %2451 = vmatpush1.bf16.msra.mxu0 0
        %2452 = vmatprep.subr.bf16.mxu0 0
        %2453 = vmatpush1.bf16.msra.mxu0 0
        %2454 = vmatprep.subr.bf16.mxu0 0
        %2455 = vmatpush1.bf16.msra.mxu0 0
        %2456 = vmatprep.subr.bf16.mxu0 0
        %2457 = vmatpush1.bf16.msra.mxu0 0
        %2458 = vmatprep.subr.bf16.mxu0 0
        %2459 = vmatpush1.bf16.msra.mxu0 0
        %2460 = vmatprep.subr.bf16.mxu0 0
        %2461 = vmatpush1.bf16.msra.mxu0 0
        %2462 = vmatprep.subr.bf16.mxu0 0
        %2463 = vmatpush1.bf16.msra.mxu0 0
        %2464 = vmatprep.subr.bf16.mxu0 0
        %2465 = vmatpush1.bf16.msra.mxu0 0
        %2466 = vmatprep.mubr.bf16.mxu0 0
        %2467 = vmatmul.mubr.bf16.gmra.mrb[0].mxu0 %v2424
        %v2468 = vpop.f32.mrb[0].mxu0
        %v2469 = vadd.f32 0.0, %v2468
        %v2470 = vpop.f32.mrb[0].mxu0
        %v2471 = vpop.f32.mrb[0].mxu0
        %v2472 = vadd.f32 0.0, %v2471
        %v2473 = vpop.f32.mrb[0].mxu0
        %2474 = vmatprep.mubr.bf16.mxu0 0
        %2475 = vmatmul.mubr.bf16.gmra.mrb[0].mxu0 %v2427
        %v2476 = vpop.f32.mrb[0].mxu0
        %v2477 = vadd.f32 0.0, %v2476
        %v2478 = vpop.f32.mrb[0].mxu0
        %v2479 = vpop.f32.mrb[0].mxu0
        %v2480 = vpop.f32.mrb[0].mxu0
        %2481 = vdwg.mxu0
        %v2482 = vrcp.pop %v2414
        %v2483 = vrcp.pop %v2417
        %v2484 = vrcp.pop %v2420
        %v2485 = vmul.f32 %v2469, %v2482
        %v2486 = vmul.f32 %v2472, %v2483
        %v2487 = vmul.f32 %v2477, %v2484
        %v2488 = vpack.c.bf16 %v2486, %v2485
        %v2489 = vpack.c.bf16 %v2487, %v2487
        %v2490 = vpack.c.bf16 %v2124, %v2120
        %v2491 = vpack.c.bf16 %v2130, %v2130
        %v2492 = vpack.c.bf16 %v2173, %v2169
        %v2493 = vpack.c.bf16 %v2179, %v2179
        %v2494 = vpack.c.bf16 %v2175, %v2171
        %v2495 = vpack.c.bf16 %v2181, %v2181
        %2496 = vmatprep.subr.bf16.mxu0 0
        %2497 = vmatpush1.bf16.xpose.msra.mxu0 %v2492
        %2498 = vmatprep.subr.bf16.mxu0 0
        %2499 = vmatpush1.bf16.xpose.msra.mxu0 %v2493
        %2500 = vmatprep.subr.bf16.mxu0 0
        %2501 = vmatpush1.bf16.xpose.msra.mxu0 0
        %2502 = vmatprep.subr.bf16.mxu0 0
        %2503 = vmatpush1.bf16.xpose.msra.mxu0 0
        %2504 = vmatprep.subr.bf16.mxu0 0
        %2505 = vmatpush1.bf16.xpose.msra.mxu0 0
        %2506 = vmatprep.subr.bf16.mxu0 0
        %2507 = vmatpush1.bf16.xpose.msra.mxu0 0
        %2508 = vmatprep.subr.bf16.mxu0 0
        %2509 = vmatpush1.bf16.xpose.msra.mxu0 0
        %2510 = vmatprep.subr.bf16.mxu0 0
        %2511 = vmatpush1.bf16.xpose.msra.mxu0 0
        %2512 = vmatprep.subr.bf16.mxu0 0
        %2513 = vmatpush1.bf16.xpose.msra.mxu0 0
        %2514 = vmatprep.subr.bf16.mxu0 0
        %2515 = vmatpush1.bf16.xpose.msra.mxu0 0
        %2516 = vmatprep.subr.bf16.mxu0 0
        %2517 = vmatpush1.bf16.xpose.msra.mxu0 0
        %2518 = vmatprep.subr.bf16.mxu0 0
        %2519 = vmatpush1.bf16.xpose.msra.mxu0 0
        %2520 = vmatprep.subr.bf16.mxu0 0
        %2521 = vmatpush1.bf16.xpose.msra.mxu0 0
        %2522 = vmatprep.subr.bf16.mxu0 0
        %2523 = vmatpush1.bf16.xpose.msra.mxu0 0
        %2524 = vmatprep.subr.bf16.mxu0 0
        %2525 = vmatpush1.bf16.xpose.msra.mxu0 0
        %2526 = vmatprep.subr.bf16.mxu0 0
        %2527 = vmatpush1.bf16.xpose.msra.mxu0 0
        %2528 = vmatprep.mubr.bf16.mxu0 0
        %2529 = vmatmul.mubr.bf16.gmra.mrb[0].mxu0 %v2490
        %v2530 = vpop.f32.mrb[0].mxu0
        %v2531 = vadd.f32 0.0, %v2530
        %v2532 = vpop.f32.mrb[0].mxu0
        %v2533 = vpop.f32.mrb[0].mxu0
        %v2534 = vadd.f32 0.0, %v2533
        %v2535 = vpop.f32.mrb[0].mxu0
        %2536 = vmatprep.mubr.bf16.mxu0 0
        %2537 = vmatmul.mubr.bf16.gmra.mrb[0].mxu0 %v2491
        %v2538 = vpop.f32.mrb[0].mxu0
        %v2539 = vadd.f32 0.0, %v2538
        %v2540 = vpop.f32.mrb[0].mxu0
        %v2541 = vpop.f32.mrb[0].mxu0
        %v2542 = vpop.f32.mrb[0].mxu0
        %2543 = vdwg.mxu0
        %v2544 = vsel %vm2392, %v2531, -inf
        %2545 = vmax.xlane.f32.xlu0 %v2544
        %v2546 = vpop.xlane.xlu0 %2545
        %v2547 = vsel %vm2392, %v2534, -inf
        %2548 = vmax.xlane.f32.xlu0 %v2547
        %v2549 = vpop.xlane.xlu0 %2548
        %v2550 = vsel %vm2399, %v2539, -inf
        %2551 = vmax.xlane.f32.xlu0 %v2550
        %v2552 = vpop.xlane.xlu0 %2551
        %v2553 = vsub.f32 %v2531, %v2546
        %v2554 = vsub.f32 %v2534, %v2549
        %v2555 = vsub.f32 %v2539, %v2552
        %v2556 = vmul.f32 %v2553, 1.442695
        %v2557 = vpow.pop %v2556
        %v2558 = vmul.f32 %v2554, 1.442695
        %v2559 = vpow.pop %v2558
        %v2560 = vmul.f32 %v2555, 1.442695
        %v2561 = vpow.pop %v2560
        %v2562 = vsel %vm2392, %v2557, 0.0
        %2563 = vadd.xlane.f32.xlu0 %v2562
        %v2564 = vpop.xlane.xlu0 %2563
        %v2565 = vsel %vm2392, %v2559, 0.0
        %2566 = vadd.xlane.f32.xlu0 %v2565
        %v2567 = vpop.xlane.xlu0 %2566
        %v2568 = vsel %vm2399, %v2561, 0.0
        %2569 = vadd.xlane.f32.xlu0 %v2568
        %v2570 = vpop.xlane.xlu0 %2569
        %v2571 = vpack.c.bf16 %v2559, %v2557
        %v2572 = vpack.c.bf16 %v2561, %v2561
        %v2574 = vsel %vm2392, %v2571, 0
        %v2577 = vsel %vm2392, %v2572, 0
        %v2580 = vand.u32 %v2495, %v2430
        %2582 = vmatprep.subr.bf16.mxu0 0
        %2583 = vmatpush1.bf16.msra.mxu0 %v2494
        %2584 = vmatprep.subr.bf16.mxu0 0
        %2585 = vmatpush1.bf16.msra.mxu0 %v2580
        %2586 = vmatprep.subr.bf16.mxu0 0
        %2587 = vmatpush1.bf16.msra.mxu0 0
        %2588 = vmatprep.subr.bf16.mxu0 0
        %2589 = vmatpush1.bf16.msra.mxu0 0
        %2590 = vmatprep.subr.bf16.mxu0 0
        %2591 = vmatpush1.bf16.msra.mxu0 0
        %2592 = vmatprep.subr.bf16.mxu0 0
        %2593 = vmatpush1.bf16.msra.mxu0 0
        %2594 = vmatprep.subr.bf16.mxu0 0
        %2595 = vmatpush1.bf16.msra.mxu0 0
        %2596 = vmatprep.subr.bf16.mxu0 0
        %2597 = vmatpush1.bf16.msra.mxu0 0
        %2598 = vmatprep.subr.bf16.mxu0 0
        %2599 = vmatpush1.bf16.msra.mxu0 0
        %2600 = vmatprep.subr.bf16.mxu0 0
        %2601 = vmatpush1.bf16.msra.mxu0 0
        %2602 = vmatprep.subr.bf16.mxu0 0
        %2603 = vmatpush1.bf16.msra.mxu0 0
        %2604 = vmatprep.subr.bf16.mxu0 0
        %2605 = vmatpush1.bf16.msra.mxu0 0
        %2606 = vmatprep.subr.bf16.mxu0 0
        %2607 = vmatpush1.bf16.msra.mxu0 0
        %2608 = vmatprep.subr.bf16.mxu0 0
        %2609 = vmatpush1.bf16.msra.mxu0 0
        %2610 = vmatprep.subr.bf16.mxu0 0
        %2611 = vmatpush1.bf16.msra.mxu0 0
        %2612 = vmatprep.subr.bf16.mxu0 0
        %2613 = vmatpush1.bf16.msra.mxu0 0
        %2614 = vmatprep.mubr.bf16.mxu0 0
        %2615 = vmatmul.mubr.bf16.gmra.mrb[0].mxu0 %v2574
        %v2616 = vpop.f32.mrb[0].mxu0
        %v2617 = vadd.f32 0.0, %v2616
        %v2618 = vpop.f32.mrb[0].mxu0
        %v2619 = vpop.f32.mrb[0].mxu0
        %v2620 = vadd.f32 0.0, %v2619
        %v2621 = vpop.f32.mrb[0].mxu0
        %2622 = vmatprep.mubr.bf16.mxu0 0
        %2623 = vmatmul.mubr.bf16.gmra.mrb[0].mxu0 %v2577
        %v2624 = vpop.f32.mrb[0].mxu0
        %v2625 = vadd.f32 0.0, %v2624
        %v2626 = vpop.f32.mrb[0].mxu0
        %v2627 = vpop.f32.mrb[0].mxu0
        %v2628 = vpop.f32.mrb[0].mxu0
        %2629 = vdwg.mxu0
        %v2630 = vrcp.pop %v2564
        %v2631 = vrcp.pop %v2567
        %v2632 = vrcp.pop %v2570
        %v2633 = vmul.f32 %v2617, %v2630
        %v2634 = vmul.f32 %v2620, %v2631
        %v2635 = vmul.f32 %v2625, %v2632
        %v2636 = vpack.c.bf16 %v2634, %v2633
        %v2637 = vpack.c.bf16 %v2635, %v2635
        %v2638 = vpack.c.bf16 %v2224, %v2220
        %v2639 = vpack.c.bf16 %v2230, %v2230
        %v2640 = vpack.c.bf16 %v2226, %v2222
        %v2641 = vpack.c.bf16 %v2232, %v2232
        %v2642 = vpack.c.bf16 %v2275, %v2271
        %v2643 = vpack.c.bf16 %v2281, %v2281
        %2644 = vmatprep.subr.bf16.mxu0 0
        %2645 = vmatpush1.bf16.xpose.msra.mxu0 %v2640
        %2646 = vmatprep.subr.bf16.mxu0 0
        %2647 = vmatpush1.bf16.xpose.msra.mxu0 %v2641
        %2648 = vmatprep.subr.bf16.mxu0 0
        %2649 = vmatpush1.bf16.xpose.msra.mxu0 0
        %2650 = vmatprep.subr.bf16.mxu0 0
        %2651 = vmatpush1.bf16.xpose.msra.mxu0 0
        %2652 = vmatprep.subr.bf16.mxu0 0
        %2653 = vmatpush1.bf16.xpose.msra.mxu0 0
        %2654 = vmatprep.subr.bf16.mxu0 0
        %2655 = vmatpush1.bf16.xpose.msra.mxu0 0
        %2656 = vmatprep.subr.bf16.mxu0 0
        %2657 = vmatpush1.bf16.xpose.msra.mxu0 0
        %2658 = vmatprep.subr.bf16.mxu0 0
        %2659 = vmatpush1.bf16.xpose.msra.mxu0 0
        %2660 = vmatprep.subr.bf16.mxu0 0
        %2661 = vmatpush1.bf16.xpose.msra.mxu0 0
        %2662 = vmatprep.subr.bf16.mxu0 0
        %2663 = vmatpush1.bf16.xpose.msra.mxu0 0
        %2664 = vmatprep.subr.bf16.mxu0 0
        %2665 = vmatpush1.bf16.xpose.msra.mxu0 0
        %2666 = vmatprep.subr.bf16.mxu0 0
        %2667 = vmatpush1.bf16.xpose.msra.mxu0 0
        %2668 = vmatprep.subr.bf16.mxu0 0
        %2669 = vmatpush1.bf16.xpose.msra.mxu0 0
        %2670 = vmatprep.subr.bf16.mxu0 0
        %2671 = vmatpush1.bf16.xpose.msra.mxu0 0
        %2672 = vmatprep.subr.bf16.mxu0 0
        %2673 = vmatpush1.bf16.xpose.msra.mxu0 0
        %2674 = vmatprep.subr.bf16.mxu0 0
        %2675 = vmatpush1.bf16.xpose.msra.mxu0 0
        %2676 = vmatprep.mubr.bf16.mxu0 0
        %2677 = vmatmul.mubr.bf16.gmra.mrb[0].mxu0 %v2638
        %v2678 = vpop.f32.mrb[0].mxu0
        %v2679 = vadd.f32 0.0, %v2678
        %v2680 = vpop.f32.mrb[0].mxu0
        %v2681 = vpop.f32.mrb[0].mxu0
        %v2682 = vadd.f32 0.0, %v2681
        %v2683 = vpop.f32.mrb[0].mxu0
        %2684 = vmatprep.mubr.bf16.mxu0 0
        %2685 = vmatmul.mubr.bf16.gmra.mrb[0].mxu0 %v2639
        %v2686 = vpop.f32.mrb[0].mxu0
        %v2687 = vadd.f32 0.0, %v2686
        %v2688 = vpop.f32.mrb[0].mxu0
        %v2689 = vpop.f32.mrb[0].mxu0
        %v2690 = vpop.f32.mrb[0].mxu0
        %2691 = vdwg.mxu0
        %v2692 = vsel %vm2392, %v2679, -inf
        %2693 = vmax.xlane.f32.xlu0 %v2692
        %v2694 = vpop.xlane.xlu0 %2693
        %v2695 = vsel %vm2392, %v2682, -inf
        %2696 = vmax.xlane.f32.xlu0 %v2695
        %v2697 = vpop.xlane.xlu0 %2696
        %v2698 = vsel %vm2399, %v2687, -inf
        %2699 = vmax.xlane.f32.xlu0 %v2698
        %v2700 = vpop.xlane.xlu0 %2699
        %v2701 = vsub.f32 %v2679, %v2694
        %v2702 = vsub.f32 %v2682, %v2697
        %v2703 = vsub.f32 %v2687, %v2700
        %v2704 = vmul.f32 %v2701, 1.442695
        %v2705 = vpow.pop %v2704
        %v2706 = vmul.f32 %v2702, 1.442695
        %v2707 = vpow.pop %v2706
        %v2708 = vmul.f32 %v2703, 1.442695
        %v2709 = vpow.pop %v2708
        %v2710 = vsel %vm2392, %v2705, 0.0
        %2711 = vadd.xlane.f32.xlu0 %v2710
        %v2712 = vpop.xlane.xlu0 %2711
        %v2713 = vsel %vm2392, %v2707, 0.0
        %2714 = vadd.xlane.f32.xlu0 %v2713
        %v2715 = vpop.xlane.xlu0 %2714
        %v2716 = vsel %vm2399, %v2709, 0.0
        %2717 = vadd.xlane.f32.xlu0 %v2716
        %v2718 = vpop.xlane.xlu0 %2717
        %v2719 = vpack.c.bf16 %v2707, %v2705
        %v2720 = vpack.c.bf16 %v2709, %v2709
        %v2722 = vsel %vm2392, %v2719, 0
        %v2725 = vsel %vm2392, %v2720, 0
        %v2728 = vand.u32 %v2643, %v2430
        %2730 = vmatprep.subr.bf16.mxu0 0
        %2731 = vmatpush1.bf16.msra.mxu0 %v2642
        %2732 = vmatprep.subr.bf16.mxu0 0
        %2733 = vmatpush1.bf16.msra.mxu0 %v2728
        %2734 = vmatprep.subr.bf16.mxu0 0
        %2735 = vmatpush1.bf16.msra.mxu0 0
        %2736 = vmatprep.subr.bf16.mxu0 0
        %2737 = vmatpush1.bf16.msra.mxu0 0
        %2738 = vmatprep.subr.bf16.mxu0 0
        %2739 = vmatpush1.bf16.msra.mxu0 0
        %2740 = vmatprep.subr.bf16.mxu0 0
        %2741 = vmatpush1.bf16.msra.mxu0 0
        %2742 = vmatprep.subr.bf16.mxu0 0
        %2743 = vmatpush1.bf16.msra.mxu0 0
        %2744 = vmatprep.subr.bf16.mxu0 0
        %2745 = vmatpush1.bf16.msra.mxu0 0
        %2746 = vmatprep.subr.bf16.mxu0 0
        %2747 = vmatpush1.bf16.msra.mxu0 0
        %2748 = vmatprep.subr.bf16.mxu0 0
        %2749 = vmatpush1.bf16.msra.mxu0 0
        %2750 = vmatprep.subr.bf16.mxu0 0
        %2751 = vmatpush1.bf16.msra.mxu0 0
        %2752 = vmatprep.subr.bf16.mxu0 0
        %2753 = vmatpush1.bf16.msra.mxu0 0
        %2754 = vmatprep.subr.bf16.mxu0 0
        %2755 = vmatpush1.bf16.msra.mxu0 0
        %2756 = vmatprep.subr.bf16.mxu0 0
        %2757 = vmatpush1.bf16.msra.mxu0 0
        %2758 = vmatprep.subr.bf16.mxu0 0
        %2759 = vmatpush1.bf16.msra.mxu0 0
        %2760 = vmatprep.subr.bf16.mxu0 0
        %2761 = vmatpush1.bf16.msra.mxu0 0
        %2762 = vmatprep.mubr.bf16.mxu0 0
        %2763 = vmatmul.mubr.bf16.gmra.mrb[0].mxu0 %v2722
        %v2764 = vpop.f32.mrb[0].mxu0
        %v2765 = vadd.f32 0.0, %v2764
        %v2766 = vpop.f32.mrb[0].mxu0
        %v2767 = vpop.f32.mrb[0].mxu0
        %v2768 = vadd.f32 0.0, %v2767
        %v2769 = vpop.f32.mrb[0].mxu0
        %2770 = vmatprep.mubr.bf16.mxu0 0
        %2771 = vmatmul.mubr.bf16.gmra.mrb[0].mxu0 %v2725
        %v2772 = vpop.f32.mrb[0].mxu0
        %v2773 = vadd.f32 0.0, %v2772
        %v2774 = vpop.f32.mrb[0].mxu0
        %v2775 = vpop.f32.mrb[0].mxu0
        %v2776 = vpop.f32.mrb[0].mxu0
        %2777 = vdwg.mxu0
        %v2778 = vrcp.pop %v2712
        %v2779 = vrcp.pop %v2715
        %v2780 = vrcp.pop %v2718
        %v2781 = vmul.f32 %v2765, %v2778
        %v2782 = vmul.f32 %v2768, %v2779
        %v2783 = vmul.f32 %v2773, %v2780
        %v2784 = vpack.c.bf16 %v2782, %v2781
        %v2785 = vpack.c.bf16 %v2783, %v2783
        %v2786 = vpack.c.bf16 %v2277, %v2273
        %v2787 = vpack.c.bf16 %v2283, %v2283
        %v2788 = vpack.c.bf16 %v2326, %v2322
        %v2789 = vpack.c.bf16 %v2332, %v2332
        %v2790 = vpack.c.bf16 %v2328, %v2324
        %v2791 = vpack.c.bf16 %v2334, %v2334
        %2792 = vmatprep.subr.bf16.mxu0 0
        %2793 = vmatpush1.bf16.xpose.msra.mxu0 %v2788
        %2794 = vmatprep.subr.bf16.mxu0 0
        %2795 = vmatpush1.bf16.xpose.msra.mxu0 %v2789
        %2796 = vmatprep.subr.bf16.mxu0 0
        %2797 = vmatpush1.bf16.xpose.msra.mxu0 0
        %2798 = vmatprep.subr.bf16.mxu0 0
        %2799 = vmatpush1.bf16.xpose.msra.mxu0 0
        %2800 = vmatprep.subr.bf16.mxu0 0
        %2801 = vmatpush1.bf16.xpose.msra.mxu0 0
        %2802 = vmatprep.subr.bf16.mxu0 0
        %2803 = vmatpush1.bf16.xpose.msra.mxu0 0
        %2804 = vmatprep.subr.bf16.mxu0 0
        %2805 = vmatpush1.bf16.xpose.msra.mxu0 0
        %2806 = vmatprep.subr.bf16.mxu0 0
        %2807 = vmatpush1.bf16.xpose.msra.mxu0 0
        %2808 = vmatprep.subr.bf16.mxu0 0
        %2809 = vmatpush1.bf16.xpose.msra.mxu0 0
        %2810 = vmatprep.subr.bf16.mxu0 0
        %2811 = vmatpush1.bf16.xpose.msra.mxu0 0
        %2812 = vmatprep.subr.bf16.mxu0 0
        %2813 = vmatpush1.bf16.xpose.msra.mxu0 0
        %2814 = vmatprep.subr.bf16.mxu0 0
        %2815 = vmatpush1.bf16.xpose.msra.mxu0 0
        %2816 = vmatprep.subr.bf16.mxu0 0
        %2817 = vmatpush1.bf16.xpose.msra.mxu0 0
        %2818 = vmatprep.subr.bf16.mxu0 0
        %2819 = vmatpush1.bf16.xpose.msra.mxu0 0
        %2820 = vmatprep.subr.bf16.mxu0 0
        %2821 = vmatpush1.bf16.xpose.msra.mxu0 0
        %2822 = vmatprep.subr.bf16.mxu0 0
        %2823 = vmatpush1.bf16.xpose.msra.mxu0 0
        %2824 = vmatprep.mubr.bf16.mxu0 0
        %2825 = vmatmul.mubr.bf16.gmra.mrb[0].mxu0 %v2786
        %v2826 = vpop.f32.mrb[0].mxu0
        %v2827 = vadd.f32 0.0, %v2826
        %v2828 = vpop.f32.mrb[0].mxu0
        %v2829 = vpop.f32.mrb[0].mxu0
        %v2830 = vadd.f32 0.0, %v2829
        %v2831 = vpop.f32.mrb[0].mxu0
        %2832 = vmatprep.mubr.bf16.mxu0 0
        %2833 = vmatmul.mubr.bf16.gmra.mrb[0].mxu0 %v2787
        %v2834 = vpop.f32.mrb[0].mxu0
        %v2835 = vadd.f32 0.0, %v2834
        %v2836 = vpop.f32.mrb[0].mxu0
        %v2837 = vpop.f32.mrb[0].mxu0
        %v2838 = vpop.f32.mrb[0].mxu0
        %2839 = vdwg.mxu0
        %v2840 = vsel %vm2392, %v2827, -inf
        %2841 = vmax.xlane.f32.xlu0 %v2840
        %v2842 = vpop.xlane.xlu0 %2841
        %v2843 = vsel %vm2392, %v2830, -inf
        %2844 = vmax.xlane.f32.xlu0 %v2843
        %v2845 = vpop.xlane.xlu0 %2844
        %v2846 = vsel %vm2399, %v2835, -inf
        %2847 = vmax.xlane.f32.xlu0 %v2846
        %v2848 = vpop.xlane.xlu0 %2847
        %v2849 = vsub.f32 %v2827, %v2842
        %v2850 = vsub.f32 %v2830, %v2845
        %v2851 = vsub.f32 %v2835, %v2848
        %v2852 = vmul.f32 %v2849, 1.442695
        %v2853 = vpow.pop %v2852
        %v2854 = vmul.f32 %v2850, 1.442695
        %v2855 = vpow.pop %v2854
        %v2856 = vmul.f32 %v2851, 1.442695
        %v2857 = vpow.pop %v2856
        %v2858 = vsel %vm2392, %v2853, 0.0
        %2859 = vadd.xlane.f32.xlu0 %v2858
        %v2860 = vpop.xlane.xlu0 %2859
        %v2861 = vsel %vm2392, %v2855, 0.0
        %2862 = vadd.xlane.f32.xlu0 %v2861
        %v2863 = vpop.xlane.xlu0 %2862
        %v2864 = vsel %vm2399, %v2857, 0.0
        %2865 = vadd.xlane.f32.xlu0 %v2864
        %v2866 = vpop.xlane.xlu0 %2865
        %v2867 = vpack.c.bf16 %v2855, %v2853
        %v2868 = vpack.c.bf16 %v2857, %v2857
        %v2870 = vsel %vm2392, %v2867, 0
        %v2873 = vsel %vm2392, %v2868, 0
        %v2876 = vand.u32 %v2791, %v2430
        %2878 = vmatprep.subr.bf16.mxu0 0
        %2879 = vmatpush1.bf16.msra.mxu0 %v2790
        %2880 = vmatprep.subr.bf16.mxu0 0
        %2881 = vmatpush1.bf16.msra.mxu0 %v2876
        %2882 = vmatprep.subr.bf16.mxu0 0
        %2883 = vmatpush1.bf16.msra.mxu0 0
        %2884 = vmatprep.subr.bf16.mxu0 0
        %2885 = vmatpush1.bf16.msra.mxu0 0
        %2886 = vmatprep.subr.bf16.mxu0 0
        %2887 = vmatpush1.bf16.msra.mxu0 0
        %2888 = vmatprep.subr.bf16.mxu0 0
        %2889 = vmatpush1.bf16.msra.mxu0 0
        %2890 = vmatprep.subr.bf16.mxu0 0
        %2891 = vmatpush1.bf16.msra.mxu0 0
        %2892 = vmatprep.subr.bf16.mxu0 0
        %2893 = vmatpush1.bf16.msra.mxu0 0
        %2894 = vmatprep.subr.bf16.mxu0 0
        %2895 = vmatpush1.bf16.msra.mxu0 0
        %2896 = vmatprep.subr.bf16.mxu0 0
        %2897 = vmatpush1.bf16.msra.mxu0 0
        %2898 = vmatprep.subr.bf16.mxu0 0
        %2899 = vmatpush1.bf16.msra.mxu0 0
        %2900 = vmatprep.subr.bf16.mxu0 0
        %2901 = vmatpush1.bf16.msra.mxu0 0
        %2902 = vmatprep.subr.bf16.mxu0 0
        %2903 = vmatpush1.bf16.msra.mxu0 0
        %2904 = vmatprep.subr.bf16.mxu0 0
        %2905 = vmatpush1.bf16.msra.mxu0 0
        %2906 = vmatprep.subr.bf16.mxu0 0
        %2907 = vmatpush1.bf16.msra.mxu0 0
        %2908 = vmatprep.subr.bf16.mxu0 0
        %2909 = vmatpush1.bf16.msra.mxu0 0
        %2910 = vmatprep.mubr.bf16.mxu0 0
        %2911 = vmatmul.mubr.bf16.gmra.mrb[0].mxu0 %v2870
        %v2912 = vpop.f32.mrb[0].mxu0
        %v2913 = vadd.f32 0.0, %v2912
        %v2914 = vpop.f32.mrb[0].mxu0
        %v2915 = vpop.f32.mrb[0].mxu0
        %v2916 = vadd.f32 0.0, %v2915
        %v2917 = vpop.f32.mrb[0].mxu0
        %2918 = vmatprep.mubr.bf16.mxu0 0
        %2919 = vmatmul.mubr.bf16.gmra.mrb[0].mxu0 %v2873
        %v2920 = vpop.f32.mrb[0].mxu0
        %v2921 = vadd.f32 0.0, %v2920
        %v2922 = vpop.f32.mrb[0].mxu0
        %v2923 = vpop.f32.mrb[0].mxu0
        %v2924 = vpop.f32.mrb[0].mxu0
        %2925 = vdwg.mxu0
        %v2926 = vrcp.pop %v2860
        %v2927 = vrcp.pop %v2863
        %v2928 = vrcp.pop %v2866
        %v2929 = vmul.f32 %v2913, %v2926
        %v2930 = vmul.f32 %v2916, %v2927
        %v2931 = vmul.f32 %v2921, %v2928
        %v2932 = vpack.c.bf16 %v2930, %v2929
        %v2933 = vpack.c.bf16 %v2931, %v2931
        %v2934 = vld [vmem:[%s905] sm:$0xf]
        %v2935 = vld [vmem:[%s905 + $0x4] sm:$0xf]
        %v2936 = vld [vmem:[%s905 + $0x8] sm:$0xf]
        %v2937 = vld [vmem:[%s905 + $0xc] sm:$0xf]
        %v2938 = vld [vmem:[%s905 + $0x10] sm:$0xf]
        %v2939 = vld [vmem:[%s905 + $0x14] sm:$0xf]
        %v2940 = vld [vmem:[%s905 + $0x18] sm:$0xf]
        %v2941 = vld [vmem:[%s905 + $0x1c] sm:$0xf]
        %v2942 = vld [vmem:[%s905 + $0x20] sm:$0xf]
        %v2943 = vld [vmem:[%s905 + $0x24] sm:$0xf]
        %v2944 = vld [vmem:[%s905 + $0x28] sm:$0xf]
        %v2945 = vld [vmem:[%s905 + $0x2c] sm:$0xf]
        %v2946 = vld [vmem:[%s905 + $0x30] sm:$0xf]
        %v2947 = vld [vmem:[%s905 + $0x34] sm:$0xf]
        %v2948 = vld [vmem:[%s905 + $0x38] sm:$0xf]
        %v2949 = vld [vmem:[%s905 + $0x3c] sm:$0xf]
        %v2950 = vld [vmem:[%s905 + $0x40] sm:$0xf]
        %v2951 = vld [vmem:[%s905 + $0x44] sm:$0xf]
        %v2952 = vld [vmem:[%s905 + $0x48] sm:$0xf]
        %v2953 = vld [vmem:[%s905 + $0x4c] sm:$0xf]
        %v2954 = vld [vmem:[%s905 + $0x50] sm:$0xf]
        %v2955 = vld [vmem:[%s905 + $0x54] sm:$0xf]
        %v2956 = vld [vmem:[%s905 + $0x58] sm:$0xf]
        %v2957 = vld [vmem:[%s905 + $0x5c] sm:$0xf]
        %v2958 = vld [vmem:[%s905 + $0x60] sm:$0xf]
        %v2959 = vld [vmem:[%s905 + $0x64] sm:$0xf]
        %v2960 = vld [vmem:[%s905 + $0x68] sm:$0xf]
        %v2961 = vld [vmem:[%s905 + $0x6c] sm:$0xf]
        %v2962 = vld [vmem:[%s905 + $0x70] sm:$0xf]
        %v2963 = vld [vmem:[%s905 + $0x74] sm:$0xf]
        %v2964 = vld [vmem:[%s905 + $0x78] sm:$0xf]
        %v2965 = vld [vmem:[%s905 + $0x7c] sm:$0xf]
        %v2966 = vld [vmem:[%s905 + $0x80] sm:$0xf]
        %v2967 = vld [vmem:[%s905 + $0x84] sm:$0xf]
        %v2968 = vld [vmem:[%s905 + $0x88] sm:$0xf]
        %v2969 = vld [vmem:[%s905 + $0x8c] sm:$0xf]
        %v2970 = vld [vmem:[%s905 + $0x90] sm:$0xf]
        %v2971 = vld [vmem:[%s905 + $0x94] sm:$0xf]
        %v2972 = vld [vmem:[%s905 + $0x98] sm:$0xf]
        %v2973 = vld [vmem:[%s905 + $0x9c] sm:$0xf]
        %v2974 = vld [vmem:[%s905 + $0xa0] sm:$0xf]
        %v2975 = vld [vmem:[%s905 + $0xa4] sm:$0xf]
        %v2976 = vld [vmem:[%s905 + $0xa8] sm:$0xf]
        %v2977 = vld [vmem:[%s905 + $0xac] sm:$0xf]
        %v2978 = vld [vmem:[%s905 + $0xb0] sm:$0xf]
        %v2979 = vld [vmem:[%s905 + $0xb4] sm:$0xf]
        %v2980 = vld [vmem:[%s905 + $0xb8] sm:$0xf]
        %v2981 = vld [vmem:[%s905 + $0xbc] sm:$0xf]
        %v2982 = vld [vmem:[%s905 + $0xc0] sm:$0xf]
        %v2983 = vld [vmem:[%s905 + $0xc4] sm:$0xf]
        %v2984 = vld [vmem:[%s905 + $0xc8] sm:$0xf]
        %v2985 = vld [vmem:[%s905 + $0xcc] sm:$0xf]
        %v2986 = vld [vmem:[%s905 + $0xd0] sm:$0xf]
        %v2987 = vld [vmem:[%s905 + $0xd4] sm:$0xf]
        %v2988 = vld [vmem:[%s905 + $0xd8] sm:$0xf]
        %v2989 = vld [vmem:[%s905 + $0xdc] sm:$0xf]
        %v2990 = vld [vmem:[%s905 + $0xe0] sm:$0xf]
        %v2991 = vld [vmem:[%s905 + $0xe4] sm:$0xf]
        %v2992 = vld [vmem:[%s905 + $0xe8] sm:$0xf]
        %v2993 = vld [vmem:[%s905 + $0xec] sm:$0xf]
        %v2994 = vld [vmem:[%s905 + $0xf0] sm:$0xf]
        %v2995 = vld [vmem:[%s905 + $0xf4] sm:$0xf]
        %v2996 = vld [vmem:[%s905 + $0xf8] sm:$0xf]
        %v2997 = vld [vmem:[%s905 + $0xfc] sm:$0xf]
        %v2998 = vld [vmem:[%s913] sm:$0x1]
        %v3000 = vlaneseq
        %v3001 = vshrl.u32 %v3000, 7
        %v3002 = vsub.s32 0, %v3001
        %v3003 = vrot.slane %v2998, %v3002
        %v3069 = vunpack.c.l.b16 %v2934
        %v3070 = vunpack.c.l.b16 %v2935
        %v3071 = vunpack.c.l.b16 %v2936
        %v3072 = vunpack.c.l.b16 %v2937
        %v3073 = vunpack.c.l.b16 %v2938
        %v3074 = vunpack.c.l.b16 %v2939
        %v3075 = vunpack.c.l.b16 %v2940
        %v3076 = vunpack.c.l.b16 %v2941
        %v3077 = vunpack.c.l.b16 %v2942
        %v3078 = vunpack.c.l.b16 %v2943
        %v3079 = vunpack.c.l.b16 %v2944
        %v3080 = vunpack.c.l.b16 %v2945
        %v3081 = vunpack.c.l.b16 %v2946
        %v3082 = vunpack.c.l.b16 %v2947
        %v3083 = vunpack.c.l.b16 %v2948
        %v3084 = vunpack.c.l.b16 %v2949
        %v3085 = vunpack.c.l.b16 %v2950
        %v3086 = vunpack.c.l.b16 %v2951
        %v3087 = vunpack.c.l.b16 %v2952
        %v3088 = vunpack.c.l.b16 %v2953
        %v3089 = vunpack.c.l.b16 %v2954
        %v3090 = vunpack.c.l.b16 %v2955
        %v3091 = vunpack.c.l.b16 %v2956
        %v3092 = vunpack.c.l.b16 %v2957
        %v3093 = vunpack.c.l.b16 %v2958
        %v3094 = vunpack.c.l.b16 %v2959
        %v3095 = vunpack.c.l.b16 %v2960
        %v3096 = vunpack.c.l.b16 %v2961
        %v3097 = vunpack.c.l.b16 %v2962
        %v3098 = vunpack.c.l.b16 %v2963
        %v3099 = vunpack.c.l.b16 %v2964
        %v3100 = vunpack.c.l.b16 %v2965
        %v3101 = vunpack.c.l.b16 %v2966
        %v3102 = vunpack.c.l.b16 %v2967
        %v3103 = vunpack.c.l.b16 %v2968
        %v3104 = vunpack.c.l.b16 %v2969
        %v3105 = vunpack.c.l.b16 %v2970
        %v3106 = vunpack.c.l.b16 %v2971
        %v3107 = vunpack.c.l.b16 %v2972
        %v3108 = vunpack.c.l.b16 %v2973
        %v3109 = vunpack.c.l.b16 %v2974
        %v3110 = vunpack.c.l.b16 %v2975
        %v3111 = vunpack.c.l.b16 %v2976
        %v3112 = vunpack.c.l.b16 %v2977
        %v3113 = vunpack.c.l.b16 %v2978
        %v3114 = vunpack.c.l.b16 %v2979
        %v3115 = vunpack.c.l.b16 %v2980
        %v3116 = vunpack.c.l.b16 %v2981
        %v3117 = vunpack.c.l.b16 %v2982
        %v3118 = vunpack.c.l.b16 %v2983
        %v3119 = vunpack.c.l.b16 %v2984
        %v3120 = vunpack.c.l.b16 %v2985
        %v3121 = vunpack.c.l.b16 %v2986
        %v3122 = vunpack.c.l.b16 %v2987
        %v3123 = vunpack.c.l.b16 %v2988
        %v3124 = vunpack.c.l.b16 %v2989
        %v3125 = vunpack.c.l.b16 %v2990
        %v3126 = vunpack.c.l.b16 %v2991
        %v3127 = vunpack.c.l.b16 %v2992
        %v3128 = vunpack.c.l.b16 %v2993
        %v3129 = vunpack.c.l.b16 %v2994
        %v3130 = vunpack.c.l.b16 %v2995
        %v3131 = vunpack.c.l.b16 %v2996
        %v3132 = vunpack.c.l.b16 %v2997
        %v3133 = vpack.c.b16 %v3070, %v3069
        %v3134 = vpack.c.b16 %v3072, %v3071
        %v3135 = vpack.c.b16 %v3074, %v3073
        %v3136 = vpack.c.b16 %v3076, %v3075
        %v3137 = vpack.c.b16 %v3078, %v3077
        %v3138 = vpack.c.b16 %v3080, %v3079
        %v3139 = vpack.c.b16 %v3082, %v3081
        %v3140 = vpack.c.b16 %v3084, %v3083
        %v3141 = vpack.c.b16 %v3086, %v3085
        %v3142 = vpack.c.b16 %v3088, %v3087
        %v3143 = vpack.c.b16 %v3090, %v3089
        %v3144 = vpack.c.b16 %v3092, %v3091
        %v3145 = vpack.c.b16 %v3094, %v3093
        %v3146 = vpack.c.b16 %v3096, %v3095
        %v3147 = vpack.c.b16 %v3098, %v3097
        %v3148 = vpack.c.b16 %v3100, %v3099
        %v3149 = vpack.c.b16 %v3102, %v3101
        %v3150 = vpack.c.b16 %v3104, %v3103
        %v3151 = vpack.c.b16 %v3106, %v3105
        %v3152 = vpack.c.b16 %v3108, %v3107
        %v3153 = vpack.c.b16 %v3110, %v3109
        %v3154 = vpack.c.b16 %v3112, %v3111
        %v3155 = vpack.c.b16 %v3114, %v3113
        %v3156 = vpack.c.b16 %v3116, %v3115
        %v3157 = vpack.c.b16 %v3118, %v3117
        %v3158 = vpack.c.b16 %v3120, %v3119
        %v3159 = vpack.c.b16 %v3122, %v3121
        %v3160 = vpack.c.b16 %v3124, %v3123
        %v3161 = vpack.c.b16 %v3126, %v3125
        %v3162 = vpack.c.b16 %v3128, %v3127
        %v3163 = vpack.c.b16 %v3130, %v3129
        %v3164 = vpack.c.b16 %v3132, %v3131
        %3197 = vmatprep.subr.bf16.mxu0 0
        %3198 = vmatpush1.bf16.msra.mxu0 %v3133
        %3199 = vmatprep.subr.bf16.mxu0 0
        %3200 = vmatpush1.bf16.msra.mxu0 %v3134
        %3201 = vmatprep.subr.bf16.mxu0 0
        %3202 = vmatpush1.bf16.msra.mxu0 %v3135
        %3203 = vmatprep.subr.bf16.mxu0 0
        %3204 = vmatpush1.bf16.msra.mxu0 %v3136
        %3205 = vmatprep.subr.bf16.mxu0 0
        %3206 = vmatpush1.bf16.msra.mxu0 %v3137
        %3207 = vmatprep.subr.bf16.mxu0 0
        %3208 = vmatpush1.bf16.msra.mxu0 %v3138
        %3209 = vmatprep.subr.bf16.mxu0 0
        %3210 = vmatpush1.bf16.msra.mxu0 %v3139
        %3211 = vmatprep.subr.bf16.mxu0 0
        %3212 = vmatpush1.bf16.msra.mxu0 %v3140
        %3213 = vmatprep.subr.bf16.mxu0 0
        %3214 = vmatpush1.bf16.msra.mxu0 %v3141
        %3215 = vmatprep.subr.bf16.mxu0 0
        %3216 = vmatpush1.bf16.msra.mxu0 %v3142
        %3217 = vmatprep.subr.bf16.mxu0 0
        %3218 = vmatpush1.bf16.msra.mxu0 %v3143
        %3219 = vmatprep.subr.bf16.mxu0 0
        %3220 = vmatpush1.bf16.msra.mxu0 %v3144
        %3221 = vmatprep.subr.bf16.mxu0 0
        %3222 = vmatpush1.bf16.msra.mxu0 %v3145
        %3223 = vmatprep.subr.bf16.mxu0 0
        %3224 = vmatpush1.bf16.msra.mxu0 %v3146
        %3225 = vmatprep.subr.bf16.mxu0 0
        %3226 = vmatpush1.bf16.msra.mxu0 %v3147
        %3227 = vmatprep.subr.bf16.mxu0 0
        %3228 = vmatpush1.bf16.msra.mxu0 %v3148
        %3229 = vmatprep.mubr.bf16.mxu0 %v2636
        %3230 = vmatmul.mubr.bf16.gmra.mrb[0].mxu0 %v2488
        %v3231 = vpop.f32.mrb[0].mxu0
        %v3232 = vadd.f32 %v3003, %v3231
        %v3233 = vpop.f32.mrb[0].mxu0
        %v3234 = vpop.f32.mrb[0].mxu0
        %v3235 = vadd.f32 %v3003, %v3234
        %v3236 = vpop.f32.mrb[0].mxu0
        %3237 = vmatprep.mubr.bf16.mxu0 %v2637
        %3238 = vmatmul.mubr.bf16.gmra.mrb[0].mxu0 %v2489
        %v3239 = vpop.f32.mrb[0].mxu0
        %v3240 = vadd.f32 %v3003, %v3239
        %v3241 = vpop.f32.mrb[0].mxu0
        %v3242 = vpop.f32.mrb[0].mxu0
        %v3243 = vpop.f32.mrb[0].mxu0
        %3244 = vdwg.mxu0
        %3245 = vmatprep.subr.bf16.mxu0 0
        %3246 = vmatpush1.bf16.msra.mxu0 %v3149
        %3247 = vmatprep.subr.bf16.mxu0 0
        %3248 = vmatpush1.bf16.msra.mxu0 %v3150
        %3249 = vmatprep.subr.bf16.mxu0 0
        %3250 = vmatpush1.bf16.msra.mxu0 %v3151
        %3251 = vmatprep.subr.bf16.mxu0 0
        %3252 = vmatpush1.bf16.msra.mxu0 %v3152
        %3253 = vmatprep.subr.bf16.mxu0 0
        %3254 = vmatpush1.bf16.msra.mxu0 %v3153
        %3255 = vmatprep.subr.bf16.mxu0 0
        %3256 = vmatpush1.bf16.msra.mxu0 %v3154
        %3257 = vmatprep.subr.bf16.mxu0 0
        %3258 = vmatpush1.bf16.msra.mxu0 %v3155
        %3259 = vmatprep.subr.bf16.mxu0 0
        %3260 = vmatpush1.bf16.msra.mxu0 %v3156
        %3261 = vmatprep.subr.bf16.mxu0 0
        %3262 = vmatpush1.bf16.msra.mxu0 %v3157
        %3263 = vmatprep.subr.bf16.mxu0 0
        %3264 = vmatpush1.bf16.msra.mxu0 %v3158
        %3265 = vmatprep.subr.bf16.mxu0 0
        %3266 = vmatpush1.bf16.msra.mxu0 %v3159
        %3267 = vmatprep.subr.bf16.mxu0 0
        %3268 = vmatpush1.bf16.msra.mxu0 %v3160
        %3269 = vmatprep.subr.bf16.mxu0 0
        %3270 = vmatpush1.bf16.msra.mxu0 %v3161
        %3271 = vmatprep.subr.bf16.mxu0 0
        %3272 = vmatpush1.bf16.msra.mxu0 %v3162
        %3273 = vmatprep.subr.bf16.mxu0 0
        %3274 = vmatpush1.bf16.msra.mxu0 %v3163
        %3275 = vmatprep.subr.bf16.mxu0 0
        %3276 = vmatpush1.bf16.msra.mxu0 %v3164
        %3277 = vmatprep.mubr.bf16.mxu0 %v2932
        %3278 = vmatmul.mubr.bf16.gmra.mrb[0].mxu0 %v2784
        %v3279 = vpop.f32.mrb[0].mxu0
        %v3280 = vadd.f32 %v3232, %v3279
        %v3281 = vpop.f32.mrb[0].mxu0
        %v3282 = vpop.f32.mrb[0].mxu0
        %v3283 = vadd.f32 %v3235, %v3282
        %v3284 = vpop.f32.mrb[0].mxu0
        %3285 = vmatprep.mubr.bf16.mxu0 %v2933
        %3286 = vmatmul.mubr.bf16.gmra.mrb[0].mxu0 %v2785
        %v3287 = vpop.f32.mrb[0].mxu0
        %v3288 = vadd.f32 %v3240, %v3287
        %v3289 = vpop.f32.mrb[0].mxu0
        %v3290 = vpop.f32.mrb[0].mxu0
        %v3291 = vpop.f32.mrb[0].mxu0
        %3292 = vdwg.mxu0
        %v3293 = vadd.f32 %v1330, %v3280
        %v3294 = vadd.f32 %v1331, %v3283
        %v3295 = vadd.f32 %v1332, %v3288
        %v3296 = vld [vmem:[%s921] sm:$0x1]
        %v3297 = vld [vmem:[%s929] sm:$0x1]
        %3298 = vadd.xlane.f32.xlu0 %v3293
        %v3299 = vpop.xlane.xlu0 %3298
        %3300 = vadd.xlane.f32.xlu0 %v3294
        %v3301 = vpop.xlane.xlu0 %3300
        %v3302 = vsel %vm1339, %v3295, 0.0
        %3303 = vadd.xlane.f32.xlu0 %v3302
        %v3304 = vpop.xlane.xlu0 %3303
        %v3305 = vmul.f32 %v3299, %v1343
        %v3306 = vmul.f32 %v3301, %v1343
        %v3307 = vmul.f32 %v3304, %v1343
        %v3308 = vsub.f32 %v3293, %v3305
        %v3309 = vsub.f32 %v3294, %v3306
        %v3310 = vsub.f32 %v3295, %v3307
        %v3311 = vmul.f32 %v3308, %v3308
        %v3312 = vmul.f32 %v3309, %v3309
        %v3313 = vmul.f32 %v3310, %v3310
        %3314 = vadd.xlane.f32.xlu0 %v3311
        %v3315 = vpop.xlane.xlu0 %3314
        %3316 = vadd.xlane.f32.xlu0 %v3312
        %v3317 = vpop.xlane.xlu0 %3316
        %v3318 = vsel %vm1339, %v3313, 0.0
        %3319 = vadd.xlane.f32.xlu0 %v3318
        %v3320 = vpop.xlane.xlu0 %3319
        %v3321 = vmul.f32 %v3315, %v1343
        %v3322 = vmul.f32 %v3317, %v1343
        %v3323 = vmul.f32 %v3320, %v1343
        %v3324 = vadd.f32 %v3321, 1e-05
        %v3325 = vadd.f32 %v3322, 1e-05
        %v3326 = vadd.f32 %v3323, 1e-05
        %v3327 = vrsqrt.pop %v3324
        %v3328 = vrsqrt.pop %v3325
        %v3329 = vrsqrt.pop %v3326
        %v3330 = vmul.f32 %v3308, %v3327
        %v3331 = vmul.f32 %v3309, %v3328
        %v3332 = vmul.f32 %v3310, %v3329
        %v3334 = vlaneseq
        %v3335 = vshrl.u32 %v3334, 7
        %v3336 = vsub.s32 0, %v3335
        %v3337 = vrot.slane %v3296, %v3336
        %v3339 = vmul.f32 %v3330, %v3337
        %v3340 = vmul.f32 %v3331, %v3337
        %v3341 = vmul.f32 %v3332, %v3337
        %v3343 = vlaneseq
        %v3344 = vshrl.u32 %v3343, 7
        %v3345 = vsub.s32 0, %v3344
        %v3346 = vrot.slane %v3297, %v3345
        %v3348 = vadd.f32 %v3339, %v3346
        %v3349 = vadd.f32 %v3340, %v3346
        %v3350 = vadd.f32 %v3341, %v3346
        %v3351 = vpack.c.bf16 %v3349, %v3348
        %v3352 = vpack.c.bf16 %v3350, %v3350
        %v3353 = vld [vmem:[%s1085] sm:$0xff]
        %v3354 = vld [vmem:[%s1085 + $0x8] sm:$0xff]
        %v3355 = vld [vmem:[%s1085 + $0x10] sm:$0xff]
        %v3356 = vld [vmem:[%s1085 + $0x18] sm:$0xff]
        %v3357 = vld [vmem:[%s1085 + $0x20] sm:$0xff]
        %v3358 = vld [vmem:[%s1085 + $0x28] sm:$0xff]
        %v3359 = vld [vmem:[%s1085 + $0x30] sm:$0xff]
        %v3360 = vld [vmem:[%s1085 + $0x38] sm:$0xff]
        %v3361 = vld [vmem:[%s1085 + $0x40] sm:$0xff]
        %v3362 = vld [vmem:[%s1085 + $0x48] sm:$0xff]
        %v3363 = vld [vmem:[%s1085 + $0x50] sm:$0xff]
        %v3364 = vld [vmem:[%s1085 + $0x58] sm:$0xff]
        %v3365 = vld [vmem:[%s1085 + $0x60] sm:$0xff]
        %v3366 = vld [vmem:[%s1085 + $0x68] sm:$0xff]
        %v3367 = vld [vmem:[%s1085 + $0x70] sm:$0xff]
        %v3368 = vld [vmem:[%s1085 + $0x78] sm:$0xff]
        %v3369 = vld [vmem:[%s1085 + $0x80] sm:$0xff]
        %v3370 = vld [vmem:[%s1085 + $0x88] sm:$0xff]
        %v3371 = vld [vmem:[%s1085 + $0x90] sm:$0xff]
        %v3372 = vld [vmem:[%s1085 + $0x98] sm:$0xff]
        %v3373 = vld [vmem:[%s1085 + $0xa0] sm:$0xff]
        %v3374 = vld [vmem:[%s1085 + $0xa8] sm:$0xff]
        %v3375 = vld [vmem:[%s1085 + $0xb0] sm:$0xff]
        %v3376 = vld [vmem:[%s1085 + $0xb8] sm:$0xff]
        %v3377 = vld [vmem:[%s1085 + $0xc0] sm:$0xff]
        %v3378 = vld [vmem:[%s1085 + $0xc8] sm:$0xff]
        %v3379 = vld [vmem:[%s1085 + $0xd0] sm:$0xff]
        %v3380 = vld [vmem:[%s1085 + $0xd8] sm:$0xff]
        %v3381 = vld [vmem:[%s1085 + $0xe0] sm:$0xff]
        %v3382 = vld [vmem:[%s1085 + $0xe8] sm:$0xff]
        %v3383 = vld [vmem:[%s1085 + $0xf0] sm:$0xff]
        %v3384 = vld [vmem:[%s1085 + $0xf8] sm:$0xff]
        %v3385 = vld [vmem:[%s1089] sm:$0xf]
        %v3387 = vlaneseq
        %v3388 = vshrl.u32 %v3387, 7
        %v3389 = vsub.s32 0, %v3388
        %v3390 = vrot.slane %v3385, %v3389
        %v3391 = vlaneseq
        %v3392 = vshrl.u32 %v3391, 7
        %v3393 = vsub.s32 1, %v3392
        %v3394 = vrot.slane %v3385, %v3393
        %v3395 = vlaneseq
        %v3396 = vshrl.u32 %v3395, 7
        %v3397 = vsub.s32 2, %v3396
        %v3398 = vrot.slane %v3385, %v3397
        %v3399 = vlaneseq
        %v3400 = vshrl.u32 %v3399, 7
        %v3401 = vsub.s32 3, %v3400
        %v3402 = vrot.slane %v3385, %v3401
        %v3439 = vunpack.c.l.b16 %v3353
        %v3440 = vunpack.c.h.b16 %v3353
        %v3441 = vunpack.c.l.b16 %v3354
        %v3442 = vunpack.c.h.b16 %v3354
        %v3443 = vunpack.c.l.b16 %v3355
        %v3444 = vunpack.c.h.b16 %v3355
        %v3445 = vunpack.c.l.b16 %v3356
        %v3446 = vunpack.c.h.b16 %v3356
        %v3447 = vunpack.c.l.b16 %v3357
        %v3448 = vunpack.c.h.b16 %v3357
        %v3449 = vunpack.c.l.b16 %v3358
        %v3450 = vunpack.c.h.b16 %v3358
        %v3451 = vunpack.c.l.b16 %v3359
        %v3452 = vunpack.c.h.b16 %v3359
        %v3453 = vunpack.c.l.b16 %v3360
        %v3454 = vunpack.c.h.b16 %v3360
        %v3455 = vunpack.c.l.b16 %v3361
        %v3456 = vunpack.c.h.b16 %v3361
        %v3457 = vunpack.c.l.b16 %v3362
        %v3458 = vunpack.c.h.b16 %v3362
        %v3459 = vunpack.c.l.b16 %v3363
        %v3460 = vunpack.c.h.b16 %v3363
        %v3461 = vunpack.c.l.b16 %v3364
        %v3462 = vunpack.c.h.b16 %v3364
        %v3463 = vunpack.c.l.b16 %v3365
        %v3464 = vunpack.c.h.b16 %v3365
        %v3465 = vunpack.c.l.b16 %v3366
        %v3466 = vunpack.c.h.b16 %v3366
        %v3467 = vunpack.c.l.b16 %v3367
        %v3468 = vunpack.c.h.b16 %v3367
        %v3469 = vunpack.c.l.b16 %v3368
        %v3470 = vunpack.c.h.b16 %v3368
        %v3471 = vunpack.c.l.b16 %v3369
        %v3472 = vunpack.c.h.b16 %v3369
        %v3473 = vunpack.c.l.b16 %v3370
        %v3474 = vunpack.c.h.b16 %v3370
        %v3475 = vunpack.c.l.b16 %v3371
        %v3476 = vunpack.c.h.b16 %v3371
        %v3477 = vunpack.c.l.b16 %v3372
        %v3478 = vunpack.c.h.b16 %v3372
        %v3479 = vunpack.c.l.b16 %v3373
        %v3480 = vunpack.c.h.b16 %v3373
        %v3481 = vunpack.c.l.b16 %v3374
        %v3482 = vunpack.c.h.b16 %v3374
        %v3483 = vunpack.c.l.b16 %v3375
        %v3484 = vunpack.c.h.b16 %v3375
        %v3485 = vunpack.c.l.b16 %v3376
        %v3486 = vunpack.c.h.b16 %v3376
        %v3487 = vunpack.c.l.b16 %v3377
        %v3488 = vunpack.c.h.b16 %v3377
        %v3489 = vunpack.c.l.b16 %v3378
        %v3490 = vunpack.c.h.b16 %v3378
        %v3491 = vunpack.c.l.b16 %v3379
        %v3492 = vunpack.c.h.b16 %v3379
        %v3493 = vunpack.c.l.b16 %v3380
        %v3494 = vunpack.c.h.b16 %v3380
        %v3495 = vunpack.c.l.b16 %v3381
        %v3496 = vunpack.c.h.b16 %v3381
        %v3497 = vunpack.c.l.b16 %v3382
        %v3498 = vunpack.c.h.b16 %v3382
        %v3499 = vunpack.c.l.b16 %v3383
        %v3500 = vunpack.c.h.b16 %v3383
        %v3501 = vunpack.c.l.b16 %v3384
        %v3502 = vunpack.c.h.b16 %v3384
        %v3503 = vpack.c.b16 %v3443, %v3439
        %v3504 = vpack.c.b16 %v3444, %v3440
        %v3505 = vpack.c.b16 %v3445, %v3441
        %v3506 = vpack.c.b16 %v3446, %v3442
        %v3507 = vpack.c.b16 %v3451, %v3447
        %v3508 = vpack.c.b16 %v3452, %v3448
        %v3509 = vpack.c.b16 %v3453, %v3449
        %v3510 = vpack.c.b16 %v3454, %v3450
        %v3511 = vpack.c.b16 %v3459, %v3455
        %v3512 = vpack.c.b16 %v3460, %v3456
        %v3513 = vpack.c.b16 %v3461, %v3457
        %v3514 = vpack.c.b16 %v3462, %v3458
        %v3515 = vpack.c.b16 %v3467, %v3463
        %v3516 = vpack.c.b16 %v3468, %v3464
        %v3517 = vpack.c.b16 %v3469, %v3465
        %v3518 = vpack.c.b16 %v3470, %v3466
        %v3519 = vpack.c.b16 %v3475, %v3471
        %v3520 = vpack.c.b16 %v3476, %v3472
        %v3521 = vpack.c.b16 %v3477, %v3473
        %v3522 = vpack.c.b16 %v3478, %v3474
        %v3523 = vpack.c.b16 %v3483, %v3479
        %v3524 = vpack.c.b16 %v3484, %v3480
        %v3525 = vpack.c.b16 %v3485, %v3481
        %v3526 = vpack.c.b16 %v3486, %v3482
        %v3527 = vpack.c.b16 %v3491, %v3487
        %v3528 = vpack.c.b16 %v3492, %v3488
        %v3529 = vpack.c.b16 %v3493, %v3489
        %v3530 = vpack.c.b16 %v3494, %v3490
        %v3531 = vpack.c.b16 %v3499, %v3495
        %v3532 = vpack.c.b16 %v3500, %v3496
        %v3533 = vpack.c.b16 %v3501, %v3497
        %v3534 = vpack.c.b16 %v3502, %v3498
        %3567 = vmatprep.subr.bf16.mxu0 %v3504
        %3568 = vmatpush1.bf16.msra.mxu0 %v3503
        %3569 = vmatprep.subr.bf16.mxu0 %v3508
        %3570 = vmatpush1.bf16.msra.mxu0 %v3507
        %3571 = vmatprep.subr.bf16.mxu0 %v3512
        %3572 = vmatpush1.bf16.msra.mxu0 %v3511
        %3573 = vmatprep.subr.bf16.mxu0 %v3516
        %3574 = vmatpush1.bf16.msra.mxu0 %v3515
        %3575 = vmatprep.subr.bf16.mxu0 %v3520
        %3576 = vmatpush1.bf16.msra.mxu0 %v3519
        %3577 = vmatprep.subr.bf16.mxu0 %v3524
        %3578 = vmatpush1.bf16.msra.mxu0 %v3523
        %3579 = vmatprep.subr.bf16.mxu0 %v3528
        %3580 = vmatpush1.bf16.msra.mxu0 %v3527
        %3581 = vmatprep.subr.bf16.mxu0 %v3532
        %3582 = vmatpush1.bf16.msra.mxu0 %v3531
        %3583 = vmatprep.subr.bf16.mxu0 0
        %3584 = vmatpush1.bf16.msra.mxu0 0
        %3585 = vmatprep.subr.bf16.mxu0 0
        %3586 = vmatpush1.bf16.msra.mxu0 0
        %3587 = vmatprep.subr.bf16.mxu0 0
        %3588 = vmatpush1.bf16.msra.mxu0 0
        %3589 = vmatprep.subr.bf16.mxu0 0
        %3590 = vmatpush1.bf16.msra.mxu0 0
        %3591 = vmatprep.subr.bf16.mxu0 0
        %3592 = vmatpush1.bf16.msra.mxu0 0
        %3593 = vmatprep.subr.bf16.mxu0 0
        %3594 = vmatpush1.bf16.msra.mxu0 0
        %3595 = vmatprep.subr.bf16.mxu0 0
        %3596 = vmatpush1.bf16.msra.mxu0 0
        %3597 = vmatprep.subr.bf16.mxu0 0
        %3598 = vmatpush1.bf16.msra.mxu0 0
        %3599 = vmatprep.mubr.bf16.mxu0 0
        %3600 = vmatmul.mubr.bf16.gmra.mrb[0].mxu0 %v3351
        %v3601 = vpop.f32.mrb[0].mxu0
        %v3602 = vadd.f32 %v3390, %v3601
        %v3603 = vpop.f32.mrb[0].mxu0
        %v3604 = vadd.f32 %v3394, %v3603
        %v3605 = vpop.f32.mrb[0].mxu0
        %v3606 = vadd.f32 %v3390, %v3605
        %v3607 = vpop.f32.mrb[0].mxu0
        %v3608 = vadd.f32 %v3394, %v3607
        %3609 = vmatprep.mubr.bf16.mxu0 0
        %3610 = vmatmul.mubr.bf16.gmra.mrb[0].mxu0 %v3352
        %v3611 = vpop.f32.mrb[0].mxu0
        %v3612 = vadd.f32 %v3390, %v3611
        %v3613 = vpop.f32.mrb[0].mxu0
        %v3614 = vadd.f32 %v3394, %v3613
        %v3615 = vpop.f32.mrb[0].mxu0
        %v3616 = vpop.f32.mrb[0].mxu0
        %3617 = vdwg.mxu0
        %3618 = vmatprep.subr.bf16.mxu0 %v3506
        %3619 = vmatpush1.bf16.msra.mxu0 %v3505
        %3620 = vmatprep.subr.bf16.mxu0 %v3510
        %3621 = vmatpush1.bf16.msra.mxu0 %v3509
        %3622 = vmatprep.subr.bf16.mxu0 %v3514
        %3623 = vmatpush1.bf16.msra.mxu0 %v3513
        %3624 = vmatprep.subr.bf16.mxu0 %v3518
        %3625 = vmatpush1.bf16.msra.mxu0 %v3517
        %3626 = vmatprep.subr.bf16.mxu0 %v3522
        %3627 = vmatpush1.bf16.msra.mxu0 %v3521
        %3628 = vmatprep.subr.bf16.mxu0 %v3526
        %3629 = vmatpush1.bf16.msra.mxu0 %v3525
        %3630 = vmatprep.subr.bf16.mxu0 %v3530
        %3631 = vmatpush1.bf16.msra.mxu0 %v3529
        %3632 = vmatprep.subr.bf16.mxu0 %v3534
        %3633 = vmatpush1.bf16.msra.mxu0 %v3533
        %3634 = vmatprep.subr.bf16.mxu0 0
        %3635 = vmatpush1.bf16.msra.mxu0 0
        %3636 = vmatprep.subr.bf16.mxu0 0
        %3637 = vmatpush1.bf16.msra.mxu0 0
        %3638 = vmatprep.subr.bf16.mxu0 0
        %3639 = vmatpush1.bf16.msra.mxu0 0
        %3640 = vmatprep.subr.bf16.mxu0 0
        %3641 = vmatpush1.bf16.msra.mxu0 0
        %3642 = vmatprep.subr.bf16.mxu0 0
        %3643 = vmatpush1.bf16.msra.mxu0 0
        %3644 = vmatprep.subr.bf16.mxu0 0
        %3645 = vmatpush1.bf16.msra.mxu0 0
        %3646 = vmatprep.subr.bf16.mxu0 0
        %3647 = vmatpush1.bf16.msra.mxu0 0
        %3648 = vmatprep.subr.bf16.mxu0 0
        %3649 = vmatpush1.bf16.msra.mxu0 0
        %3650 = vmatprep.mubr.bf16.mxu0 0
        %3651 = vmatmul.mubr.bf16.gmra.mrb[0].mxu0 %v3351
        %v3652 = vpop.f32.mrb[0].mxu0
        %v3653 = vadd.f32 %v3398, %v3652
        %v3654 = vpop.f32.mrb[0].mxu0
        %v3655 = vadd.f32 %v3402, %v3654
        %v3656 = vpop.f32.mrb[0].mxu0
        %v3657 = vadd.f32 %v3398, %v3656
        %v3658 = vpop.f32.mrb[0].mxu0
        %v3659 = vadd.f32 %v3402, %v3658
        %3660 = vmatprep.mubr.bf16.mxu0 0
        %3661 = vmatmul.mubr.bf16.gmra.mrb[0].mxu0 %v3352
        %v3662 = vpop.f32.mrb[0].mxu0
        %v3663 = vadd.f32 %v3398, %v3662
        %v3664 = vpop.f32.mrb[0].mxu0
        %v3665 = vadd.f32 %v3402, %v3664
        %v3666 = vpop.f32.mrb[0].mxu0
        %v3667 = vpop.f32.mrb[0].mxu0
        %3668 = vdwg.mxu0
        %v3669 = vmul.f32 %v3602, 1.702
        %v3670 = vmul.f32 %v3604, 1.702
        %v3671 = vmul.f32 %v3653, 1.702
        %v3672 = vmul.f32 %v3655, 1.702
        %v3673 = vmul.f32 %v3606, 1.702
        %v3674 = vmul.f32 %v3608, 1.702
        %v3675 = vmul.f32 %v3657, 1.702
        %v3676 = vmul.f32 %v3659, 1.702
        %v3677 = vmul.f32 %v3612, 1.702
        %v3678 = vmul.f32 %v3614, 1.702
        %v3679 = vmul.f32 %v3663, 1.702
        %v3680 = vmul.f32 %v3665, 1.702
        %v3681 = vxor.u32 %v3669, 2147483648
        %v3682 = vxor.u32 %v3670, 2147483648
        %v3683 = vxor.u32 %v3671, 2147483648
        %v3684 = vxor.u32 %v3672, 2147483648
        %v3685 = vxor.u32 %v3673, 2147483648
        %v3686 = vxor.u32 %v3674, 2147483648
        %v3687 = vxor.u32 %v3675, 2147483648
        %v3688 = vxor.u32 %v3676, 2147483648
        %v3689 = vxor.u32 %v3677, 2147483648
        %v3690 = vxor.u32 %v3678, 2147483648
        %v3691 = vxor.u32 %v3679, 2147483648
        %v3692 = vxor.u32 %v3680, 2147483648
        %v3693 = vmul.f32 %v3681, 1.442695
        %v3694 = vpow.pop %v3693
        %v3695 = vmul.f32 %v3682, 1.442695
        %v3696 = vpow.pop %v3695
        %v3697 = vmul.f32 %v3683, 1.442695
        %v3698 = vpow.pop %v3697
        %v3699 = vmul.f32 %v3684, 1.442695
        %v3700 = vpow.pop %v3699
        %v3701 = vmul.f32 %v3685, 1.442695
        %v3702 = vpow.pop %v3701
        %v3703 = vmul.f32 %v3686, 1.442695
        %v3704 = vpow.pop %v3703
        %v3705 = vmul.f32 %v3687, 1.442695
        %v3706 = vpow.pop %v3705
        %v3707 = vmul.f32 %v3688, 1.442695
        %v3708 = vpow.pop %v3707
        %v3709 = vmul.f32 %v3689, 1.442695
        %v3710 = vpow.pop %v3709
        %v3711 = vmul.f32 %v3690, 1.442695
        %v3712 = vpow.pop %v3711
        %v3713 = vmul.f32 %v3691, 1.442695
        %v3714 = vpow.pop %v3713
        %v3715 = vmul.f32 %v3692, 1.442695
        %v3716 = vpow.pop %v3715
        %v3717 = vadd.f32 %v3694, 1.0
        %v3718 = vadd.f32 %v3696, 1.0
        %v3719 = vadd.f32 %v3698, 1.0
        %v3720 = vadd.f32 %v3700, 1.0
        %v3721 = vadd.f32 %v3702, 1.0
        %v3722 = vadd.f32 %v3704, 1.0
        %v3723 = vadd.f32 %v3706, 1.0
        %v3724 = vadd.f32 %v3708, 1.0
        %v3725 = vadd.f32 %v3710, 1.0
        %v3726 = vadd.f32 %v3712, 1.0
        %v3727 = vadd.f32 %v3714, 1.0
        %v3728 = vadd.f32 %v3716, 1.0
        %v3729 = vrcp.pop %v3717
        %v3730 = vmul.f32 1.0, %v3729
        %v3731 = vrcp.pop %v3718
        %v3732 = vmul.f32 1.0, %v3731
        %v3733 = vrcp.pop %v3719
        %v3734 = vmul.f32 1.0, %v3733
        %v3735 = vrcp.pop %v3720
        %v3736 = vmul.f32 1.0, %v3735
        %v3737 = vrcp.pop %v3721
        %v3738 = vmul.f32 1.0, %v3737
        %v3739 = vrcp.pop %v3722
        %v3740 = vmul.f32 1.0, %v3739
        %v3741 = vrcp.pop %v3723
        %v3742 = vmul.f32 1.0, %v3741
        %v3743 = vrcp.pop %v3724
        %v3744 = vmul.f32 1.0, %v3743
        %v3745 = vrcp.pop %v3725
        %v3746 = vmul.f32 1.0, %v3745
        %v3747 = vrcp.pop %v3726
        %v3748 = vmul.f32 1.0, %v3747
        %v3749 = vrcp.pop %v3727
        %v3750 = vmul.f32 1.0, %v3749
        %v3751 = vrcp.pop %v3728
        %v3752 = vmul.f32 1.0, %v3751
        %v3753 = vmul.f32 %v3602, %v3730
        %v3754 = vmul.f32 %v3604, %v3732
        %v3755 = vmul.f32 %v3653, %v3734
        %v3756 = vmul.f32 %v3655, %v3736
        %v3757 = vmul.f32 %v3606, %v3738
        %v3758 = vmul.f32 %v3608, %v3740
        %v3759 = vmul.f32 %v3657, %v3742
        %v3760 = vmul.f32 %v3659, %v3744
        %v3761 = vmul.f32 %v3612, %v3746
        %v3762 = vmul.f32 %v3614, %v3748
        %v3763 = vmul.f32 %v3663, %v3750
        %v3764 = vmul.f32 %v3665, %v3752
        %v3765 = vpack.c.bf16 %v3757, %v3753
        %v3766 = vpack.c.bf16 %v3758, %v3754
        %v3767 = vpack.c.bf16 %v3759, %v3755
        %v3768 = vpack.c.bf16 %v3760, %v3756
        %v3769 = vpack.c.bf16 %v3761, %v3761
        %v3770 = vpack.c.bf16 %v3762, %v3762
        %v3771 = vpack.c.bf16 %v3763, %v3763
        %v3772 = vpack.c.bf16 %v3764, %v3764
        %v3773 = vld [vmem:[%s938] sm:$0xf]
        %v3774 = vld [vmem:[%s938 + $0x4] sm:$0xf]
        %v3775 = vld [vmem:[%s938 + $0x8] sm:$0xf]
        %v3776 = vld [vmem:[%s938 + $0xc] sm:$0xf]
        %v3777 = vld [vmem:[%s938 + $0x10] sm:$0xf]
        %v3778 = vld [vmem:[%s938 + $0x14] sm:$0xf]
        %v3779 = vld [vmem:[%s938 + $0x18] sm:$0xf]
        %v3780 = vld [vmem:[%s938 + $0x1c] sm:$0xf]
        %v3781 = vld [vmem:[%s938 + $0x20] sm:$0xf]
        %v3782 = vld [vmem:[%s938 + $0x24] sm:$0xf]
        %v3783 = vld [vmem:[%s938 + $0x28] sm:$0xf]
        %v3784 = vld [vmem:[%s938 + $0x2c] sm:$0xf]
        %v3785 = vld [vmem:[%s938 + $0x30] sm:$0xf]
        %v3786 = vld [vmem:[%s938 + $0x34] sm:$0xf]
        %v3787 = vld [vmem:[%s938 + $0x38] sm:$0xf]
        %v3788 = vld [vmem:[%s938 + $0x3c] sm:$0xf]
        %v3789 = vld [vmem:[%s938 + $0x40] sm:$0xf]
        %v3790 = vld [vmem:[%s938 + $0x44] sm:$0xf]
        %v3791 = vld [vmem:[%s938 + $0x48] sm:$0xf]
        %v3792 = vld [vmem:[%s938 + $0x4c] sm:$0xf]
        %v3793 = vld [vmem:[%s938 + $0x50] sm:$0xf]
        %v3794 = vld [vmem:[%s938 + $0x54] sm:$0xf]
        %v3795 = vld [vmem:[%s938 + $0x58] sm:$0xf]
        %v3796 = vld [vmem:[%s938 + $0x5c] sm:$0xf]
        %v3797 = vld [vmem:[%s938 + $0x60] sm:$0xf]
        %v3798 = vld [vmem:[%s938 + $0x64] sm:$0xf]
        %v3799 = vld [vmem:[%s938 + $0x68] sm:$0xf]
        %v3800 = vld [vmem:[%s938 + $0x6c] sm:$0xf]
        %v3801 = vld [vmem:[%s938 + $0x70] sm:$0xf]
        %v3802 = vld [vmem:[%s938 + $0x74] sm:$0xf]
        %v3803 = vld [vmem:[%s938 + $0x78] sm:$0xf]
        %v3804 = vld [vmem:[%s938 + $0x7c] sm:$0xf]
        %v3805 = vld [vmem:[%s938 + $0x80] sm:$0xf]
        %v3806 = vld [vmem:[%s938 + $0x84] sm:$0xf]
        %v3807 = vld [vmem:[%s938 + $0x88] sm:$0xf]
        %v3808 = vld [vmem:[%s938 + $0x8c] sm:$0xf]
        %v3809 = vld [vmem:[%s938 + $0x90] sm:$0xf]
        %v3810 = vld [vmem:[%s938 + $0x94] sm:$0xf]
        %v3811 = vld [vmem:[%s938 + $0x98] sm:$0xf]
        %v3812 = vld [vmem:[%s938 + $0x9c] sm:$0xf]
        %v3813 = vld [vmem:[%s938 + $0xa0] sm:$0xf]
        %v3814 = vld [vmem:[%s938 + $0xa4] sm:$0xf]
        %v3815 = vld [vmem:[%s938 + $0xa8] sm:$0xf]
        %v3816 = vld [vmem:[%s938 + $0xac] sm:$0xf]
        %v3817 = vld [vmem:[%s938 + $0xb0] sm:$0xf]
        %v3818 = vld [vmem:[%s938 + $0xb4] sm:$0xf]
        %v3819 = vld [vmem:[%s938 + $0xb8] sm:$0xf]
        %v3820 = vld [vmem:[%s938 + $0xbc] sm:$0xf]
        %v3821 = vld [vmem:[%s938 + $0xc0] sm:$0xf]
        %v3822 = vld [vmem:[%s938 + $0xc4] sm:$0xf]
        %v3823 = vld [vmem:[%s938 + $0xc8] sm:$0xf]
        %v3824 = vld [vmem:[%s938 + $0xcc] sm:$0xf]
        %v3825 = vld [vmem:[%s938 + $0xd0] sm:$0xf]
        %v3826 = vld [vmem:[%s938 + $0xd4] sm:$0xf]
        %v3827 = vld [vmem:[%s938 + $0xd8] sm:$0xf]
        %v3828 = vld [vmem:[%s938 + $0xdc] sm:$0xf]
        %v3829 = vld [vmem:[%s938 + $0xe0] sm:$0xf]
        %v3830 = vld [vmem:[%s938 + $0xe4] sm:$0xf]
        %v3831 = vld [vmem:[%s938 + $0xe8] sm:$0xf]
        %v3832 = vld [vmem:[%s938 + $0xec] sm:$0xf]
        %v3833 = vld [vmem:[%s938 + $0xf0] sm:$0xf]
        %v3834 = vld [vmem:[%s938 + $0xf4] sm:$0xf]
        %v3835 = vld [vmem:[%s938 + $0xf8] sm:$0xf]
        %v3836 = vld [vmem:[%s938 + $0xfc] sm:$0xf]
        %v3837 = vld [vmem:[%s946] sm:$0x1]
        %v3839 = vlaneseq
        %v3840 = vshrl.u32 %v3839, 7
        %v3841 = vsub.s32 0, %v3840
        %v3842 = vrot.slane %v3837, %v3841
        %v3908 = vunpack.c.l.b16 %v3773
        %v3909 = vunpack.c.l.b16 %v3774
        %v3910 = vunpack.c.l.b16 %v3775
        %v3911 = vunpack.c.l.b16 %v3776
        %v3912 = vunpack.c.l.b16 %v3777
        %v3913 = vunpack.c.l.b16 %v3778
        %v3914 = vunpack.c.l.b16 %v3779
        %v3915 = vunpack.c.l.b16 %v3780
        %v3916 = vunpack.c.l.b16 %v3781
        %v3917 = vunpack.c.l.b16 %v3782
        %v3918 = vunpack.c.l.b16 %v3783
        %v3919 = vunpack.c.l.b16 %v3784
        %v3920 = vunpack.c.l.b16 %v3785
        %v3921 = vunpack.c.l.b16 %v3786
        %v3922 = vunpack.c.l.b16 %v3787
        %v3923 = vunpack.c.l.b16 %v3788
        %v3924 = vunpack.c.l.b16 %v3789
        %v3925 = vunpack.c.l.b16 %v3790
        %v3926 = vunpack.c.l.b16 %v3791
        %v3927 = vunpack.c.l.b16 %v3792
        %v3928 = vunpack.c.l.b16 %v3793
        %v3929 = vunpack.c.l.b16 %v3794
        %v3930 = vunpack.c.l.b16 %v3795
        %v3931 = vunpack.c.l.b16 %v3796
        %v3932 = vunpack.c.l.b16 %v3797
        %v3933 = vunpack.c.l.b16 %v3798
        %v3934 = vunpack.c.l.b16 %v3799
        %v3935 = vunpack.c.l.b16 %v3800
        %v3936 = vunpack.c.l.b16 %v3801
        %v3937 = vunpack.c.l.b16 %v3802
        %v3938 = vunpack.c.l.b16 %v3803
        %v3939 = vunpack.c.l.b16 %v3804
        %v3940 = vunpack.c.l.b16 %v3805
        %v3941 = vunpack.c.l.b16 %v3806
        %v3942 = vunpack.c.l.b16 %v3807
        %v3943 = vunpack.c.l.b16 %v3808
        %v3944 = vunpack.c.l.b16 %v3809
        %v3945 = vunpack.c.l.b16 %v3810
        %v3946 = vunpack.c.l.b16 %v3811
        %v3947 = vunpack.c.l.b16 %v3812
        %v3948 = vunpack.c.l.b16 %v3813
        %v3949 = vunpack.c.l.b16 %v3814
        %v3950 = vunpack.c.l.b16 %v3815
        %v3951 = vunpack.c.l.b16 %v3816
        %v3952 = vunpack.c.l.b16 %v3817
        %v3953 = vunpack.c.l.b16 %v3818
        %v3954 = vunpack.c.l.b16 %v3819
        %v3955 = vunpack.c.l.b16 %v3820
        %v3956 = vunpack.c.l.b16 %v3821
        %v3957 = vunpack.c.l.b16 %v3822
        %v3958 = vunpack.c.l.b16 %v3823
        %v3959 = vunpack.c.l.b16 %v3824
        %v3960 = vunpack.c.l.b16 %v3825
        %v3961 = vunpack.c.l.b16 %v3826
        %v3962 = vunpack.c.l.b16 %v3827
        %v3963 = vunpack.c.l.b16 %v3828
        %v3964 = vunpack.c.l.b16 %v3829
        %v3965 = vunpack.c.l.b16 %v3830
        %v3966 = vunpack.c.l.b16 %v3831
        %v3967 = vunpack.c.l.b16 %v3832
        %v3968 = vunpack.c.l.b16 %v3833
        %v3969 = vunpack.c.l.b16 %v3834
        %v3970 = vunpack.c.l.b16 %v3835
        %v3971 = vunpack.c.l.b16 %v3836
        %v3972 = vpack.c.b16 %v3909, %v3908
        %v3973 = vpack.c.b16 %v3911, %v3910
        %v3974 = vpack.c.b16 %v3913, %v3912
        %v3975 = vpack.c.b16 %v3915, %v3914
        %v3976 = vpack.c.b16 %v3917, %v3916
        %v3977 = vpack.c.b16 %v3919, %v3918
        %v3978 = vpack.c.b16 %v3921, %v3920
        %v3979 = vpack.c.b16 %v3923, %v3922
        %v3980 = vpack.c.b16 %v3925, %v3924
        %v3981 = vpack.c.b16 %v3927, %v3926
        %v3982 = vpack.c.b16 %v3929, %v3928
        %v3983 = vpack.c.b16 %v3931, %v3930
        %v3984 = vpack.c.b16 %v3933, %v3932
        %v3985 = vpack.c.b16 %v3935, %v3934
        %v3986 = vpack.c.b16 %v3937, %v3936
        %v3987 = vpack.c.b16 %v3939, %v3938
        %v3988 = vpack.c.b16 %v3941, %v3940
        %v3989 = vpack.c.b16 %v3943, %v3942
        %v3990 = vpack.c.b16 %v3945, %v3944
        %v3991 = vpack.c.b16 %v3947, %v3946
        %v3992 = vpack.c.b16 %v3949, %v3948
        %v3993 = vpack.c.b16 %v3951, %v3950
        %v3994 = vpack.c.b16 %v3953, %v3952
        %v3995 = vpack.c.b16 %v3955, %v3954
        %v3996 = vpack.c.b16 %v3957, %v3956
        %v3997 = vpack.c.b16 %v3959, %v3958
        %v3998 = vpack.c.b16 %v3961, %v3960
        %v3999 = vpack.c.b16 %v3963, %v3962
        %v4000 = vpack.c.b16 %v3965, %v3964
        %v4001 = vpack.c.b16 %v3967, %v3966
        %v4002 = vpack.c.b16 %v3969, %v3968
        %v4003 = vpack.c.b16 %v3971, %v3970
        %4036 = vmatprep.subr.bf16.mxu0 0
        %4037 = vmatpush1.bf16.msra.mxu0 %v3972
        %4038 = vmatprep.subr.bf16.mxu0 0
        %4039 = vmatpush1.bf16.msra.mxu0 %v3973
        %4040 = vmatprep.subr.bf16.mxu0 0
        %4041 = vmatpush1.bf16.msra.mxu0 %v3974
        %4042 = vmatprep.subr.bf16.mxu0 0
        %4043 = vmatpush1.bf16.msra.mxu0 %v3975
        %4044 = vmatprep.subr.bf16.mxu0 0
        %4045 = vmatpush1.bf16.msra.mxu0 %v3976
        %4046 = vmatprep.subr.bf16.mxu0 0
        %4047 = vmatpush1.bf16.msra.mxu0 %v3977
        %4048 = vmatprep.subr.bf16.mxu0 0
        %4049 = vmatpush1.bf16.msra.mxu0 %v3978
        %4050 = vmatprep.subr.bf16.mxu0 0
        %4051 = vmatpush1.bf16.msra.mxu0 %v3979
        %4052 = vmatprep.subr.bf16.mxu0 0
        %4053 = vmatpush1.bf16.msra.mxu0 %v3980
        %4054 = vmatprep.subr.bf16.mxu0 0
        %4055 = vmatpush1.bf16.msra.mxu0 %v3981
        %4056 = vmatprep.subr.bf16.mxu0 0
        %4057 = vmatpush1.bf16.msra.mxu0 %v3982
        %4058 = vmatprep.subr.bf16.mxu0 0
        %4059 = vmatpush1.bf16.msra.mxu0 %v3983
        %4060 = vmatprep.subr.bf16.mxu0 0
        %4061 = vmatpush1.bf16.msra.mxu0 %v3984
        %4062 = vmatprep.subr.bf16.mxu0 0
        %4063 = vmatpush1.bf16.msra.mxu0 %v3985
        %4064 = vmatprep.subr.bf16.mxu0 0
        %4065 = vmatpush1.bf16.msra.mxu0 %v3986
        %4066 = vmatprep.subr.bf16.mxu0 0
        %4067 = vmatpush1.bf16.msra.mxu0 %v3987
        %4068 = vmatprep.mubr.bf16.mxu0 %v3766
        %4069 = vmatmul.mubr.bf16.gmra.mrb[0].mxu0 %v3765
        %v4070 = vpop.f32.mrb[0].mxu0
        %v4071 = vadd.f32 %v3842, %v4070
        %v4072 = vpop.f32.mrb[0].mxu0
        %v4073 = vpop.f32.mrb[0].mxu0
        %v4074 = vadd.f32 %v3842, %v4073
        %v4075 = vpop.f32.mrb[0].mxu0
        %4076 = vmatprep.mubr.bf16.mxu0 %v3770
        %4077 = vmatmul.mubr.bf16.gmra.mrb[0].mxu0 %v3769
        %v4078 = vpop.f32.mrb[0].mxu0
        %v4079 = vadd.f32 %v3842, %v4078
        %v4080 = vpop.f32.mrb[0].mxu0
        %v4081 = vpop.f32.mrb[0].mxu0
        %v4082 = vpop.f32.mrb[0].mxu0
        %4083 = vdwg.mxu0
        %4084 = vmatprep.subr.bf16.mxu0 0
        %4085 = vmatpush1.bf16.msra.mxu0 %v3988
        %4086 = vmatprep.subr.bf16.mxu0 0
        %4087 = vmatpush1.bf16.msra.mxu0 %v3989
        %4088 = vmatprep.subr.bf16.mxu0 0
        %4089 = vmatpush1.bf16.msra.mxu0 %v3990
        %4090 = vmatprep.subr.bf16.mxu0 0
        %4091 = vmatpush1.bf16.msra.mxu0 %v3991
        %4092 = vmatprep.subr.bf16.mxu0 0
        %4093 = vmatpush1.bf16.msra.mxu0 %v3992
        %4094 = vmatprep.subr.bf16.mxu0 0
        %4095 = vmatpush1.bf16.msra.mxu0 %v3993
        %4096 = vmatprep.subr.bf16.mxu0 0
        %4097 = vmatpush1.bf16.msra.mxu0 %v3994
        %4098 = vmatprep.subr.bf16.mxu0 0
        %4099 = vmatpush1.bf16.msra.mxu0 %v3995
        %4100 = vmatprep.subr.bf16.mxu0 0
        %4101 = vmatpush1.bf16.msra.mxu0 %v3996
        %4102 = vmatprep.subr.bf16.mxu0 0
        %4103 = vmatpush1.bf16.msra.mxu0 %v3997
        %4104 = vmatprep.subr.bf16.mxu0 0
        %4105 = vmatpush1.bf16.msra.mxu0 %v3998
        %4106 = vmatprep.subr.bf16.mxu0 0
        %4107 = vmatpush1.bf16.msra.mxu0 %v3999
        %4108 = vmatprep.subr.bf16.mxu0 0
        %4109 = vmatpush1.bf16.msra.mxu0 %v4000
        %4110 = vmatprep.subr.bf16.mxu0 0
        %4111 = vmatpush1.bf16.msra.mxu0 %v4001
        %4112 = vmatprep.subr.bf16.mxu0 0
        %4113 = vmatpush1.bf16.msra.mxu0 %v4002
        %4114 = vmatprep.subr.bf16.mxu0 0
        %4115 = vmatpush1.bf16.msra.mxu0 %v4003
        %4116 = vmatprep.mubr.bf16.mxu0 %v3768
        %4117 = vmatmul.mubr.bf16.gmra.mrb[0].mxu0 %v3767
        %v4118 = vpop.f32.mrb[0].mxu0
        %v4119 = vadd.f32 %v4071, %v4118
        %v4120 = vpop.f32.mrb[0].mxu0
        %v4121 = vpop.f32.mrb[0].mxu0
        %v4122 = vadd.f32 %v4074, %v4121
        %v4123 = vpop.f32.mrb[0].mxu0
        %4124 = vmatprep.mubr.bf16.mxu0 %v3772
        %4125 = vmatmul.mubr.bf16.gmra.mrb[0].mxu0 %v3771
        %v4126 = vpop.f32.mrb[0].mxu0
        %v4127 = vadd.f32 %v4079, %v4126
        %v4128 = vpop.f32.mrb[0].mxu0
        %v4129 = vpop.f32.mrb[0].mxu0
        %v4130 = vpop.f32.mrb[0].mxu0
        %4131 = vdwg.mxu0
        %v4132 = vadd.f32 %v3293, %v4119
        %v4133 = vadd.f32 %v3294, %v4122
        %v4134 = vadd.f32 %v3295, %v4127
        %4135 = vst [vmem:[#allocation2] sm:$0xff] %v4132
        %4136 = vst [vmem:[#allocation2 + $0x8] sm:$0xff] %v4133
        %4137 = vst [vmem:[#allocation2 + $0x10] sm:$0x1] %v4134
        %p4138 = scmp.eq.s32.totalorder %s44, 1
        // Predicated region
        $region165: #{visual_model_forward.1} parent=107 // pred_check
          %p4139 = pneg %p4138
        $region166: #{visual_model_forward.1} parent=107 // pred_check_branch
          %4141 = sbr.rel (%p4139) target = $region168
        $region167: #{visual_model_forward.1} parent=107 // pred_region
          %v4142 = vld [vmem:[#allocation18] sm:$0x1]
          %v4143 = vld [vmem:[#allocation19] sm:$0x1]
          %v4144 = vsel %vm1339, %v4132, 0.0
          %4145 = vadd.xlane.f32.xlu0 %v4144
          %v4146 = vpop.xlane.xlu0 %4145
          %v4147 = vmul.f32 %v4146, %v1343
          %v4148 = vsub.f32 %v4132, %v4147
          %v4149 = vmul.f32 %v4148, %v4148
          %v4150 = vsel %vm1339, %v4149, 0.0
          %4151 = vadd.xlane.f32.xlu0 %v4150
          %v4152 = vpop.xlane.xlu0 %4151
          %v4153 = vmul.f32 %v4152, %v1343
          %v4154 = vadd.f32 %v4153, 1e-05
          %v4155 = vrsqrt.pop %v4154
          %v4156 = vmul.f32 %v4148, %v4155
          %v4157 = vmul.f32 %v4156, %v4142
          %v4158 = vadd.f32 %v4157, %v4143
          %v4159 = vpack.c.bf16 %v4158, %v4158
          %v4160 = vld [vmem:[%s21] sm:$0xf]
          %v4161 = vld [vmem:[%s21 + $0x4] sm:$0xf]
          %v4162 = vld [vmem:[%s21 + $0x8] sm:$0xf]
          %v4163 = vld [vmem:[%s21 + $0xc] sm:$0xf]
          %v4164 = vld [vmem:[%s21 + $0x10] sm:$0xf]
          %v4165 = vld [vmem:[%s21 + $0x14] sm:$0xf]
          %v4166 = vld [vmem:[%s21 + $0x18] sm:$0xf]
          %v4167 = vld [vmem:[%s21 + $0x1c] sm:$0xf]
          %v4168 = vld [vmem:[%s21 + $0x20] sm:$0xf]
          %v4169 = vld [vmem:[%s21 + $0x24] sm:$0xf]
          %v4170 = vld [vmem:[%s21 + $0x28] sm:$0xf]
          %v4171 = vld [vmem:[%s21 + $0x2c] sm:$0xf]
          %v4172 = vld [vmem:[%s21 + $0x30] sm:$0xf]
          %v4173 = vld [vmem:[%s21 + $0x34] sm:$0xf]
          %v4174 = vld [vmem:[%s21 + $0x38] sm:$0xf]
          %v4175 = vld [vmem:[%s21 + $0x3c] sm:$0xf]
          %v4192 = vunpack.c.l.b16 %v4160
          %v4193 = vunpack.c.l.b16 %v4161
          %v4194 = vunpack.c.l.b16 %v4162
          %v4195 = vunpack.c.l.b16 %v4163
          %v4196 = vunpack.c.l.b16 %v4164
          %v4197 = vunpack.c.l.b16 %v4165
          %v4198 = vunpack.c.l.b16 %v4166
          %v4199 = vunpack.c.l.b16 %v4167
          %v4200 = vunpack.c.l.b16 %v4168
          %v4201 = vunpack.c.l.b16 %v4169
          %v4202 = vunpack.c.l.b16 %v4170
          %v4203 = vunpack.c.l.b16 %v4171
          %v4204 = vunpack.c.l.b16 %v4172
          %v4205 = vunpack.c.l.b16 %v4173
          %v4206 = vunpack.c.l.b16 %v4174
          %v4207 = vunpack.c.l.b16 %v4175
          %v4208 = vpack.c.b16 %v4193, %v4192
          %v4209 = vpack.c.b16 %v4195, %v4194
          %v4210 = vpack.c.b16 %v4197, %v4196
          %v4211 = vpack.c.b16 %v4199, %v4198
          %v4212 = vpack.c.b16 %v4201, %v4200
          %v4213 = vpack.c.b16 %v4203, %v4202
          %v4214 = vpack.c.b16 %v4205, %v4204
          %v4215 = vpack.c.b16 %v4207, %v4206
          %4224 = vmatprep.subr.bf16.mxu0 0
          %4225 = vmatpush1.bf16.msra.mxu0 %v4208
          %4226 = vmatprep.subr.bf16.mxu0 0
          %4227 = vmatpush1.bf16.msra.mxu0 %v4209
          %4228 = vmatprep.subr.bf16.mxu0 0
          %4229 = vmatpush1.bf16.msra.mxu0 %v4210
          %4230 = vmatprep.subr.bf16.mxu0 0
          %4231 = vmatpush1.bf16.msra.mxu0 %v4211
          %4232 = vmatprep.subr.bf16.mxu0 0
          %4233 = vmatpush1.bf16.msra.mxu0 %v4212
          %4234 = vmatprep.subr.bf16.mxu0 0
          %4235 = vmatpush1.bf16.msra.mxu0 %v4213
          %4236 = vmatprep.subr.bf16.mxu0 0
          %4237 = vmatpush1.bf16.msra.mxu0 %v4214
          %4238 = vmatprep.subr.bf16.mxu0 0
          %4239 = vmatpush1.bf16.msra.mxu0 %v4215
          %4240 = vmatprep.subr.bf16.mxu0 0
          %4241 = vmatpush1.bf16.msra.mxu0 0
          %4242 = vmatprep.subr.bf16.mxu0 0
          %4243 = vmatpush1.bf16.msra.mxu0 0
          %4244 = vmatprep.subr.bf16.mxu0 0
          %4245 = vmatpush1.bf16.msra.mxu0 0
          %4246 = vmatprep.subr.bf16.mxu0 0
          %4247 = vmatpush1.bf16.msra.mxu0 0
          %4248 = vmatprep.subr.bf16.mxu0 0
          %4249 = vmatpush1.bf16.msra.mxu0 0
          %4250 = vmatprep.subr.bf16.mxu0 0
          %4251 = vmatpush1.bf16.msra.mxu0 0
          %4252 = vmatprep.subr.bf16.mxu0 0
          %4253 = vmatpush1.bf16.msra.mxu0 0
          %4254 = vmatprep.subr.bf16.mxu0 0
          %4255 = vmatpush1.bf16.msra.mxu0 0
          %4256 = vmatprep.mubr.bf16.mxu0 0
          %4257 = vmatmul.mubr.bf16.gmra.mrb[0].mxu0 %v4159
          %v4258 = vpop.f32.mrb[0].mxu0
          %v4259 = vadd.f32 0.0, %v4258
          %v4260 = vpop.f32.mrb[0].mxu0
          %v4261 = vpop.f32.mrb[0].mxu0
          %v4262 = vpop.f32.mrb[0].mxu0
          %4263 = vdwg.mxu0
          %vm4264 = vcmask 516096
          %4265 = vst.msk [vmem:[%s1064] sm:$0x1] %vm4264, %v4259
        $region168: #{visual_model_forward.1} parent=107 // pred_fallthru
          _
        %s4266 = sand.u32 %s586, 1
        %s4267 = scalar_lea.sflag [#allocation5], %s4266
        %s4268 = sand.u32 %s586, 1
        %s4269 = scalar_lea.vmem [#allocation20], %s4268
        // Predicated region
        $region169: #{visual_model_forward.1} parent=107 // pred_check
          %p4270 = pneg %p596
        $region170: #{visual_model_forward.1} parent=107 // pred_check_branch
          %4272 = sbr.rel (%p4270) target = $region172
        $region171: #{visual_model_forward.1} parent=107 // pred_region
          %s4274 = ssub.s32 16, 16
          %4275 = vsyncadd %s4267, %s4274
          %s4276 = smul.addr %s43, 16
          %s4277 = scalar_lea.hbm %s22, %s4276
          %s4279 = sshll.u32 %s4269, 4
          %s4280 = int_to_ptr.vmem [resolvable:$true] %s4279
          %4282 = dma.vmem_to_hbm [thread:$0]  %s4280, 16, %s4277, %s4267
        $region172: #{visual_model_forward.1} parent=107 // pred_fallthru
          _
      $region108: #{visual_model_forward.1} parent=5 // pred_fallthru
        _
      %p4283 = scmp.le.s32.totalorder 2, %s34
      // Predicated region
      $region173: #{visual_model_forward.1} parent=5 // pred_check
        %p4284 = pneg %p4283
      $region174: #{visual_model_forward.1} parent=5 // pred_check_branch
        %4286 = sbr.rel (%p4284) target = $region176
      $region175: #{visual_model_forward.1} parent=5 // pred_region
        %s4287 = ssub.s32 %s34, 2
        // Predicated region
        $region177: #{visual_model_forward.1} parent=175 // pred_check
          %p4288 = pneg %p602
        $region178: #{visual_model_forward.1} parent=175 // pred_check_branch
          %4290 = sbr.rel (%p4288) target = $region180
        $region179: #{visual_model_forward.1} parent=175 // pred_region
          %s4291 = sand.u32 %s587, 1
          %s4292 = scalar_lea.sflag [#allocation5], %s4291
          %s4293 = sand.u32 %s587, 1
          %s4294 = scalar_lea.vmem [#allocation20], %s4293
          %4295 = dma.done %s4292, 16
        $region180: #{visual_model_forward.1} parent=175 // pred_fallthru
          _
      $region176: #{visual_model_forward.1} parent=5 // pred_fallthru
        _
    $region6: #{visual_model_forward.1} parent=1 // loop_footer
      %s38 = sadd.s32 1, %s34
    $region7: #{visual_model_forward.1} parent=1 // loop_footer_branch
      %33 = sbr.rel target = $region3
    $region8: #{visual_model_forward.1} parent=1 // loop_exit
      _
    %4296 = vsyncpa [#allocation4], 1
    %s4297 = scalar_lea.sflag [#allocation4], 1
    %4298 = vsyncpa %s4297, 1
    %4299 = vsyncpa [#allocation7], 1
    %4300 = vsyncpa [#allocation10], 1
    %4301 = vsyncpa [#allocation5], 1
    %s4302 = scalar_lea.sflag [#allocation5], 1
    %4303 = vsyncpa %s4302, 1

</llo_original>
